<compile_context>
chip_gen: v7x
topology: tpu7x:2x2x1
jax: 0.10.0
libtpu: 0.0.40
codegen_flags: <defaults>
</compile_context>

<pallas_src>
from functools import partial

import jax
import jax.numpy as jnp
from jax import lax
from jax.experimental import pallas as pl
from jax.experimental.pallas import tpu as pltpu


def _mix(coefs, mats):
    """sum_i coefs[i] * mats[i] without a spurious 0 + x term."""
    acc = coefs[0] * mats[0]
    for c, m in zip(coefs[1:], mats[1:]):
        acc = acc + c * m
    return acc


def talking_head_attn_kernel(x_ref, wqkv_ref, wp_ref, bp_ref,
                             wl_ref, ww_ref, bw_ref, o_ref,
                             qkv_s, heads_s, *, num_heads, mix_dtype):
    Bt, N, C = x_ref.shape
    H = num_heads
    hd = C // H

    # ---- fused QKV projection: one (Bt*N, C) @ (C, 3C) MXU matmul (bf16) ----
    x = x_ref[...].reshape(Bt * N, C)                                  # bf16
    qkv = jnp.dot(x, wqkv_ref[...], preferred_element_type=jnp.float32)
    qkv_s[...] = qkv.reshape(Bt, N, 3 * C).astype(jnp.bfloat16)

    # Tiny talking-heads weights live in SMEM; read the scalars once (hoisted
    # out of the batch loop).  wl already carries the 1/sqrt(hd) scale; bl is
    # dropped entirely (softmax shift invariance makes it a no-op).
    wl_c = [[wl_ref[g, h].astype(mix_dtype) for h in range(H)] for g in range(H)]
    ww_c = [[ww_ref[t, g].astype(mix_dtype) for g in range(H)] for t in range(H)]
    bw_c = [bw_ref[t] for t in range(H)]

    def body(b, carry):
        qkv_b = qkv_s[b]                                               # (N, 3C) bf16
        qb = qkv_b[:, 0 * C:1 * C]
        kb = qkv_b[:, 1 * C:2 * C]
        vb = qkv_b[:, 2 * C:3 * C]

        # Per-head logits.  Heads live on the lane axis, so H small matmuls
        # (A @ B^T expressed as dot_general contracting dim 1 of both -- no
        # explicit k transpose) beat a head-batched einsum that would need a
        # major-axis relayout.
        s = [lax.dot_general(qb[:, h * hd:(h + 1) * hd],
                             kb[:, h * hd:(h + 1) * hd],
                             (((1,), (1,)), ((), ())),
                             preferred_element_type=jnp.float32).astype(mix_dtype)
             for h in range(H)]

        # Talking-heads mix #1 (proj_l; scale folded in, bias dropped).
        a = [_mix(wl_c[g], s) for g in range(H)]

        # Row softmax in f32; reciprocal on the EUP (free slot).
        p = []
        for g in range(H):
            ag = a[g].astype(jnp.float32)
            m = jnp.max(ag, axis=-1, keepdims=True)
            e = jnp.exp(ag - m)
            r = pl.reciprocal(jnp.sum(e, axis=-1, keepdims=True), approx=True)
            p.append((e * r).astype(mix_dtype))

        # Talking-heads mix #2 (proj_w) + PV matmul.  The proj_w bias is
        # applied on the (N, hd) output as bw[t] * colsum(v_t) instead of a
        # (N, N) broadcast-add on the attention weights.
        for t in range(H):
            w2 = _mix(ww_c[t], p)                                      # (N, N)
            vt = vb[:, t * hd:(t + 1) * hd]                            # (N, hd) bf16
            ot = jnp.dot(w2.astype(jnp.bfloat16), vt,
                         preferred_element_type=jnp.float32)           # (N, hd) f32
            vsum = jnp.sum(vt.astype(jnp.float32), axis=0, keepdims=True)
            ot = ot + bw_c[t] * vsum
            heads_s[b, :, t * hd:(t + 1) * hd] = ot.astype(jnp.bfloat16)
        return carry

    lax.fori_loop(0, Bt, body, 0)

    # ---- output projection: one (Bt*N, C) @ (C, C) MXU matmul + bias --------
    heads = heads_s[...].reshape(Bt * N, C)                            # bf16
    y = jnp.dot(heads, wp_ref[...], preferred_element_type=jnp.float32) + bp_ref[...]
    o_ref[...] = y.reshape(Bt, N, C).astype(o_ref.dtype)


def talking_head_attn(x, wqkv_t, wp_t, bp, wl, bl, ww, bw, *,
                      num_heads, block_b=None, out_dtype=None):
    """x: (B, N, C). wqkv_t: (C, 3C), wp_t: (C, C) pre-transposed Linear weights.
    bp: (C,) proj bias. wl/ww: (H, H), bl/bw: (H,) talking-heads Linear params.
    bl is accepted for API parity but is a mathematical no-op on the output
    (softmax shift invariance) and is not sent to the kernel."""
    B, N, C = x.shape
    assert C % num_heads == 0, "dim must be divisible by num_heads"
    head_dim = C // num_heads
    scale = head_dim ** (-0.5)
    out_dtype = x.dtype if out_dtype is None else out_dtype

    # Chip-aware defaults: bf16 talking-heads mixing only where the VPU has a
    # bf16 path (v6e/v7x); conservative VMEM limit on v7x (64 MiB physical).
    kind = jax.devices()[0].device_kind.lower()
    if "v7" in kind:
        mix_dtype, vmem_limit = jnp.bfloat16, 48 * 1024 * 1024
    elif "v6" in kind:
        mix_dtype, vmem_limit = jnp.bfloat16, 96 * 1024 * 1024
    elif "v5" in kind:
        mix_dtype, vmem_limit = jnp.float32, 96 * 1024 * 1024   # no bf16 VALU on v5e
    else:
        mix_dtype, vmem_limit = jnp.float32, None

    # Rough per-grid-step VMEM estimate: f32 QKV intermediate, bf16 qkv/heads
    # scratch, double-buffered x/out tiles, resident (single-buffered) weights.
    def est_vmem(bt):
        m = bt * N
        return (m * 3 * C * 4            # f32 qkv matmul result (transient)
                + m * 3 * C * 2          # qkv scratch (bf16)
                + m * C * 2              # heads scratch (bf16)
                + 2 * m * C * 2          # x tile, double-buffered bf16
                + 2 * m * C * jnp.dtype(out_dtype).itemsize  # out tile, dbl-buffered
                + C * 3 * C * 2 + C * C * 2 + C * 4)          # weights + bias

    budget = (vmem_limit or 32 * 1024 * 1024) * 3 // 4
    if block_b is None:
        block_b = 1
        for cand in (8, 4, 2):
            if B % cand == 0 and B // cand >= 2 and est_vmem(cand) <= budget:
                block_b = cand
                break
    assert B % block_b == 0

    # bf16 MXU operands (f32 accumulation inside the kernel); the tiny
    # head-mixing weights stay f32 and are read from SMEM as scalars.
    x_lp = x.astype(jnp.bfloat16)
    wqkv_lp = wqkv_t.astype(jnp.bfloat16)
    wp_lp = wp_t.astype(jnp.bfloat16)
    bp2 = bp.reshape(1, C).astype(jnp.float32)
    # Fold the 1/sqrt(hd) q-scale into proj_l's weight (it commutes through the
    # linear pre-softmax mix); bl is intentionally unused (softmax-shift no-op).
    wl_scaled = (wl * scale).astype(jnp.float32)

    kernel = partial(talking_head_attn_kernel, num_heads=num_heads,
                     mix_dtype=mix_dtype)
    smem = pl.BlockSpec(memory_space=pltpu.MemorySpace.SMEM)

    cp_kwargs = dict(dimension_semantics=("parallel",))
    if vmem_limit is not None:
        cp_kwargs["vmem_limit_bytes"] = vmem_limit

    def build(single_buffer_weights):
        wkw = {"pipeline_mode": pl.Buffered(1)} if single_buffer_weights else {}
        return pl.pallas_call(
            kernel,
            out_shape=jax.ShapeDtypeStruct((B, N, C), out_dtype),
            grid=(B // block_b,),
            in_specs=[
                pl.BlockSpec((block_b, N, C), lambda b: (b, 0, 0)),       # x tile
                pl.BlockSpec((C, 3 * C), lambda b: (0, 0), **wkw),        # Wqkv^T
                pl.BlockSpec((C, C), lambda b: (0, 0), **wkw),            # Wproj^T
                pl.BlockSpec((1, C), lambda b: (0, 0), **wkw),            # proj bias
                smem, smem, smem,                                         # Wl*scale, Ww, bw
            ],
            out_specs=pl.BlockSpec((block_b, N, C), lambda b: (b, 0, 0)),
            scratch_shapes=[
                pltpu.VMEM((block_b, N, 3 * C), jnp.bfloat16),   # q|k|v (bf16)
                pltpu.VMEM((block_b, N, C), jnp.bfloat16),       # merged head outputs
            ],
            compiler_params=pltpu.CompilerParams(**cp_kwargs),
        )

    args = (x_lp, wqkv_lp, wp_lp, bp2, wl_scaled,
            ww.astype(jnp.float32), bw.astype(jnp.float32))
    try:
        return build(True)(*args)
    except Exception:
        # Fallback for jax builds that reject single-buffered (Buffered(1)) specs.
        return build(False)(*args)


def talking_head_attn_ref(x, wqkv_t, wp_t, bp, wl, bl, ww, bw, *, num_heads):
    """Pure-JAX f32 reference mirroring the PyTorch forward (keeps bl)."""
    B, N, C = x.shape
    H = num_heads
    hd = C // H
    scale = hd ** (-0.5)
    qkv = x @ wqkv_t                                                  # (B, N, 3C)
    qkv = qkv.reshape(B, N, 3, H, hd).transpose(2, 0, 3, 1, 4)        # (3, B, H, N, hd)
    q, k, v = qkv[0] * scale, qkv[1], qkv[2]
    attn = jnp.einsum("bhid,bhjd->bhij", q, k)                        # (B, H, N, N)
    attn = jnp.einsum("gh,bhij->bgij", wl, attn) + bl[None, :, None, None]
    attn = jax.nn.softmax(attn, axis=-1)
    attn = jnp.einsum("gh,bhij->bgij", ww, attn) + bw[None, :, None, None]
    out = jnp.einsum("bhij,bhjd->bhid", attn, v)                      # (B, H, N, hd)
    out = out.transpose(0, 2, 1, 3).reshape(B, N, C)
    return out @ wp_t + bp[None, None, :]


if __name__ == "__main__":
    B, N, C = 4, 8, 32
    num_heads = 4  # head_dim = 8

    key = jax.random.PRNGKey(0)
    kx, k1, k2, k3, k4, k5, k6, k7 = jax.random.split(key, 8)

    x = jax.random.normal(kx, (B, N, C), dtype=jnp.float32)

    # PyTorch nn.Linear weights are (out, in); big ones are passed pre-transposed.
    wqkv_t = 0.1 * jax.random.normal(k1, (C, 3 * C), dtype=jnp.float32)
    wp_t = 0.1 * jax.random.normal(k2, (C, C), dtype=jnp.float32)
    bp = 0.1 * jax.random.normal(k3, (C,), dtype=jnp.float32)
    wl = 0.1 * jax.random.normal(k4, (num_heads, num_heads), dtype=jnp.float32)
    bl = 0.1 * jax.random.normal(k5, (num_heads,), dtype=jnp.float32)
    ww = 0.1 * jax.random.normal(k6, (num_heads, num_heads), dtype=jnp.float32)
    bw = 0.1 * jax.random.normal(k7, (num_heads,), dtype=jnp.float32)

    out = talking_head_attn(x, wqkv_t, wp_t, bp, wl, bl, ww, bw,
                            num_heads=num_heads)
    out = jax.block_until_ready(out)

    ref = talking_head_attn_ref(x, wqkv_t, wp_t, bp, wl, bl, ww, bw,
                                num_heads=num_heads)
    assert out.shape == (B, N, C)
    # Kernel uses bf16 MXU operands (f32 accumulation) vs an f32 reference,
    # so compare at bf16-level tolerance.
    err = float(jnp.max(jnp.abs(out - ref)))
    assert jnp.allclose(out, ref, atol=2e-2, rtol=2e-2), (
        f"mismatch vs reference: max abs err {err:.3e}")

    print("KERNEL_OK")
</pallas_src>

<mosaic_0001>
module attributes {stable_mosaic.version = 11 : i64} {
  func.func @talking_head_attn_kernel(%arg0: i32, %arg1: memref<2x8x32xbf16, #tpu.memory_space<vmem>>, %arg2: memref<32x96xbf16, #tpu.memory_space<vmem>>, %arg3: memref<32x32xbf16, #tpu.memory_space<vmem>>, %arg4: memref<1x32xf32, #tpu.memory_space<vmem>>, %arg5: memref<4x4xf32, #tpu.memory_space<smem>>, %arg6: memref<4x4xf32, #tpu.memory_space<smem>>, %arg7: memref<4xf32, #tpu.memory_space<smem>>, %arg8: memref<2x8x32xf32, #tpu.memory_space<vmem>>, %arg9: memref<2x8x96xbf16, #tpu.memory_space<vmem>>, %arg10: memref<2x8x32xbf16, #tpu.memory_space<vmem>>) attributes {dimension_semantics = [#tpu.dimension_semantics<parallel>], iteration_bounds = array<i64: 2>, scalar_prefetch = 0 : i64, scratch_operands = 2 : i64, tpu.core_type = #tpu.core_type<tc>, window_params = [{transform_indices = @transform_0, window_bounds = array<i64: 2, 8, 32>}, {pipeline_mode = #tpu.pipeline_mode<synchronous>, transform_indices = @transform_1, window_bounds = array<i64: 32, 96>}, {pipeline_mode = #tpu.pipeline_mode<synchronous>, transform_indices = @transform_2, window_bounds = array<i64: 32, 32>}, {pipeline_mode = #tpu.pipeline_mode<synchronous>, transform_indices = @transform_3, window_bounds = array<i64: 1, 32>}, {transform_indices = @transform_4, window_bounds = array<i64: 4, 4>}, {transform_indices = @transform_5, window_bounds = array<i64: 4, 4>}, {transform_indices = @transform_6, window_bounds = array<i64: 4>}, {transform_indices = @transform_7, window_bounds = array<i64: 2, 8, 32>}]} {
    %c0 = arith.constant 0 : index
    %c0_0 = arith.constant 0 : index
    %c0_1 = arith.constant 0 : index
    %0 = vector.load %arg1[%c0, %c0_0, %c0_1] : memref<2x8x32xbf16, #tpu.memory_space<vmem>>, vector<2x8x32xbf16>
    %1 = vector.shape_cast %0 : vector<2x8x32xbf16> to vector<16x32xbf16>
    %c0_2 = arith.constant 0 : index
    %c0_3 = arith.constant 0 : index
    %2 = vector.load %arg2[%c0_2, %c0_3] : memref<32x96xbf16, #tpu.memory_space<vmem>>, vector<32x96xbf16>
    %cst = arith.constant dense<0.000000e+00> : vector<16x96xf32>
    %3 = tpu.matmul %1, %2, %cst {dimension_numbers = #tpu.dot_dimension_numbers<[1], [0], [0], [1], [0, 0, 1, 1], [], []>} : vector<16x32xbf16>, vector<32x96xbf16>, vector<16x96xf32> -> vector<16x96xf32>
    %4 = vector.shape_cast %3 : vector<16x96xf32> to vector<2x8x96xf32>
    %5 = arith.truncf %4 : vector<2x8x96xf32> to vector<2x8x96xbf16>
    %c0_4 = arith.constant 0 : index
    %c0_5 = arith.constant 0 : index
    %c0_6 = arith.constant 0 : index
    %6 = vector.load %arg9[%c0_4, %c0_5, %c0_6] : memref<2x8x96xbf16, #tpu.memory_space<vmem>>, vector<2x8x96xbf16>
    tpu.vector_store %arg9[%c0_4, %c0_5, %c0_6], %5 {strides = array<i32>} : memref<2x8x96xbf16, #tpu.memory_space<vmem>>, vector<2x8x96xbf16>,
    %c0_7 = arith.constant 0 : index
    %c0_8 = arith.constant 0 : index
    %7 = memref.load %arg5[%c0_7, %c0_8] : memref<4x4xf32, #tpu.memory_space<smem>>
    %c0_9 = arith.constant 0 : index
    %c1 = arith.constant 1 : index
    %8 = memref.load %arg5[%c0_9, %c1] : memref<4x4xf32, #tpu.memory_space<smem>>
    %c0_10 = arith.constant 0 : index
    %c2 = arith.constant 2 : index
    %9 = memref.load %arg5[%c0_10, %c2] : memref<4x4xf32, #tpu.memory_space<smem>>
    %c0_11 = arith.constant 0 : index
    %c3 = arith.constant 3 : index
    %10 = memref.load %arg5[%c0_11, %c3] : memref<4x4xf32, #tpu.memory_space<smem>>
    %c1_12 = arith.constant 1 : index
    %c0_13 = arith.constant 0 : index
    %11 = memref.load %arg5[%c1_12, %c0_13] : memref<4x4xf32, #tpu.memory_space<smem>>
    %c1_14 = arith.constant 1 : index
    %c1_15 = arith.constant 1 : index
    %12 = memref.load %arg5[%c1_14, %c1_15] : memref<4x4xf32, #tpu.memory_space<smem>>
    %c1_16 = arith.constant 1 : index
    %c2_17 = arith.constant 2 : index
    %13 = memref.load %arg5[%c1_16, %c2_17] : memref<4x4xf32, #tpu.memory_space<smem>>
    %c1_18 = arith.constant 1 : index
    %c3_19 = arith.constant 3 : index
    %14 = memref.load %arg5[%c1_18, %c3_19] : memref<4x4xf32, #tpu.memory_space<smem>>
    %c2_20 = arith.constant 2 : index
    %c0_21 = arith.constant 0 : index
    %15 = memref.load %arg5[%c2_20, %c0_21] : memref<4x4xf32, #tpu.memory_space<smem>>
    %c2_22 = arith.constant 2 : index
    %c1_23 = arith.constant 1 : index
    %16 = memref.load %arg5[%c2_22, %c1_23] : memref<4x4xf32, #tpu.memory_space<smem>>
    %c2_24 = arith.constant 2 : index
    %c2_25 = arith.constant 2 : index
    %17 = memref.load %arg5[%c2_24, %c2_25] : memref<4x4xf32, #tpu.memory_space<smem>>
    %c2_26 = arith.constant 2 : index
    %c3_27 = arith.constant 3 : index
    %18 = memref.load %arg5[%c2_26, %c3_27] : memref<4x4xf32, #tpu.memory_space<smem>>
    %c3_28 = arith.constant 3 : index
    %c0_29 = arith.constant 0 : index
    %19 = memref.load %arg5[%c3_28, %c0_29] : memref<4x4xf32, #tpu.memory_space<smem>>
    %c3_30 = arith.constant 3 : index
    %c1_31 = arith.constant 1 : index
    %20 = memref.load %arg5[%c3_30, %c1_31] : memref<4x4xf32, #tpu.memory_space<smem>>
    %c3_32 = arith.constant 3 : index
    %c2_33 = arith.constant 2 : index
    %21 = memref.load %arg5[%c3_32, %c2_33] : memref<4x4xf32, #tpu.memory_space<smem>>
    %c3_34 = arith.constant 3 : index
    %c3_35 = arith.constant 3 : index
    %22 = memref.load %arg5[%c3_34, %c3_35] : memref<4x4xf32, #tpu.memory_space<smem>>
    %c0_36 = arith.constant 0 : index
    %c0_37 = arith.constant 0 : index
    %23 = memref.load %arg6[%c0_36, %c0_37] : memref<4x4xf32, #tpu.memory_space<smem>>
    %c0_38 = arith.constant 0 : index
    %c1_39 = arith.constant 1 : index
    %24 = memref.load %arg6[%c0_38, %c1_39] : memref<4x4xf32, #tpu.memory_space<smem>>
    %c0_40 = arith.constant 0 : index
    %c2_41 = arith.constant 2 : index
    %25 = memref.load %arg6[%c0_40, %c2_41] : memref<4x4xf32, #tpu.memory_space<smem>>
    %c0_42 = arith.constant 0 : index
    %c3_43 = arith.constant 3 : index
    %26 = memref.load %arg6[%c0_42, %c3_43] : memref<4x4xf32, #tpu.memory_space<smem>>
    %c1_44 = arith.constant 1 : index
    %c0_45 = arith.constant 0 : index
    %27 = memref.load %arg6[%c1_44, %c0_45] : memref<4x4xf32, #tpu.memory_space<smem>>
    %c1_46 = arith.constant 1 : index
    %c1_47 = arith.constant 1 : index
    %28 = memref.load %arg6[%c1_46, %c1_47] : memref<4x4xf32, #tpu.memory_space<smem>>
    %c1_48 = arith.constant 1 : index
    %c2_49 = arith.constant 2 : index
    %29 = memref.load %arg6[%c1_48, %c2_49] : memref<4x4xf32, #tpu.memory_space<smem>>
    %c1_50 = arith.constant 1 : index
    %c3_51 = arith.constant 3 : index
    %30 = memref.load %arg6[%c1_50, %c3_51] : memref<4x4xf32, #tpu.memory_space<smem>>
    %c2_52 = arith.constant 2 : index
    %c0_53 = arith.constant 0 : index
    %31 = memref.load %arg6[%c2_52, %c0_53] : memref<4x4xf32, #tpu.memory_space<smem>>
    %c2_54 = arith.constant 2 : index
    %c1_55 = arith.constant 1 : index
    %32 = memref.load %arg6[%c2_54, %c1_55] : memref<4x4xf32, #tpu.memory_space<smem>>
    %c2_56 = arith.constant 2 : index
    %c2_57 = arith.constant 2 : index
    %33 = memref.load %arg6[%c2_56, %c2_57] : memref<4x4xf32, #tpu.memory_space<smem>>
    %c2_58 = arith.constant 2 : index
    %c3_59 = arith.constant 3 : index
    %34 = memref.load %arg6[%c2_58, %c3_59] : memref<4x4xf32, #tpu.memory_space<smem>>
    %c3_60 = arith.constant 3 : index
    %c0_61 = arith.constant 0 : index
    %35 = memref.load %arg6[%c3_60, %c0_61] : memref<4x4xf32, #tpu.memory_space<smem>>
    %c3_62 = arith.constant 3 : index
    %c1_63 = arith.constant 1 : index
    %36 = memref.load %arg6[%c3_62, %c1_63] : memref<4x4xf32, #tpu.memory_space<smem>>
    %c3_64 = arith.constant 3 : index
    %c2_65 = arith.constant 2 : index
    %37 = memref.load %arg6[%c3_64, %c2_65] : memref<4x4xf32, #tpu.memory_space<smem>>
    %c3_66 = arith.constant 3 : index
    %c3_67 = arith.constant 3 : index
    %38 = memref.load %arg6[%c3_66, %c3_67] : memref<4x4xf32, #tpu.memory_space<smem>>
    %c0_68 = arith.constant 0 : index
    %39 = memref.load %arg7[%c0_68] : memref<4xf32, #tpu.memory_space<smem>>
    %c1_69 = arith.constant 1 : index
    %40 = memref.load %arg7[%c1_69] : memref<4xf32, #tpu.memory_space<smem>>
    %c2_70 = arith.constant 2 : index
    %41 = memref.load %arg7[%c2_70] : memref<4xf32, #tpu.memory_space<smem>>
    %c3_71 = arith.constant 3 : index
    %42 = memref.load %arg7[%c3_71] : memref<4xf32, #tpu.memory_space<smem>>
    %c0_i32 = arith.constant 0 : i32
    %c2_i32 = arith.constant 2 : i32
    %43 = arith.addi %c0_i32, %c2_i32 : i32
    %c1_i32 = arith.constant 1 : i32
    scf.for %arg11 = %c0_i32 to %43 step %c1_i32  : i32 {
      %53 = arith.index_cast %arg11 : i32 to index
      %c0_84 = arith.constant 0 : index
      %c0_85 = arith.constant 0 : index
      %54 = vector.load %arg9[%53, %c0_84, %c0_85] : memref<2x8x96xbf16, #tpu.memory_space<vmem>>, vector<1x8x96xbf16>
      %55 = vector.shape_cast %54 : vector<1x8x96xbf16> to vector<8x96xbf16>
      %56 = vector.extract_strided_slice %55 {offsets = [0, 0], sizes = [8, 32], strides = [1, 1]} : vector<8x96xbf16> to vector<8x32xbf16>
      %57 = vector.extract_strided_slice %55 {offsets = [0, 32], sizes = [8, 32], strides = [1, 1]} : vector<8x96xbf16> to vector<8x32xbf16>
      %58 = vector.extract_strided_slice %55 {offsets = [0, 64], sizes = [8, 32], strides = [1, 1]} : vector<8x96xbf16> to vector<8x32xbf16>
      %59 = vector.extract_strided_slice %56 {offsets = [0, 0], sizes = [8, 8], strides = [1, 1]} : vector<8x32xbf16> to vector<8x8xbf16>
      %60 = vector.extract_strided_slice %57 {offsets = [0, 0], sizes = [8, 8], strides = [1, 1]} : vector<8x32xbf16> to vector<8x8xbf16>
      %cst_86 = arith.constant dense<0.000000e+00> : vector<8x8xf32>
      %61 = tpu.matmul %59, %60, %cst_86 {dimension_numbers = #tpu.dot_dimension_numbers<[1], [1], [0], [0], [0, 0, 1, 0], [], []>} : vector<8x8xbf16>, vector<8x8xbf16>, vector<8x8xf32> -> vector<8x8xf32>
      %62 = vector.extract_strided_slice %56 {offsets = [0, 8], sizes = [8, 8], strides = [1, 1]} : vector<8x32xbf16> to vector<8x8xbf16>
      %63 = vector.extract_strided_slice %57 {offsets = [0, 8], sizes = [8, 8], strides = [1, 1]} : vector<8x32xbf16> to vector<8x8xbf16>
      %cst_87 = arith.constant dense<0.000000e+00> : vector<8x8xf32>
      %64 = tpu.matmul %62, %63, %cst_87 {dimension_numbers = #tpu.dot_dimension_numbers<[1], [1], [0], [0], [0, 0, 1, 0], [], []>} : vector<8x8xbf16>, vector<8x8xbf16>, vector<8x8xf32> -> vector<8x8xf32>
      %65 = vector.extract_strided_slice %56 {offsets = [0, 16], sizes = [8, 8], strides = [1, 1]} : vector<8x32xbf16> to vector<8x8xbf16>
      %66 = vector.extract_strided_slice %57 {offsets = [0, 16], sizes = [8, 8], strides = [1, 1]} : vector<8x32xbf16> to vector<8x8xbf16>
      %cst_88 = arith.constant dense<0.000000e+00> : vector<8x8xf32>
      %67 = tpu.matmul %65, %66, %cst_88 {dimension_numbers = #tpu.dot_dimension_numbers<[1], [1], [0], [0], [0, 0, 1, 0], [], []>} : vector<8x8xbf16>, vector<8x8xbf16>, vector<8x8xf32> -> vector<8x8xf32>
      %68 = vector.extract_strided_slice %56 {offsets = [0, 24], sizes = [8, 8], strides = [1, 1]} : vector<8x32xbf16> to vector<8x8xbf16>
      %69 = vector.extract_strided_slice %57 {offsets = [0, 24], sizes = [8, 8], strides = [1, 1]} : vector<8x32xbf16> to vector<8x8xbf16>
      %cst_89 = arith.constant dense<0.000000e+00> : vector<8x8xf32>
      %70 = tpu.matmul %68, %69, %cst_89 {dimension_numbers = #tpu.dot_dimension_numbers<[1], [1], [0], [0], [0, 0, 1, 0], [], []>} : vector<8x8xbf16>, vector<8x8xbf16>, vector<8x8xf32> -> vector<8x8xf32>
      %71 = vector.broadcast %7 : f32 to vector<8x8xf32>
      %72 = arith.mulf %71, %61 : vector<8x8xf32>
      %73 = vector.broadcast %8 : f32 to vector<8x8xf32>
      %74 = arith.mulf %73, %64 : vector<8x8xf32>
      %75 = arith.addf %72, %74 : vector<8x8xf32>
      %76 = vector.broadcast %9 : f32 to vector<8x8xf32>
      %77 = arith.mulf %76, %67 : vector<8x8xf32>
      %78 = arith.addf %75, %77 : vector<8x8xf32>
      %79 = vector.broadcast %10 : f32 to vector<8x8xf32>
      %80 = arith.mulf %79, %70 : vector<8x8xf32>
      %81 = arith.addf %78, %80 : vector<8x8xf32>
      %82 = vector.broadcast %11 : f32 to vector<8x8xf32>
      %83 = arith.mulf %82, %61 : vector<8x8xf32>
      %84 = vector.broadcast %12 : f32 to vector<8x8xf32>
      %85 = arith.mulf %84, %64 : vector<8x8xf32>
      %86 = arith.addf %83, %85 : vector<8x8xf32>
      %87 = vector.broadcast %13 : f32 to vector<8x8xf32>
      %88 = arith.mulf %87, %67 : vector<8x8xf32>
      %89 = arith.addf %86, %88 : vector<8x8xf32>
      %90 = vector.broadcast %14 : f32 to vector<8x8xf32>
      %91 = arith.mulf %90, %70 : vector<8x8xf32>
      %92 = arith.addf %89, %91 : vector<8x8xf32>
      %93 = vector.broadcast %15 : f32 to vector<8x8xf32>
      %94 = arith.mulf %93, %61 : vector<8x8xf32>
      %95 = vector.broadcast %16 : f32 to vector<8x8xf32>
      %96 = arith.mulf %95, %64 : vector<8x8xf32>
      %97 = arith.addf %94, %96 : vector<8x8xf32>
      %98 = vector.broadcast %17 : f32 to vector<8x8xf32>
      %99 = arith.mulf %98, %67 : vector<8x8xf32>
      %100 = arith.addf %97, %99 : vector<8x8xf32>
      %101 = vector.broadcast %18 : f32 to vector<8x8xf32>
      %102 = arith.mulf %101, %70 : vector<8x8xf32>
      %103 = arith.addf %100, %102 : vector<8x8xf32>
      %104 = vector.broadcast %19 : f32 to vector<8x8xf32>
      %105 = arith.mulf %104, %61 : vector<8x8xf32>
      %106 = vector.broadcast %20 : f32 to vector<8x8xf32>
      %107 = arith.mulf %106, %64 : vector<8x8xf32>
      %108 = arith.addf %105, %107 : vector<8x8xf32>
      %109 = vector.broadcast %21 : f32 to vector<8x8xf32>
      %110 = arith.mulf %109, %67 : vector<8x8xf32>
      %111 = arith.addf %108, %110 : vector<8x8xf32>
      %112 = vector.broadcast %22 : f32 to vector<8x8xf32>
      %113 = arith.mulf %112, %70 : vector<8x8xf32>
      %114 = arith.addf %111, %113 : vector<8x8xf32>
      %cst_90 = arith.constant dense<0xFF800000> : vector<8xf32>
      %115 = vector.multi_reduction <maximumf>, %81, %cst_90 [1] : vector<8x8xf32> to vector<8xf32>
      %116 = vector.shape_cast %115 : vector<8xf32> to vector<8x1xf32>
      %117 = vector.broadcast %116 : vector<8x1xf32> to vector<8x8xf32>
      %118 = arith.subf %81, %117 : vector<8x8xf32>
      %119 = math.exp %118 : vector<8x8xf32>
      %cst_91 = arith.constant dense<0.000000e+00> : vector<8xf32>
      %120 = vector.multi_reduction <add>, %119, %cst_91 [1] : vector<8x8xf32> to vector<8xf32>
      %121 = vector.shape_cast %120 : vector<8xf32> to vector<8x1xf32>
      %122 = tpu.reciprocal %121 {approx = true} : vector<8x1xf32> -> vector<8x1xf32>
      %123 = vector.broadcast %122 : vector<8x1xf32> to vector<8x8xf32>
      %124 = arith.mulf %119, %123 : vector<8x8xf32>
      %cst_92 = arith.constant dense<0xFF800000> : vector<8xf32>
      %125 = vector.multi_reduction <maximumf>, %92, %cst_92 [1] : vector<8x8xf32> to vector<8xf32>
      %126 = vector.shape_cast %125 : vector<8xf32> to vector<8x1xf32>
      %127 = vector.broadcast %126 : vector<8x1xf32> to vector<8x8xf32>
      %128 = arith.subf %92, %127 : vector<8x8xf32>
      %129 = math.exp %128 : vector<8x8xf32>
      %cst_93 = arith.constant dense<0.000000e+00> : vector<8xf32>
      %130 = vector.multi_reduction <add>, %129, %cst_93 [1] : vector<8x8xf32> to vector<8xf32>
      %131 = vector.shape_cast %130 : vector<8xf32> to vector<8x1xf32>
      %132 = tpu.reciprocal %131 {approx = true} : vector<8x1xf32> -> vector<8x1xf32>
      %133 = vector.broadcast %132 : vector<8x1xf32> to vector<8x8xf32>
      %134 = arith.mulf %129, %133 : vector<8x8xf32>
      %cst_94 = arith.constant dense<0xFF800000> : vector<8xf32>
      %135 = vector.multi_reduction <maximumf>, %103, %cst_94 [1] : vector<8x8xf32> to vector<8xf32>
      %136 = vector.shape_cast %135 : vector<8xf32> to vector<8x1xf32>
      %137 = vector.broadcast %136 : vector<8x1xf32> to vector<8x8xf32>
      %138 = arith.subf %103, %137 : vector<8x8xf32>
      %139 = math.exp %138 : vector<8x8xf32>
      %cst_95 = arith.constant dense<0.000000e+00> : vector<8xf32>
      %140 = vector.multi_reduction <add>, %139, %cst_95 [1] : vector<8x8xf32> to vector<8xf32>
      %141 = vector.shape_cast %140 : vector<8xf32> to vector<8x1xf32>
      %142 = tpu.reciprocal %141 {approx = true} : vector<8x1xf32> -> vector<8x1xf32>
      %143 = vector.broadcast %142 : vector<8x1xf32> to vector<8x8xf32>
      %144 = arith.mulf %139, %143 : vector<8x8xf32>
      %cst_96 = arith.constant dense<0xFF800000> : vector<8xf32>
      %145 = vector.multi_reduction <maximumf>, %114, %cst_96 [1] : vector<8x8xf32> to vector<8xf32>
      %146 = vector.shape_cast %145 : vector<8xf32> to vector<8x1xf32>
      %147 = vector.broadcast %146 : vector<8x1xf32> to vector<8x8xf32>
      %148 = arith.subf %114, %147 : vector<8x8xf32>
      %149 = math.exp %148 : vector<8x8xf32>
      %cst_97 = arith.constant dense<0.000000e+00> : vector<8xf32>
      %150 = vector.multi_reduction <add>, %149, %cst_97 [1] : vector<8x8xf32> to vector<8xf32>
      %151 = vector.shape_cast %150 : vector<8xf32> to vector<8x1xf32>
      %152 = tpu.reciprocal %151 {approx = true} : vector<8x1xf32> -> vector<8x1xf32>
      %153 = vector.broadcast %152 : vector<8x1xf32> to vector<8x8xf32>
      %154 = arith.mulf %149, %153 : vector<8x8xf32>
      %155 = vector.broadcast %23 : f32 to vector<8x8xf32>
      %156 = arith.mulf %155, %124 : vector<8x8xf32>
      %157 = vector.broadcast %24 : f32 to vector<8x8xf32>
      %158 = arith.mulf %157, %134 : vector<8x8xf32>
      %159 = arith.addf %156, %158 : vector<8x8xf32>
      %160 = vector.broadcast %25 : f32 to vector<8x8xf32>
      %161 = arith.mulf %160, %144 : vector<8x8xf32>
      %162 = arith.addf %159, %161 : vector<8x8xf32>
      %163 = vector.broadcast %26 : f32 to vector<8x8xf32>
      %164 = arith.mulf %163, %154 : vector<8x8xf32>
      %165 = arith.addf %162, %164 : vector<8x8xf32>
      %166 = vector.extract_strided_slice %58 {offsets = [0, 0], sizes = [8, 8], strides = [1, 1]} : vector<8x32xbf16> to vector<8x8xbf16>
      %167 = arith.truncf %165 : vector<8x8xf32> to vector<8x8xbf16>
      %cst_98 = arith.constant dense<0.000000e+00> : vector<8x8xf32>
      %168 = tpu.matmul %167, %166, %cst_98 {dimension_numbers = #tpu.dot_dimension_numbers<[1], [0], [0], [1], [0, 0, 1, 1], [], []>} : vector<8x8xbf16>, vector<8x8xbf16>, vector<8x8xf32> -> vector<8x8xf32>
      %169 = arith.extf %166 : vector<8x8xbf16> to vector<8x8xf32>
      %cst_99 = arith.constant dense<0.000000e+00> : vector<8xf32>
      %170 = vector.multi_reduction <add>, %169, %cst_99 [0] : vector<8x8xf32> to vector<8xf32>
      %171 = vector.shape_cast %170 : vector<8xf32> to vector<1x8xf32>
      %172 = vector.broadcast %39 : f32 to vector<1x8xf32>
      %173 = arith.mulf %172, %171 : vector<1x8xf32>
      %174 = vector.broadcast %173 : vector<1x8xf32> to vector<8x8xf32>
      %175 = arith.addf %168, %174 : vector<8x8xf32>
      %176 = arith.truncf %175 : vector<8x8xf32> to vector<8x8xbf16>
      %177 = arith.index_cast %arg11 : i32 to index
      %c0_100 = arith.constant 0 : index
      %c0_101 = arith.constant 0 : index
      %178 = vector.load %arg10[%177, %c0_100, %c0_101] : memref<2x8x32xbf16, #tpu.memory_space<vmem>>, vector<1x8x8xbf16>
      %179 = vector.shape_cast %178 : vector<1x8x8xbf16> to vector<8x8xbf16>
      %180 = vector.shape_cast %176 : vector<8x8xbf16> to vector<1x8x8xbf16>
      tpu.vector_store %arg10[%177, %c0_100, %c0_101], %180 {strides = array<i32>} : memref<2x8x32xbf16, #tpu.memory_space<vmem>>, vector<1x8x8xbf16>,
      %181 = vector.broadcast %27 : f32 to vector<8x8xf32>
      %182 = arith.mulf %181, %124 : vector<8x8xf32>
      %183 = vector.broadcast %28 : f32 to vector<8x8xf32>
      %184 = arith.mulf %183, %134 : vector<8x8xf32>
      %185 = arith.addf %182, %184 : vector<8x8xf32>
      %186 = vector.broadcast %29 : f32 to vector<8x8xf32>
      %187 = arith.mulf %186, %144 : vector<8x8xf32>
      %188 = arith.addf %185, %187 : vector<8x8xf32>
      %189 = vector.broadcast %30 : f32 to vector<8x8xf32>
      %190 = arith.mulf %189, %154 : vector<8x8xf32>
      %191 = arith.addf %188, %190 : vector<8x8xf32>
      %192 = vector.extract_strided_slice %58 {offsets = [0, 8], sizes = [8, 8], strides = [1, 1]} : vector<8x32xbf16> to vector<8x8xbf16>
      %193 = arith.truncf %191 : vector<8x8xf32> to vector<8x8xbf16>
      %cst_102 = arith.constant dense<0.000000e+00> : vector<8x8xf32>
      %194 = tpu.matmul %193, %192, %cst_102 {dimension_numbers = #tpu.dot_dimension_numbers<[1], [0], [0], [1], [0, 0, 1, 1], [], []>} : vector<8x8xbf16>, vector<8x8xbf16>, vector<8x8xf32> -> vector<8x8xf32>
      %195 = arith.extf %192 : vector<8x8xbf16> to vector<8x8xf32>
      %cst_103 = arith.constant dense<0.000000e+00> : vector<8xf32>
      %196 = vector.multi_reduction <add>, %195, %cst_103 [0] : vector<8x8xf32> to vector<8xf32>
      %197 = vector.shape_cast %196 : vector<8xf32> to vector<1x8xf32>
      %198 = vector.broadcast %40 : f32 to vector<1x8xf32>
      %199 = arith.mulf %198, %197 : vector<1x8xf32>
      %200 = vector.broadcast %199 : vector<1x8xf32> to vector<8x8xf32>
      %201 = arith.addf %194, %200 : vector<8x8xf32>
      %202 = arith.truncf %201 : vector<8x8xf32> to vector<8x8xbf16>
      %203 = arith.index_cast %arg11 : i32 to index
      %c0_104 = arith.constant 0 : index
      %c8 = arith.constant 8 : index
      %204 = vector.load %arg10[%203, %c0_104, %c8] : memref<2x8x32xbf16, #tpu.memory_space<vmem>>, vector<1x8x8xbf16>
      %205 = vector.shape_cast %204 : vector<1x8x8xbf16> to vector<8x8xbf16>
      %206 = vector.shape_cast %202 : vector<8x8xbf16> to vector<1x8x8xbf16>
      tpu.vector_store %arg10[%203, %c0_104, %c8], %206 {strides = array<i32>} : memref<2x8x32xbf16, #tpu.memory_space<vmem>>, vector<1x8x8xbf16>,
      %207 = vector.broadcast %31 : f32 to vector<8x8xf32>
      %208 = arith.mulf %207, %124 : vector<8x8xf32>
      %209 = vector.broadcast %32 : f32 to vector<8x8xf32>
      %210 = arith.mulf %209, %134 : vector<8x8xf32>
      %211 = arith.addf %208, %210 : vector<8x8xf32>
      %212 = vector.broadcast %33 : f32 to vector<8x8xf32>
      %213 = arith.mulf %212, %144 : vector<8x8xf32>
      %214 = arith.addf %211, %213 : vector<8x8xf32>
      %215 = vector.broadcast %34 : f32 to vector<8x8xf32>
      %216 = arith.mulf %215, %154 : vector<8x8xf32>
      %217 = arith.addf %214, %216 : vector<8x8xf32>
      %218 = vector.extract_strided_slice %58 {offsets = [0, 16], sizes = [8, 8], strides = [1, 1]} : vector<8x32xbf16> to vector<8x8xbf16>
      %219 = arith.truncf %217 : vector<8x8xf32> to vector<8x8xbf16>
      %cst_105 = arith.constant dense<0.000000e+00> : vector<8x8xf32>
      %220 = tpu.matmul %219, %218, %cst_105 {dimension_numbers = #tpu.dot_dimension_numbers<[1], [0], [0], [1], [0, 0, 1, 1], [], []>} : vector<8x8xbf16>, vector<8x8xbf16>, vector<8x8xf32> -> vector<8x8xf32>
      %221 = arith.extf %218 : vector<8x8xbf16> to vector<8x8xf32>
      %cst_106 = arith.constant dense<0.000000e+00> : vector<8xf32>
      %222 = vector.multi_reduction <add>, %221, %cst_106 [0] : vector<8x8xf32> to vector<8xf32>
      %223 = vector.shape_cast %222 : vector<8xf32> to vector<1x8xf32>
      %224 = vector.broadcast %41 : f32 to vector<1x8xf32>
      %225 = arith.mulf %224, %223 : vector<1x8xf32>
      %226 = vector.broadcast %225 : vector<1x8xf32> to vector<8x8xf32>
      %227 = arith.addf %220, %226 : vector<8x8xf32>
      %228 = arith.truncf %227 : vector<8x8xf32> to vector<8x8xbf16>
      %229 = arith.index_cast %arg11 : i32 to index
      %c0_107 = arith.constant 0 : index
      %c16 = arith.constant 16 : index
      %230 = vector.load %arg10[%229, %c0_107, %c16] : memref<2x8x32xbf16, #tpu.memory_space<vmem>>, vector<1x8x8xbf16>
      %231 = vector.shape_cast %230 : vector<1x8x8xbf16> to vector<8x8xbf16>
      %232 = vector.shape_cast %228 : vector<8x8xbf16> to vector<1x8x8xbf16>
      tpu.vector_store %arg10[%229, %c0_107, %c16], %232 {strides = array<i32>} : memref<2x8x32xbf16, #tpu.memory_space<vmem>>, vector<1x8x8xbf16>,
      %233 = vector.broadcast %35 : f32 to vector<8x8xf32>
      %234 = arith.mulf %233, %124 : vector<8x8xf32>
      %235 = vector.broadcast %36 : f32 to vector<8x8xf32>
      %236 = arith.mulf %235, %134 : vector<8x8xf32>
      %237 = arith.addf %234, %236 : vector<8x8xf32>
      %238 = vector.broadcast %37 : f32 to vector<8x8xf32>
      %239 = arith.mulf %238, %144 : vector<8x8xf32>
      %240 = arith.addf %237, %239 : vector<8x8xf32>
      %241 = vector.broadcast %38 : f32 to vector<8x8xf32>
      %242 = arith.mulf %241, %154 : vector<8x8xf32>
      %243 = arith.addf %240, %242 : vector<8x8xf32>
      %244 = vector.extract_strided_slice %58 {offsets = [0, 24], sizes = [8, 8], strides = [1, 1]} : vector<8x32xbf16> to vector<8x8xbf16>
      %245 = arith.truncf %243 : vector<8x8xf32> to vector<8x8xbf16>
      %cst_108 = arith.constant dense<0.000000e+00> : vector<8x8xf32>
      %246 = tpu.matmul %245, %244, %cst_108 {dimension_numbers = #tpu.dot_dimension_numbers<[1], [0], [0], [1], [0, 0, 1, 1], [], []>} : vector<8x8xbf16>, vector<8x8xbf16>, vector<8x8xf32> -> vector<8x8xf32>
      %247 = arith.extf %244 : vector<8x8xbf16> to vector<8x8xf32>
      %cst_109 = arith.constant dense<0.000000e+00> : vector<8xf32>
      %248 = vector.multi_reduction <add>, %247, %cst_109 [0] : vector<8x8xf32> to vector<8xf32>
      %249 = vector.shape_cast %248 : vector<8xf32> to vector<1x8xf32>
      %250 = vector.broadcast %42 : f32 to vector<1x8xf32>
      %251 = arith.mulf %250, %249 : vector<1x8xf32>
      %252 = vector.broadcast %251 : vector<1x8xf32> to vector<8x8xf32>
      %253 = arith.addf %246, %252 : vector<8x8xf32>
      %254 = arith.truncf %253 : vector<8x8xf32> to vector<8x8xbf16>
      %255 = arith.index_cast %arg11 : i32 to index
      %c0_110 = arith.constant 0 : index
      %c24 = arith.constant 24 : index
      %256 = vector.load %arg10[%255, %c0_110, %c24] : memref<2x8x32xbf16, #tpu.memory_space<vmem>>, vector<1x8x8xbf16>
      %257 = vector.shape_cast %256 : vector<1x8x8xbf16> to vector<8x8xbf16>
      %258 = vector.shape_cast %254 : vector<8x8xbf16> to vector<1x8x8xbf16>
      tpu.vector_store %arg10[%255, %c0_110, %c24], %258 {strides = array<i32>} : memref<2x8x32xbf16, #tpu.memory_space<vmem>>, vector<1x8x8xbf16>,
    }
    %c2_i32_72 = arith.constant 2 : i32
    %c0_73 = arith.constant 0 : index
    %c0_74 = arith.constant 0 : index
    %c0_75 = arith.constant 0 : index
    %44 = vector.load %arg10[%c0_73, %c0_74, %c0_75] : memref<2x8x32xbf16, #tpu.memory_space<vmem>>, vector<2x8x32xbf16>
    %45 = vector.shape_cast %44 : vector<2x8x32xbf16> to vector<16x32xbf16>
    %c0_76 = arith.constant 0 : index
    %c0_77 = arith.constant 0 : index
    %46 = vector.load %arg3[%c0_76, %c0_77] : memref<32x32xbf16, #tpu.memory_space<vmem>>, vector<32x32xbf16>
    %cst_78 = arith.constant dense<0.000000e+00> : vector<16x32xf32>
    %47 = tpu.matmul %45, %46, %cst_78 {dimension_numbers = #tpu.dot_dimension_numbers<[1], [0], [0], [1], [0, 0, 1, 1], [], []>} : vector<16x32xbf16>, vector<32x32xbf16>, vector<16x32xf32> -> vector<16x32xf32>
    %c0_79 = arith.constant 0 : index
    %c0_80 = arith.constant 0 : index
    %48 = vector.load %arg4[%c0_79, %c0_80] : memref<1x32xf32, #tpu.memory_space<vmem>>, vector<1x32xf32>
    %49 = vector.broadcast %48 : vector<1x32xf32> to vector<16x32xf32>
    %50 = arith.addf %47, %49 : vector<16x32xf32>
    %51 = vector.shape_cast %50 : vector<16x32xf32> to vector<2x8x32xf32>
    %c0_81 = arith.constant 0 : index
    %c0_82 = arith.constant 0 : index
    %c0_83 = arith.constant 0 : index
    %52 = vector.load %arg8[%c0_81, %c0_82, %c0_83] : memref<2x8x32xf32, #tpu.memory_space<vmem>>, vector<2x8x32xf32>
    tpu.vector_store %arg8[%c0_81, %c0_82, %c0_83], %51 {strides = array<i32>} : memref<2x8x32xf32, #tpu.memory_space<vmem>>, vector<2x8x32xf32>,
    return
  }
  func.func @transform_0(%arg0: i32) -> (i32, i32, i32) {
    %c0_i32 = arith.constant 0 : i32
    %c0_i32_0 = arith.constant 0 : i32
    %c0_i32_1 = arith.constant 0 : i32
    return %arg0, %c0_i32, %c0_i32_0 : i32, i32, i32
  }
  func.func @transform_1(%arg0: i32) -> (i32, i32) {
    %c0_i32 = arith.constant 0 : i32
    %c0_i32_0 = arith.constant 0 : i32
    %c0_i32_1 = arith.constant 0 : i32
    return %c0_i32, %c0_i32_0 : i32, i32
  }
  func.func @transform_2(%arg0: i32) -> (i32, i32) {
    %c0_i32 = arith.constant 0 : i32
    %c0_i32_0 = arith.constant 0 : i32
    %c0_i32_1 = arith.constant 0 : i32
    return %c0_i32, %c0_i32_0 : i32, i32
  }
  func.func @transform_3(%arg0: i32) -> (i32, i32) {
    %c0_i32 = arith.constant 0 : i32
    %c0_i32_0 = arith.constant 0 : i32
    %c0_i32_1 = arith.constant 0 : i32
    return %c0_i32, %c0_i32_0 : i32, i32
  }
  func.func @transform_4(%arg0: i32) -> (i32, i32) {
    %c0_i32 = arith.constant 0 : i32
    %c0_i32_0 = arith.constant 0 : i32
    %c0_i32_1 = arith.constant 0 : i32
    return %c0_i32, %c0_i32_0 : i32, i32
  }
  func.func @transform_5(%arg0: i32) -> (i32, i32) {
    %c0_i32 = arith.constant 0 : i32
    %c0_i32_0 = arith.constant 0 : i32
    %c0_i32_1 = arith.constant 0 : i32
    return %c0_i32, %c0_i32_0 : i32, i32
  }
  func.func @transform_6(%arg0: i32) -> i32 {
    %c0_i32 = arith.constant 0 : i32
    %c0_i32_0 = arith.constant 0 : i32
    return %c0_i32 : i32
  }
  func.func @transform_7(%arg0: i32) -> (i32, i32, i32) {
    %c0_i32 = arith.constant 0 : i32
    %c0_i32_0 = arith.constant 0 : i32
    %c0_i32_1 = arith.constant 0 : i32
    return %arg0, %c0_i32, %c0_i32_0 : i32, i32, i32
  }
}

module attributes {stable_mosaic.version = 11 : i64} {
  func.func @talking_head_attn_kernel(%arg0: i32, %arg1: memref<2x8x32xbf16, #tpu.memory_space<vmem>>, %arg2: memref<32x96xbf16, #tpu.memory_space<vmem>>, %arg3: memref<32x32xbf16, #tpu.memory_space<vmem>>, %arg4: memref<1x32xf32, #tpu.memory_space<vmem>>, %arg5: memref<4x4xf32, #tpu.memory_space<smem>>, %arg6: memref<4x4xf32, #tpu.memory_space<smem>>, %arg7: memref<4xf32, #tpu.memory_space<smem>>, %arg8: memref<2x8x32xf32, #tpu.memory_space<vmem>>, %arg9: memref<2x8x96xbf16, #tpu.memory_space<vmem>>, %arg10: memref<2x8x32xbf16, #tpu.memory_space<vmem>>) attributes {dimension_semantics = [#tpu.dimension_semantics<parallel>], iteration_bounds = array<i64: 2>, scalar_prefetch = 0 : i64, scratch_operands = 2 : i64, tpu.core_type = #tpu.core_type<tc>, window_params = [{transform_indices = @transform_0, window_bounds = array<i64: 2, 8, 32>}, {pipeline_mode = #tpu.pipeline_mode<synchronous>, transform_indices = @transform_1, window_bounds = array<i64: 32, 96>}, {pipeline_mode = #tpu.pipeline_mode<synchronous>, transform_indices = @transform_2, window_bounds = array<i64: 32, 32>}, {pipeline_mode = #tpu.pipeline_mode<synchronous>, transform_indices = @transform_3, window_bounds = array<i64: 1, 32>}, {transform_indices = @transform_4, window_bounds = array<i64: 4, 4>}, {transform_indices = @transform_5, window_bounds = array<i64: 4, 4>}, {transform_indices = @transform_6, window_bounds = array<i64: 4>}, {transform_indices = @transform_7, window_bounds = array<i64: 2, 8, 32>}]} {
    %c0 = arith.constant 0 : index
    %c0_0 = arith.constant 0 : index
    %c0_1 = arith.constant 0 : index
    %0 = vector.load %arg1[%c0, %c0_0, %c0_1] : memref<2x8x32xbf16, #tpu.memory_space<vmem>>, vector<2x8x32xbf16>
    %1 = vector.shape_cast %0 : vector<2x8x32xbf16> to vector<16x32xbf16>
    %c0_2 = arith.constant 0 : index
    %c0_3 = arith.constant 0 : index
    %2 = vector.load %arg2[%c0_2, %c0_3] : memref<32x96xbf16, #tpu.memory_space<vmem>>, vector<32x96xbf16>
    %cst = arith.constant dense<0.000000e+00> : vector<16x96xf32>
    %3 = tpu.matmul %1, %2, %cst {dimension_numbers = #tpu.dot_dimension_numbers<[1], [0], [0], [1], [0, 0, 1, 1], [], []>} : vector<16x32xbf16>, vector<32x96xbf16>, vector<16x96xf32> -> vector<16x96xf32>
    %4 = vector.shape_cast %3 : vector<16x96xf32> to vector<2x8x96xf32>
    %5 = arith.truncf %4 : vector<2x8x96xf32> to vector<2x8x96xbf16>
    %c0_4 = arith.constant 0 : index
    %c0_5 = arith.constant 0 : index
    %c0_6 = arith.constant 0 : index
    %6 = vector.load %arg9[%c0_4, %c0_5, %c0_6] : memref<2x8x96xbf16, #tpu.memory_space<vmem>>, vector<2x8x96xbf16>
    tpu.vector_store %arg9[%c0_4, %c0_5, %c0_6], %5 {strides = array<i32>} : memref<2x8x96xbf16, #tpu.memory_space<vmem>>, vector<2x8x96xbf16>,
    %c0_7 = arith.constant 0 : index
    %c0_8 = arith.constant 0 : index
    %7 = memref.load %arg5[%c0_7, %c0_8] : memref<4x4xf32, #tpu.memory_space<smem>>
    %c0_9 = arith.constant 0 : index
    %c1 = arith.constant 1 : index
    %8 = memref.load %arg5[%c0_9, %c1] : memref<4x4xf32, #tpu.memory_space<smem>>
    %c0_10 = arith.constant 0 : index
    %c2 = arith.constant 2 : index
    %9 = memref.load %arg5[%c0_10, %c2] : memref<4x4xf32, #tpu.memory_space<smem>>
    %c0_11 = arith.constant 0 : index
    %c3 = arith.constant 3 : index
    %10 = memref.load %arg5[%c0_11, %c3] : memref<4x4xf32, #tpu.memory_space<smem>>
    %c1_12 = arith.constant 1 : index
    %c0_13 = arith.constant 0 : index
    %11 = memref.load %arg5[%c1_12, %c0_13] : memref<4x4xf32, #tpu.memory_space<smem>>
    %c1_14 = arith.constant 1 : index
    %c1_15 = arith.constant 1 : index
    %12 = memref.load %arg5[%c1_14, %c1_15] : memref<4x4xf32, #tpu.memory_space<smem>>
    %c1_16 = arith.constant 1 : index
    %c2_17 = arith.constant 2 : index
    %13 = memref.load %arg5[%c1_16, %c2_17] : memref<4x4xf32, #tpu.memory_space<smem>>
    %c1_18 = arith.constant 1 : index
    %c3_19 = arith.constant 3 : index
    %14 = memref.load %arg5[%c1_18, %c3_19] : memref<4x4xf32, #tpu.memory_space<smem>>
    %c2_20 = arith.constant 2 : index
    %c0_21 = arith.constant 0 : index
    %15 = memref.load %arg5[%c2_20, %c0_21] : memref<4x4xf32, #tpu.memory_space<smem>>
    %c2_22 = arith.constant 2 : index
    %c1_23 = arith.constant 1 : index
    %16 = memref.load %arg5[%c2_22, %c1_23] : memref<4x4xf32, #tpu.memory_space<smem>>
    %c2_24 = arith.constant 2 : index
    %c2_25 = arith.constant 2 : index
    %17 = memref.load %arg5[%c2_24, %c2_25] : memref<4x4xf32, #tpu.memory_space<smem>>
    %c2_26 = arith.constant 2 : index
    %c3_27 = arith.constant 3 : index
    %18 = memref.load %arg5[%c2_26, %c3_27] : memref<4x4xf32, #tpu.memory_space<smem>>
    %c3_28 = arith.constant 3 : index
    %c0_29 = arith.constant 0 : index
    %19 = memref.load %arg5[%c3_28, %c0_29] : memref<4x4xf32, #tpu.memory_space<smem>>
    %c3_30 = arith.constant 3 : index
    %c1_31 = arith.constant 1 : index
    %20 = memref.load %arg5[%c3_30, %c1_31] : memref<4x4xf32, #tpu.memory_space<smem>>
    %c3_32 = arith.constant 3 : index
    %c2_33 = arith.constant 2 : index
    %21 = memref.load %arg5[%c3_32, %c2_33] : memref<4x4xf32, #tpu.memory_space<smem>>
    %c3_34 = arith.constant 3 : index
    %c3_35 = arith.constant 3 : index
    %22 = memref.load %arg5[%c3_34, %c3_35] : memref<4x4xf32, #tpu.memory_space<smem>>
    %c0_36 = arith.constant 0 : index
    %c0_37 = arith.constant 0 : index
    %23 = memref.load %arg6[%c0_36, %c0_37] : memref<4x4xf32, #tpu.memory_space<smem>>
    %c0_38 = arith.constant 0 : index
    %c1_39 = arith.constant 1 : index
    %24 = memref.load %arg6[%c0_38, %c1_39] : memref<4x4xf32, #tpu.memory_space<smem>>
    %c0_40 = arith.constant 0 : index
    %c2_41 = arith.constant 2 : index
    %25 = memref.load %arg6[%c0_40, %c2_41] : memref<4x4xf32, #tpu.memory_space<smem>>
    %c0_42 = arith.constant 0 : index
    %c3_43 = arith.constant 3 : index
    %26 = memref.load %arg6[%c0_42, %c3_43] : memref<4x4xf32, #tpu.memory_space<smem>>
    %c1_44 = arith.constant 1 : index
    %c0_45 = arith.constant 0 : index
    %27 = memref.load %arg6[%c1_44, %c0_45] : memref<4x4xf32, #tpu.memory_space<smem>>
    %c1_46 = arith.constant 1 : index
    %c1_47 = arith.constant 1 : index
    %28 = memref.load %arg6[%c1_46, %c1_47] : memref<4x4xf32, #tpu.memory_space<smem>>
    %c1_48 = arith.constant 1 : index
    %c2_49 = arith.constant 2 : index
    %29 = memref.load %arg6[%c1_48, %c2_49] : memref<4x4xf32, #tpu.memory_space<smem>>
    %c1_50 = arith.constant 1 : index
    %c3_51 = arith.constant 3 : index
    %30 = memref.load %arg6[%c1_50, %c3_51] : memref<4x4xf32, #tpu.memory_space<smem>>
    %c2_52 = arith.constant 2 : index
    %c0_53 = arith.constant 0 : index
    %31 = memref.load %arg6[%c2_52, %c0_53] : memref<4x4xf32, #tpu.memory_space<smem>>
    %c2_54 = arith.constant 2 : index
    %c1_55 = arith.constant 1 : index
    %32 = memref.load %arg6[%c2_54, %c1_55] : memref<4x4xf32, #tpu.memory_space<smem>>
    %c2_56 = arith.constant 2 : index
    %c2_57 = arith.constant 2 : index
    %33 = memref.load %arg6[%c2_56, %c2_57] : memref<4x4xf32, #tpu.memory_space<smem>>
    %c2_58 = arith.constant 2 : index
    %c3_59 = arith.constant 3 : index
    %34 = memref.load %arg6[%c2_58, %c3_59] : memref<4x4xf32, #tpu.memory_space<smem>>
    %c3_60 = arith.constant 3 : index
    %c0_61 = arith.constant 0 : index
    %35 = memref.load %arg6[%c3_60, %c0_61] : memref<4x4xf32, #tpu.memory_space<smem>>
    %c3_62 = arith.constant 3 : index
    %c1_63 = arith.constant 1 : index
    %36 = memref.load %arg6[%c3_62, %c1_63] : memref<4x4xf32, #tpu.memory_space<smem>>
    %c3_64 = arith.constant 3 : index
    %c2_65 = arith.constant 2 : index
    %37 = memref.load %arg6[%c3_64, %c2_65] : memref<4x4xf32, #tpu.memory_space<smem>>
    %c3_66 = arith.constant 3 : index
    %c3_67 = arith.constant 3 : index
    %38 = memref.load %arg6[%c3_66, %c3_67] : memref<4x4xf32, #tpu.memory_space<smem>>
    %c0_68 = arith.constant 0 : index
    %39 = memref.load %arg7[%c0_68] : memref<4xf32, #tpu.memory_space<smem>>
    %c1_69 = arith.constant 1 : index
    %40 = memref.load %arg7[%c1_69] : memref<4xf32, #tpu.memory_space<smem>>
    %c2_70 = arith.constant 2 : index
    %41 = memref.load %arg7[%c2_70] : memref<4xf32, #tpu.memory_space<smem>>
    %c3_71 = arith.constant 3 : index
    %42 = memref.load %arg7[%c3_71] : memref<4xf32, #tpu.memory_space<smem>>
    %c0_i32 = arith.constant 0 : i32
    %c2_i32 = arith.constant 2 : i32
    %43 = arith.addi %c0_i32, %c2_i32 : i32
    %c1_i32 = arith.constant 1 : i32
    scf.for %arg11 = %c0_i32 to %43 step %c1_i32  : i32 {
      %53 = arith.index_cast %arg11 : i32 to index
      %c0_84 = arith.constant 0 : index
      %c0_85 = arith.constant 0 : index
      %54 = vector.load %arg9[%53, %c0_84, %c0_85] : memref<2x8x96xbf16, #tpu.memory_space<vmem>>, vector<1x8x96xbf16>
      %55 = vector.shape_cast %54 : vector<1x8x96xbf16> to vector<8x96xbf16>
      %56 = vector.extract_strided_slice %55 {offsets = [0, 0], sizes = [8, 32], strides = [1, 1]} : vector<8x96xbf16> to vector<8x32xbf16>
      %57 = vector.extract_strided_slice %55 {offsets = [0, 32], sizes = [8, 32], strides = [1, 1]} : vector<8x96xbf16> to vector<8x32xbf16>
      %58 = vector.extract_strided_slice %55 {offsets = [0, 64], sizes = [8, 32], strides = [1, 1]} : vector<8x96xbf16> to vector<8x32xbf16>
      %59 = vector.extract_strided_slice %56 {offsets = [0, 0], sizes = [8, 8], strides = [1, 1]} : vector<8x32xbf16> to vector<8x8xbf16>
      %60 = vector.extract_strided_slice %57 {offsets = [0, 0], sizes = [8, 8], strides = [1, 1]} : vector<8x32xbf16> to vector<8x8xbf16>
      %cst_86 = arith.constant dense<0.000000e+00> : vector<8x8xf32>
      %61 = tpu.matmul %59, %60, %cst_86 {dimension_numbers = #tpu.dot_dimension_numbers<[1], [1], [0], [0], [0, 0, 1, 0], [], []>} : vector<8x8xbf16>, vector<8x8xbf16>, vector<8x8xf32> -> vector<8x8xf32>
      %62 = vector.extract_strided_slice %56 {offsets = [0, 8], sizes = [8, 8], strides = [1, 1]} : vector<8x32xbf16> to vector<8x8xbf16>
      %63 = vector.extract_strided_slice %57 {offsets = [0, 8], sizes = [8, 8], strides = [1, 1]} : vector<8x32xbf16> to vector<8x8xbf16>
      %cst_87 = arith.constant dense<0.000000e+00> : vector<8x8xf32>
      %64 = tpu.matmul %62, %63, %cst_87 {dimension_numbers = #tpu.dot_dimension_numbers<[1], [1], [0], [0], [0, 0, 1, 0], [], []>} : vector<8x8xbf16>, vector<8x8xbf16>, vector<8x8xf32> -> vector<8x8xf32>
      %65 = vector.extract_strided_slice %56 {offsets = [0, 16], sizes = [8, 8], strides = [1, 1]} : vector<8x32xbf16> to vector<8x8xbf16>
      %66 = vector.extract_strided_slice %57 {offsets = [0, 16], sizes = [8, 8], strides = [1, 1]} : vector<8x32xbf16> to vector<8x8xbf16>
      %cst_88 = arith.constant dense<0.000000e+00> : vector<8x8xf32>
      %67 = tpu.matmul %65, %66, %cst_88 {dimension_numbers = #tpu.dot_dimension_numbers<[1], [1], [0], [0], [0, 0, 1, 0], [], []>} : vector<8x8xbf16>, vector<8x8xbf16>, vector<8x8xf32> -> vector<8x8xf32>
      %68 = vector.extract_strided_slice %56 {offsets = [0, 24], sizes = [8, 8], strides = [1, 1]} : vector<8x32xbf16> to vector<8x8xbf16>
      %69 = vector.extract_strided_slice %57 {offsets = [0, 24], sizes = [8, 8], strides = [1, 1]} : vector<8x32xbf16> to vector<8x8xbf16>
      %cst_89 = arith.constant dense<0.000000e+00> : vector<8x8xf32>
      %70 = tpu.matmul %68, %69, %cst_89 {dimension_numbers = #tpu.dot_dimension_numbers<[1], [1], [0], [0], [0, 0, 1, 0], [], []>} : vector<8x8xbf16>, vector<8x8xbf16>, vector<8x8xf32> -> vector<8x8xf32>
      %71 = vector.broadcast %7 : f32 to vector<8x8xf32>
      %72 = arith.mulf %71, %61 : vector<8x8xf32>
      %73 = vector.broadcast %8 : f32 to vector<8x8xf32>
      %74 = arith.mulf %73, %64 : vector<8x8xf32>
      %75 = arith.addf %72, %74 : vector<8x8xf32>
      %76 = vector.broadcast %9 : f32 to vector<8x8xf32>
      %77 = arith.mulf %76, %67 : vector<8x8xf32>
      %78 = arith.addf %75, %77 : vector<8x8xf32>
      %79 = vector.broadcast %10 : f32 to vector<8x8xf32>
      %80 = arith.mulf %79, %70 : vector<8x8xf32>
      %81 = arith.addf %78, %80 : vector<8x8xf32>
      %82 = vector.broadcast %11 : f32 to vector<8x8xf32>
      %83 = arith.mulf %82, %61 : vector<8x8xf32>
      %84 = vector.broadcast %12 : f32 to vector<8x8xf32>
      %85 = arith.mulf %84, %64 : vector<8x8xf32>
      %86 = arith.addf %83, %85 : vector<8x8xf32>
      %87 = vector.broadcast %13 : f32 to vector<8x8xf32>
      %88 = arith.mulf %87, %67 : vector<8x8xf32>
      %89 = arith.addf %86, %88 : vector<8x8xf32>
      %90 = vector.broadcast %14 : f32 to vector<8x8xf32>
      %91 = arith.mulf %90, %70 : vector<8x8xf32>
      %92 = arith.addf %89, %91 : vector<8x8xf32>
      %93 = vector.broadcast %15 : f32 to vector<8x8xf32>
      %94 = arith.mulf %93, %61 : vector<8x8xf32>
      %95 = vector.broadcast %16 : f32 to vector<8x8xf32>
      %96 = arith.mulf %95, %64 : vector<8x8xf32>
      %97 = arith.addf %94, %96 : vector<8x8xf32>
      %98 = vector.broadcast %17 : f32 to vector<8x8xf32>
      %99 = arith.mulf %98, %67 : vector<8x8xf32>
      %100 = arith.addf %97, %99 : vector<8x8xf32>
      %101 = vector.broadcast %18 : f32 to vector<8x8xf32>
      %102 = arith.mulf %101, %70 : vector<8x8xf32>
      %103 = arith.addf %100, %102 : vector<8x8xf32>
      %104 = vector.broadcast %19 : f32 to vector<8x8xf32>
      %105 = arith.mulf %104, %61 : vector<8x8xf32>
      %106 = vector.broadcast %20 : f32 to vector<8x8xf32>
      %107 = arith.mulf %106, %64 : vector<8x8xf32>
      %108 = arith.addf %105, %107 : vector<8x8xf32>
      %109 = vector.broadcast %21 : f32 to vector<8x8xf32>
      %110 = arith.mulf %109, %67 : vector<8x8xf32>
      %111 = arith.addf %108, %110 : vector<8x8xf32>
      %112 = vector.broadcast %22 : f32 to vector<8x8xf32>
      %113 = arith.mulf %112, %70 : vector<8x8xf32>
      %114 = arith.addf %111, %113 : vector<8x8xf32>
      %cst_90 = arith.constant dense<0xFF800000> : vector<8xf32>
      %115 = vector.multi_reduction <maximumf>, %81, %cst_90 [1] : vector<8x8xf32> to vector<8xf32>
      %116 = vector.shape_cast %115 : vector<8xf32> to vector<8x1xf32>
      %117 = vector.broadcast %116 : vector<8x1xf32> to vector<8x8xf32>
      %118 = arith.subf %81, %117 : vector<8x8xf32>
      %119 = math.exp %118 : vector<8x8xf32>
      %cst_91 = arith.constant dense<0.000000e+00> : vector<8xf32>
      %120 = vector.multi_reduction <add>, %119, %cst_91 [1] : vector<8x8xf32> to vector<8xf32>
      %121 = vector.shape_cast %120 : vector<8xf32> to vector<8x1xf32>
      %122 = tpu.reciprocal %121 {approx = true} : vector<8x1xf32> -> vector<8x1xf32>
      %123 = vector.broadcast %122 : vector<8x1xf32> to vector<8x8xf32>
      %124 = arith.mulf %119, %123 : vector<8x8xf32>
      %cst_92 = arith.constant dense<0xFF800000> : vector<8xf32>
      %125 = vector.multi_reduction <maximumf>, %92, %cst_92 [1] : vector<8x8xf32> to vector<8xf32>
      %126 = vector.shape_cast %125 : vector<8xf32> to vector<8x1xf32>
      %127 = vector.broadcast %126 : vector<8x1xf32> to vector<8x8xf32>
      %128 = arith.subf %92, %127 : vector<8x8xf32>
      %129 = math.exp %128 : vector<8x8xf32>
      %cst_93 = arith.constant dense<0.000000e+00> : vector<8xf32>
      %130 = vector.multi_reduction <add>, %129, %cst_93 [1] : vector<8x8xf32> to vector<8xf32>
      %131 = vector.shape_cast %130 : vector<8xf32> to vector<8x1xf32>
      %132 = tpu.reciprocal %131 {approx = true} : vector<8x1xf32> -> vector<8x1xf32>
      %133 = vector.broadcast %132 : vector<8x1xf32> to vector<8x8xf32>
      %134 = arith.mulf %129, %133 : vector<8x8xf32>
      %cst_94 = arith.constant dense<0xFF800000> : vector<8xf32>
      %135 = vector.multi_reduction <maximumf>, %103, %cst_94 [1] : vector<8x8xf32> to vector<8xf32>
      %136 = vector.shape_cast %135 : vector<8xf32> to vector<8x1xf32>
      %137 = vector.broadcast %136 : vector<8x1xf32> to vector<8x8xf32>
      %138 = arith.subf %103, %137 : vector<8x8xf32>
      %139 = math.exp %138 : vector<8x8xf32>
      %cst_95 = arith.constant dense<0.000000e+00> : vector<8xf32>
      %140 = vector.multi_reduction <add>, %139, %cst_95 [1] : vector<8x8xf32> to vector<8xf32>
      %141 = vector.shape_cast %140 : vector<8xf32> to vector<8x1xf32>
      %142 = tpu.reciprocal %141 {approx = true} : vector<8x1xf32> -> vector<8x1xf32>
      %143 = vector.broadcast %142 : vector<8x1xf32> to vector<8x8xf32>
      %144 = arith.mulf %139, %143 : vector<8x8xf32>
      %cst_96 = arith.constant dense<0xFF800000> : vector<8xf32>
      %145 = vector.multi_reduction <maximumf>, %114, %cst_96 [1] : vector<8x8xf32> to vector<8xf32>
      %146 = vector.shape_cast %145 : vector<8xf32> to vector<8x1xf32>
      %147 = vector.broadcast %146 : vector<8x1xf32> to vector<8x8xf32>
      %148 = arith.subf %114, %147 : vector<8x8xf32>
      %149 = math.exp %148 : vector<8x8xf32>
      %cst_97 = arith.constant dense<0.000000e+00> : vector<8xf32>
      %150 = vector.multi_reduction <add>, %149, %cst_97 [1] : vector<8x8xf32> to vector<8xf32>
      %151 = vector.shape_cast %150 : vector<8xf32> to vector<8x1xf32>
      %152 = tpu.reciprocal %151 {approx = true} : vector<8x1xf32> -> vector<8x1xf32>
      %153 = vector.broadcast %152 : vector<8x1xf32> to vector<8x8xf32>
      %154 = arith.mulf %149, %153 : vector<8x8xf32>
      %155 = vector.broadcast %23 : f32 to vector<8x8xf32>
      %156 = arith.mulf %155, %124 : vector<8x8xf32>
      %157 = vector.broadcast %24 : f32 to vector<8x8xf32>
      %158 = arith.mulf %157, %134 : vector<8x8xf32>
      %159 = arith.addf %156, %158 : vector<8x8xf32>
      %160 = vector.broadcast %25 : f32 to vector<8x8xf32>
      %161 = arith.mulf %160, %144 : vector<8x8xf32>
      %162 = arith.addf %159, %161 : vector<8x8xf32>
      %163 = vector.broadcast %26 : f32 to vector<8x8xf32>
      %164 = arith.mulf %163, %154 : vector<8x8xf32>
      %165 = arith.addf %162, %164 : vector<8x8xf32>
      %166 = vector.extract_strided_slice %58 {offsets = [0, 0], sizes = [8, 8], strides = [1, 1]} : vector<8x32xbf16> to vector<8x8xbf16>
      %167 = arith.truncf %165 : vector<8x8xf32> to vector<8x8xbf16>
      %cst_98 = arith.constant dense<0.000000e+00> : vector<8x8xf32>
      %168 = tpu.matmul %167, %166, %cst_98 {dimension_numbers = #tpu.dot_dimension_numbers<[1], [0], [0], [1], [0, 0, 1, 1], [], []>} : vector<8x8xbf16>, vector<8x8xbf16>, vector<8x8xf32> -> vector<8x8xf32>
      %169 = arith.extf %166 : vector<8x8xbf16> to vector<8x8xf32>
      %cst_99 = arith.constant dense<0.000000e+00> : vector<8xf32>
      %170 = vector.multi_reduction <add>, %169, %cst_99 [0] : vector<8x8xf32> to vector<8xf32>
      %171 = vector.shape_cast %170 : vector<8xf32> to vector<1x8xf32>
      %172 = vector.broadcast %39 : f32 to vector<1x8xf32>
      %173 = arith.mulf %172, %171 : vector<1x8xf32>
      %174 = vector.broadcast %173 : vector<1x8xf32> to vector<8x8xf32>
      %175 = arith.addf %168, %174 : vector<8x8xf32>
      %176 = arith.truncf %175 : vector<8x8xf32> to vector<8x8xbf16>
      %177 = arith.index_cast %arg11 : i32 to index
      %c0_100 = arith.constant 0 : index
      %c0_101 = arith.constant 0 : index
      %178 = vector.load %arg10[%177, %c0_100, %c0_101] : memref<2x8x32xbf16, #tpu.memory_space<vmem>>, vector<1x8x8xbf16>
      %179 = vector.shape_cast %178 : vector<1x8x8xbf16> to vector<8x8xbf16>
      %180 = vector.shape_cast %176 : vector<8x8xbf16> to vector<1x8x8xbf16>
      tpu.vector_store %arg10[%177, %c0_100, %c0_101], %180 {strides = array<i32>} : memref<2x8x32xbf16, #tpu.memory_space<vmem>>, vector<1x8x8xbf16>,
      %181 = vector.broadcast %27 : f32 to vector<8x8xf32>
      %182 = arith.mulf %181, %124 : vector<8x8xf32>
      %183 = vector.broadcast %28 : f32 to vector<8x8xf32>
      %184 = arith.mulf %183, %134 : vector<8x8xf32>
      %185 = arith.addf %182, %184 : vector<8x8xf32>
      %186 = vector.broadcast %29 : f32 to vector<8x8xf32>
      %187 = arith.mulf %186, %144 : vector<8x8xf32>
      %188 = arith.addf %185, %187 : vector<8x8xf32>
      %189 = vector.broadcast %30 : f32 to vector<8x8xf32>
      %190 = arith.mulf %189, %154 : vector<8x8xf32>
      %191 = arith.addf %188, %190 : vector<8x8xf32>
      %192 = vector.extract_strided_slice %58 {offsets = [0, 8], sizes = [8, 8], strides = [1, 1]} : vector<8x32xbf16> to vector<8x8xbf16>
      %193 = arith.truncf %191 : vector<8x8xf32> to vector<8x8xbf16>
      %cst_102 = arith.constant dense<0.000000e+00> : vector<8x8xf32>
      %194 = tpu.matmul %193, %192, %cst_102 {dimension_numbers = #tpu.dot_dimension_numbers<[1], [0], [0], [1], [0, 0, 1, 1], [], []>} : vector<8x8xbf16>, vector<8x8xbf16>, vector<8x8xf32> -> vector<8x8xf32>
      %195 = arith.extf %192 : vector<8x8xbf16> to vector<8x8xf32>
      %cst_103 = arith.constant dense<0.000000e+00> : vector<8xf32>
      %196 = vector.multi_reduction <add>, %195, %cst_103 [0] : vector<8x8xf32> to vector<8xf32>
      %197 = vector.shape_cast %196 : vector<8xf32> to vector<1x8xf32>
      %198 = vector.broadcast %40 : f32 to vector<1x8xf32>
      %199 = arith.mulf %198, %197 : vector<1x8xf32>
      %200 = vector.broadcast %199 : vector<1x8xf32> to vector<8x8xf32>
      %201 = arith.addf %194, %200 : vector<8x8xf32>
      %202 = arith.truncf %201 : vector<8x8xf32> to vector<8x8xbf16>
      %203 = arith.index_cast %arg11 : i32 to index
      %c0_104 = arith.constant 0 : index
      %c8 = arith.constant 8 : index
      %204 = vector.load %arg10[%203, %c0_104, %c8] : memref<2x8x32xbf16, #tpu.memory_space<vmem>>, vector<1x8x8xbf16>
      %205 = vector.shape_cast %204 : vector<1x8x8xbf16> to vector<8x8xbf16>
      %206 = vector.shape_cast %202 : vector<8x8xbf16> to vector<1x8x8xbf16>
      tpu.vector_store %arg10[%203, %c0_104, %c8], %206 {strides = array<i32>} : memref<2x8x32xbf16, #tpu.memory_space<vmem>>, vector<1x8x8xbf16>,
      %207 = vector.broadcast %31 : f32 to vector<8x8xf32>
      %208 = arith.mulf %207, %124 : vector<8x8xf32>
      %209 = vector.broadcast %32 : f32 to vector<8x8xf32>
      %210 = arith.mulf %209, %134 : vector<8x8xf32>
      %211 = arith.addf %208, %210 : vector<8x8xf32>
      %212 = vector.broadcast %33 : f32 to vector<8x8xf32>
      %213 = arith.mulf %212, %144 : vector<8x8xf32>
      %214 = arith.addf %211, %213 : vector<8x8xf32>
      %215 = vector.broadcast %34 : f32 to vector<8x8xf32>
      %216 = arith.mulf %215, %154 : vector<8x8xf32>
      %217 = arith.addf %214, %216 : vector<8x8xf32>
      %218 = vector.extract_strided_slice %58 {offsets = [0, 16], sizes = [8, 8], strides = [1, 1]} : vector<8x32xbf16> to vector<8x8xbf16>
      %219 = arith.truncf %217 : vector<8x8xf32> to vector<8x8xbf16>
      %cst_105 = arith.constant dense<0.000000e+00> : vector<8x8xf32>
      %220 = tpu.matmul %219, %218, %cst_105 {dimension_numbers = #tpu.dot_dimension_numbers<[1], [0], [0], [1], [0, 0, 1, 1], [], []>} : vector<8x8xbf16>, vector<8x8xbf16>, vector<8x8xf32> -> vector<8x8xf32>
      %221 = arith.extf %218 : vector<8x8xbf16> to vector<8x8xf32>
      %cst_106 = arith.constant dense<0.000000e+00> : vector<8xf32>
      %222 = vector.multi_reduction <add>, %221, %cst_106 [0] : vector<8x8xf32> to vector<8xf32>
      %223 = vector.shape_cast %222 : vector<8xf32> to vector<1x8xf32>
      %224 = vector.broadcast %41 : f32 to vector<1x8xf32>
      %225 = arith.mulf %224, %223 : vector<1x8xf32>
      %226 = vector.broadcast %225 : vector<1x8xf32> to vector<8x8xf32>
      %227 = arith.addf %220, %226 : vector<8x8xf32>
      %228 = arith.truncf %227 : vector<8x8xf32> to vector<8x8xbf16>
      %229 = arith.index_cast %arg11 : i32 to index
      %c0_107 = arith.constant 0 : index
      %c16 = arith.constant 16 : index
      %230 = vector.load %arg10[%229, %c0_107, %c16] : memref<2x8x32xbf16, #tpu.memory_space<vmem>>, vector<1x8x8xbf16>
      %231 = vector.shape_cast %230 : vector<1x8x8xbf16> to vector<8x8xbf16>
      %232 = vector.shape_cast %228 : vector<8x8xbf16> to vector<1x8x8xbf16>
      tpu.vector_store %arg10[%229, %c0_107, %c16], %232 {strides = array<i32>} : memref<2x8x32xbf16, #tpu.memory_space<vmem>>, vector<1x8x8xbf16>,
      %233 = vector.broadcast %35 : f32 to vector<8x8xf32>
      %234 = arith.mulf %233, %124 : vector<8x8xf32>
      %235 = vector.broadcast %36 : f32 to vector<8x8xf32>
      %236 = arith.mulf %235, %134 : vector<8x8xf32>
      %237 = arith.addf %234, %236 : vector<8x8xf32>
      %238 = vector.broadcast %37 : f32 to vector<8x8xf32>
      %239 = arith.mulf %238, %144 : vector<8x8xf32>
      %240 = arith.addf %237, %239 : vector<8x8xf32>
      %241 = vector.broadcast %38 : f32 to vector<8x8xf32>
      %242 = arith.mulf %241, %154 : vector<8x8xf32>
      %243 = arith.addf %240, %242 : vector<8x8xf32>
      %244 = vector.extract_strided_slice %58 {offsets = [0, 24], sizes = [8, 8], strides = [1, 1]} : vector<8x32xbf16> to vector<8x8xbf16>
      %245 = arith.truncf %243 : vector<8x8xf32> to vector<8x8xbf16>
      %cst_108 = arith.constant dense<0.000000e+00> : vector<8x8xf32>
      %246 = tpu.matmul %245, %244, %cst_108 {dimension_numbers = #tpu.dot_dimension_numbers<[1], [0], [0], [1], [0, 0, 1, 1], [], []>} : vector<8x8xbf16>, vector<8x8xbf16>, vector<8x8xf32> -> vector<8x8xf32>
      %247 = arith.extf %244 : vector<8x8xbf16> to vector<8x8xf32>
      %cst_109 = arith.constant dense<0.000000e+00> : vector<8xf32>
      %248 = vector.multi_reduction <add>, %247, %cst_109 [0] : vector<8x8xf32> to vector<8xf32>
      %249 = vector.shape_cast %248 : vector<8xf32> to vector<1x8xf32>
      %250 = vector.broadcast %42 : f32 to vector<1x8xf32>
      %251 = arith.mulf %250, %249 : vector<1x8xf32>
      %252 = vector.broadcast %251 : vector<1x8xf32> to vector<8x8xf32>
      %253 = arith.addf %246, %252 : vector<8x8xf32>
      %254 = arith.truncf %253 : vector<8x8xf32> to vector<8x8xbf16>
      %255 = arith.index_cast %arg11 : i32 to index
      %c0_110 = arith.constant 0 : index
      %c24 = arith.constant 24 : index
      %256 = vector.load %arg10[%255, %c0_110, %c24] : memref<2x8x32xbf16, #tpu.memory_space<vmem>>, vector<1x8x8xbf16>
      %257 = vector.shape_cast %256 : vector<1x8x8xbf16> to vector<8x8xbf16>
      %258 = vector.shape_cast %254 : vector<8x8xbf16> to vector<1x8x8xbf16>
      tpu.vector_store %arg10[%255, %c0_110, %c24], %258 {strides = array<i32>} : memref<2x8x32xbf16, #tpu.memory_space<vmem>>, vector<1x8x8xbf16>,
    }
    %c2_i32_72 = arith.constant 2 : i32
    %c0_73 = arith.constant 0 : index
    %c0_74 = arith.constant 0 : index
    %c0_75 = arith.constant 0 : index
    %44 = vector.load %arg10[%c0_73, %c0_74, %c0_75] : memref<2x8x32xbf16, #tpu.memory_space<vmem>>, vector<2x8x32xbf16>
    %45 = vector.shape_cast %44 : vector<2x8x32xbf16> to vector<16x32xbf16>
    %c0_76 = arith.constant 0 : index
    %c0_77 = arith.constant 0 : index
    %46 = vector.load %arg3[%c0_76, %c0_77] : memref<32x32xbf16, #tpu.memory_space<vmem>>, vector<32x32xbf16>
    %cst_78 = arith.constant dense<0.000000e+00> : vector<16x32xf32>
    %47 = tpu.matmul %45, %46, %cst_78 {dimension_numbers = #tpu.dot_dimension_numbers<[1], [0], [0], [1], [0, 0, 1, 1], [], []>} : vector<16x32xbf16>, vector<32x32xbf16>, vector<16x32xf32> -> vector<16x32xf32>
    %c0_79 = arith.constant 0 : index
    %c0_80 = arith.constant 0 : index
    %48 = vector.load %arg4[%c0_79, %c0_80] : memref<1x32xf32, #tpu.memory_space<vmem>>, vector<1x32xf32>
    %49 = vector.broadcast %48 : vector<1x32xf32> to vector<16x32xf32>
    %50 = arith.addf %47, %49 : vector<16x32xf32>
    %51 = vector.shape_cast %50 : vector<16x32xf32> to vector<2x8x32xf32>
    %c0_81 = arith.constant 0 : index
    %c0_82 = arith.constant 0 : index
    %c0_83 = arith.constant 0 : index
    %52 = vector.load %arg8[%c0_81, %c0_82, %c0_83] : memref<2x8x32xf32, #tpu.memory_space<vmem>>, vector<2x8x32xf32>
    tpu.vector_store %arg8[%c0_81, %c0_82, %c0_83], %51 {strides = array<i32>} : memref<2x8x32xf32, #tpu.memory_space<vmem>>, vector<2x8x32xf32>,
    return
  }
  func.func @transform_0(%arg0: i32) -> (i32, i32, i32) {
    %c0_i32 = arith.constant 0 : i32
    %c0_i32_0 = arith.constant 0 : i32
    %c0_i32_1 = arith.constant 0 : i32
    return %arg0, %c0_i32, %c0_i32_0 : i32, i32, i32
  }
  func.func @transform_1(%arg0: i32) -> (i32, i32) {
    %c0_i32 = arith.constant 0 : i32
    %c0_i32_0 = arith.constant 0 : i32
    %c0_i32_1 = arith.constant 0 : i32
    return %c0_i32, %c0_i32_0 : i32, i32
  }
  func.func @transform_2(%arg0: i32) -> (i32, i32) {
    %c0_i32 = arith.constant 0 : i32
    %c0_i32_0 = arith.constant 0 : i32
    %c0_i32_1 = arith.constant 0 : i32
    return %c0_i32, %c0_i32_0 : i32, i32
  }
  func.func @transform_3(%arg0: i32) -> (i32, i32) {
    %c0_i32 = arith.constant 0 : i32
    %c0_i32_0 = arith.constant 0 : i32
    %c0_i32_1 = arith.constant 0 : i32
    return %c0_i32, %c0_i32_0 : i32, i32
  }
  func.func @transform_4(%arg0: i32) -> (i32, i32) {
    %c0_i32 = arith.constant 0 : i32
    %c0_i32_0 = arith.constant 0 : i32
    %c0_i32_1 = arith.constant 0 : i32
    return %c0_i32, %c0_i32_0 : i32, i32
  }
  func.func @transform_5(%arg0: i32) -> (i32, i32) {
    %c0_i32 = arith.constant 0 : i32
    %c0_i32_0 = arith.constant 0 : i32
    %c0_i32_1 = arith.constant 0 : i32
    return %c0_i32, %c0_i32_0 : i32, i32
  }
  func.func @transform_6(%arg0: i32) -> i32 {
    %c0_i32 = arith.constant 0 : i32
    %c0_i32_0 = arith.constant 0 : i32
    return %c0_i32 : i32
  }
  func.func @transform_7(%arg0: i32) -> (i32, i32, i32) {
    %c0_i32 = arith.constant 0 : i32
    %c0_i32_0 = arith.constant 0 : i32
    %c0_i32_1 = arith.constant 0 : i32
    return %arg0, %c0_i32, %c0_i32_0 : i32, i32, i32
  }
}

</mosaic_0001>

<llo_original>
// kernel: tpu_custom_call.1
$region0: #{tpu_custom_call.1}
  #allocation0 [shape = 'u32[]', space=smem, size = 0x4, offset = 0x4, fixed_abs, tag = 'smem constant byte address 0x4 - core index']
  #allocation1 [shape = 'u32[144,128]{1,0:T(1,128)}', space=vmem, size = 0x12000, scoped, tag = 'internal scratch']
  #allocation2 [shape = 'bf16[2,8,96]{2,1,0:T(8,128)(2,1)}', space=vmem, size = 0x1000, scoped, tag = 'scratch operand']
  #allocation3 [shape = 'bf16[2,8,32]{2,1,0:T(8,128)(2,1)}', space=vmem, size = 0x1000, scoped, tag = 'scratch operand']
  %s0 = inlined_call_operand.hbm [shape: bf16[4,8,32], index: 0, kind: input, shape index: {}]
  %s1 = inlined_call_operand.hbm [shape: bf16[32,96], index: 1, kind: input, shape index: {}]
  %s2 = inlined_call_operand.hbm [shape: bf16[32,32], index: 2, kind: input, shape index: {}]
  %s3 = inlined_call_operand.vmem [shape: f32[1,32], index: 3, kind: input, shape index: {}]
  %s4 = inlined_call_operand.vmem [shape: f32[4,4], index: 4, kind: input, shape index: {}]
  %s5 = inlined_call_operand.vmem [shape: f32[4,4], index: 5, kind: input, shape index: {}]
  %s6 = inlined_call_operand.vmem [shape: f32[4], index: 6, kind: input, shape index: {}]
  %s7 = inlined_call_operand.hbm [shape: f32[4,8,32], index: 7, kind: output, shape index: {}]
  %s8 = sld [smem:[#allocation0]]
  $region92: #{tpu_custom_call.1} parent=0
    _
  %s10 = ssub.s32 1, %s8
  %s11 = scalar_select 0, %s10, %s8
  $region1: #{tpu_custom_call.1} parent=0
    #allocation4 [shape = 'u8[8192]{0}', space=vmem, size = 0x2000, scoped, tag = 'input window, operand 0']
    #allocation5 [shape = 's32[2]{0}', space=sflag, size = 0x8, scoped, tag = 'scoped memory for tpu_custom_call.1']
    #allocation6 [shape = 's32[2]{0}', space=sflag, size = 0x8, scoped, tag = 'scoped memory for tpu_custom_call.1']
    #allocation7 [shape = 's32[2]{0}', space=sflag, size = 0x8, scoped, tag = 'scoped memory for tpu_custom_call.1']
    #allocation8 [shape = 'u8[8192]{0}', space=vmem, size = 0x2000, scoped, tag = 'input window, operand 1, single buffered']
    #allocation9 [shape = 's32[1]{0}', space=sflag, size = 0x4, scoped, tag = 'scoped memory for tpu_custom_call.1']
    #allocation10 [shape = 'u8[8192]{0}', space=vmem, size = 0x2000, scoped, tag = 'input window, operand 2, single buffered']
    #allocation11 [shape = 'u8[2048]{0}', space=smem, size = 0x800, scoped, tag = 'input window, operand 4, single buffered']
    #allocation12 [shape = 'u8[2048]{0}', space=smem, size = 0x800, scoped, tag = 'input window, operand 5, single buffered']
    #allocation13 [shape = 's32[1]{0}', space=sflag, size = 0x4, scoped, tag = 'scoped memory for tpu_custom_call.1']
    #allocation14 [shape = 'u8[512]{0}', space=smem, size = 0x200, scoped, tag = 'input window, operand 6, single buffered']
    #allocation15 [shape = 'u8[16384]{0}', space=vmem, size = 0x4000, scoped, tag = 'output window, operand 0']
    %12 = vsyncpa [#allocation5], 0
    %s13 = scalar_lea.sflag [#allocation5], 1
    %14 = vsyncpa %s13, 0
    %15 = vsyncpa [#allocation9], 0
    %16 = vsyncpa [#allocation7], 0
    %17 = vsyncpa [#allocation13], 0
    %18 = vsyncpa [#allocation6], 0
    %s19 = scalar_lea.sflag [#allocation6], 1
    %20 = vsyncpa %s19, 0
    loop: start=0, step=1, limit=4
    $region2: #{tpu_custom_call.1} parent=1 // loop_pre_header
      _
    $region3: #{tpu_custom_call.1} parent=1 // loop_header
      %s22 = sphi 0, %s26
      %p23 = scmp.ge.s32.totalorder %s22, 4
      %s32 = sphi 0, %s34
      %s35 = sphi 0, %s32
      %s36 = sphi 0, %s35
      %s52 = sphi 0, %s36
      %s56 = sphi 0, %s56
      %s58 = sphi 0, %s56
      %s59 = sphi 0, %s58
      %s73 = sphi 0, %s59
      %s77 = sphi 0, %s77
      %s79 = sphi 0, %s77
      %s80 = sphi 0, %s79
      %s94 = sphi 0, %s80
      %s98 = sphi 0, %s98
      %s100 = sphi 0, %s98
      %s101 = sphi 0, %s100
      %s115 = sphi 0, %s101
      %s119 = sphi 0, %s119
      %s121 = sphi 0, %s119
      %s122 = sphi 0, %s121
      %s136 = sphi 0, %s122
      %s140 = sphi 0, %s140
      %s142 = sphi 0, %s140
      %s143 = sphi 0, %s142
      %s157 = sphi 0, %s143
      %s161 = sphi 0, %s161
      %s163 = sphi 0, %s161
      %s164 = sphi 0, %s163
      %s178 = sphi 0, %s164
      %s184 = sphi 0, %s186
      %s187 = sphi 0, %s184
      %s188 = sphi 0, %s187
      %s204 = sphi 0, %s188
    $region4: #{tpu_custom_call.1} parent=1 // loop_header_branch
      %25 = sbr.rel (%p23) target = $region8
    $region5: #{tpu_custom_call.1} parent=1 // loop_body
      %s27 = ssub.s32 %s22, 1
      %s28 = ssub.s32 %s22, 2
      %s29 = sadd.s32 %s22, 1
      %s30 = ssub.s32 %s22, %s29
      %p31 = scmp.eq.s32.totalorder %s30, 0
      %s33 = sadd.s32 %s32, 1
      %s34 = scalar_select %p31, %s32, %s33
      %p37 = pneg %p31
      %p38 = scmp.eq.s32.totalorder %s22, 1
      %p39 = por %p37, %p38
      %p40 = scmp.ne.s32.totalorder %s32, %s35
      %p41 = scmp.eq.s32.totalorder %s22, 0
      %p42 = por %p40, %p41
      %p43 = scmp.ne.s32.totalorder %s32, %s35
      %p44 = scmp.eq.s32.totalorder %s27, 1
      %p45 = por %p43, %p44
      %p46 = scmp.ne.s32.totalorder %s35, %s36
      %p47 = scmp.eq.s32.totalorder %s27, 0
      %p48 = por %p46, %p47
      %p49 = scmp.ne.s32.totalorder %s35, %s36
      %p50 = scmp.eq.s32.totalorder %s28, 1
      %p51 = por %p49, %p50
      %p53 = scmp.ne.s32.totalorder %s36, %s52
      %p54 = scmp.eq.s32.totalorder %s28, 0
      %p55 = por %p53, %p54
      %s57 = sadd.s32 %s56, 1
      %p60 = scmp.eq.s32.totalorder %s22, 1
      %p61 = scmp.ne.s32.totalorder %s56, %s58
      %p62 = scmp.eq.s32.totalorder %s22, 0
      %p63 = por %p61, %p62
      %p64 = scmp.ne.s32.totalorder %s56, %s58
      %p65 = scmp.eq.s32.totalorder %s27, 1
      %p66 = por %p64, %p65
      %p67 = scmp.ne.s32.totalorder %s58, %s59
      %p68 = scmp.eq.s32.totalorder %s27, 0
      %p69 = por %p67, %p68
      %p70 = scmp.ne.s32.totalorder %s58, %s59
      %p71 = scmp.eq.s32.totalorder %s28, 1
      %p72 = por %p70, %p71
      %p74 = scmp.ne.s32.totalorder %s59, %s73
      %p75 = scmp.eq.s32.totalorder %s28, 0
      %p76 = por %p74, %p75
      %s78 = sadd.s32 %s77, 1
      %p81 = scmp.eq.s32.totalorder %s22, 1
      %p82 = scmp.ne.s32.totalorder %s77, %s79
      %p83 = scmp.eq.s32.totalorder %s22, 0
      %p84 = por %p82, %p83
      %p85 = scmp.ne.s32.totalorder %s77, %s79
      %p86 = scmp.eq.s32.totalorder %s27, 1
      %p87 = por %p85, %p86
      %p88 = scmp.ne.s32.totalorder %s79, %s80
      %p89 = scmp.eq.s32.totalorder %s27, 0
      %p90 = por %p88, %p89
      %p91 = scmp.ne.s32.totalorder %s79, %s80
      %p92 = scmp.eq.s32.totalorder %s28, 1
      %p93 = por %p91, %p92
      %p95 = scmp.ne.s32.totalorder %s80, %s94
      %p96 = scmp.eq.s32.totalorder %s28, 0
      %p97 = por %p95, %p96
      %s99 = sadd.s32 %s98, 1
      %p102 = scmp.eq.s32.totalorder %s22, 1
      %p103 = scmp.ne.s32.totalorder %s98, %s100
      %p104 = scmp.eq.s32.totalorder %s22, 0
      %p105 = por %p103, %p104
      %p106 = scmp.ne.s32.totalorder %s98, %s100
      %p107 = scmp.eq.s32.totalorder %s27, 1
      %p108 = por %p106, %p107
      %p109 = scmp.ne.s32.totalorder %s100, %s101
      %p110 = scmp.eq.s32.totalorder %s27, 0
      %p111 = por %p109, %p110
      %p112 = scmp.ne.s32.totalorder %s100, %s101
      %p113 = scmp.eq.s32.totalorder %s28, 1
      %p114 = por %p112, %p113
      %p116 = scmp.ne.s32.totalorder %s101, %s115
      %p117 = scmp.eq.s32.totalorder %s28, 0
      %p118 = por %p116, %p117
      %s120 = sadd.s32 %s119, 1
      %p123 = scmp.eq.s32.totalorder %s22, 1
      %p124 = scmp.ne.s32.totalorder %s119, %s121
      %p125 = scmp.eq.s32.totalorder %s22, 0
      %p126 = por %p124, %p125
      %p127 = scmp.ne.s32.totalorder %s119, %s121
      %p128 = scmp.eq.s32.totalorder %s27, 1
      %p129 = por %p127, %p128
      %p130 = scmp.ne.s32.totalorder %s121, %s122
      %p131 = scmp.eq.s32.totalorder %s27, 0
      %p132 = por %p130, %p131
      %p133 = scmp.ne.s32.totalorder %s121, %s122
      %p134 = scmp.eq.s32.totalorder %s28, 1
      %p135 = por %p133, %p134
      %p137 = scmp.ne.s32.totalorder %s122, %s136
      %p138 = scmp.eq.s32.totalorder %s28, 0
      %p139 = por %p137, %p138
      %s141 = sadd.s32 %s140, 1
      %p144 = scmp.eq.s32.totalorder %s22, 1
      %p145 = scmp.ne.s32.totalorder %s140, %s142
      %p146 = scmp.eq.s32.totalorder %s22, 0
      %p147 = por %p145, %p146
      %p148 = scmp.ne.s32.totalorder %s140, %s142
      %p149 = scmp.eq.s32.totalorder %s27, 1
      %p150 = por %p148, %p149
      %p151 = scmp.ne.s32.totalorder %s142, %s143
      %p152 = scmp.eq.s32.totalorder %s27, 0
      %p153 = por %p151, %p152
      %p154 = scmp.ne.s32.totalorder %s142, %s143
      %p155 = scmp.eq.s32.totalorder %s28, 1
      %p156 = por %p154, %p155
      %p158 = scmp.ne.s32.totalorder %s143, %s157
      %p159 = scmp.eq.s32.totalorder %s28, 0
      %p160 = por %p158, %p159
      %s162 = sadd.s32 %s161, 1
      %p165 = scmp.eq.s32.totalorder %s22, 1
      %p166 = scmp.ne.s32.totalorder %s161, %s163
      %p167 = scmp.eq.s32.totalorder %s22, 0
      %p168 = por %p166, %p167
      %p169 = scmp.ne.s32.totalorder %s161, %s163
      %p170 = scmp.eq.s32.totalorder %s27, 1
      %p171 = por %p169, %p170
      %p172 = scmp.ne.s32.totalorder %s163, %s164
      %p173 = scmp.eq.s32.totalorder %s27, 0
      %p174 = por %p172, %p173
      %p175 = scmp.ne.s32.totalorder %s163, %s164
      %p176 = scmp.eq.s32.totalorder %s28, 1
      %p177 = por %p175, %p176
      %p179 = scmp.ne.s32.totalorder %s164, %s178
      %p180 = scmp.eq.s32.totalorder %s28, 0
      %p181 = por %p179, %p180
      %s182 = ssub.s32 %s22, %s29
      %p183 = scmp.eq.s32.totalorder %s182, 0
      %s185 = sadd.s32 %s184, 1
      %s186 = scalar_select %p183, %s184, %s185
      %p189 = pneg %p183
      %p190 = scmp.eq.s32.totalorder %s22, 1
      %p191 = por %p189, %p190
      %p192 = scmp.ne.s32.totalorder %s184, %s187
      %p193 = scmp.eq.s32.totalorder %s22, 0
      %p194 = por %p192, %p193
      %p195 = scmp.ne.s32.totalorder %s184, %s187
      %p196 = scmp.eq.s32.totalorder %s27, 1
      %p197 = por %p195, %p196
      %p198 = scmp.ne.s32.totalorder %s187, %s188
      %p199 = scmp.eq.s32.totalorder %s27, 0
      %p200 = por %p198, %p199
      %p201 = scmp.ne.s32.totalorder %s187, %s188
      %p202 = scmp.eq.s32.totalorder %s28, 1
      %p203 = por %p201, %p202
      %p205 = scmp.ne.s32.totalorder %s188, %s204
      %p206 = scmp.eq.s32.totalorder %s28, 0
      %p207 = por %p205, %p206
      %p208 = scmp.le.s32.totalorder 1, %s22
      %p209 = scmp.lt.s32.totalorder %s22, 3
      %p210 = pnand %p208, %p209
      %p211 = pneg %p210
      // Predicated region
      $region9: #{tpu_custom_call.1} parent=5 // pred_check
        _
      $region10: #{tpu_custom_call.1} parent=5 // pred_check_branch
        %213 = sbr.rel (%p210) target = $region12
      $region11: #{tpu_custom_call.1} parent=5 // pred_region
        %s214 = ssub.s32 %s22, 1
        // Predicated region
        $region13: #{tpu_custom_call.1} parent=11 // pred_check
          %p215 = pneg %p69
        $region14: #{tpu_custom_call.1} parent=11 // pred_check_branch
          %217 = sbr.rel (%p215) target = $region16
        $region15: #{tpu_custom_call.1} parent=11 // pred_region
          %s219 = ssub.s32 256, 256
          %220 = vsyncadd [#allocation9], %s219
          %s221 = sshll.u32 [#allocation8], 4
          %s222 = int_to_ptr.vmem [resolvable:$true] %s221
          %227 = dma.hbm_to_vmem [thread:$0]  %s1, 256, %s222, [#allocation9], 64, 64, 4
        $region16: #{tpu_custom_call.1} parent=11 // pred_fallthru
          _
        // Predicated region
        $region17: #{tpu_custom_call.1} parent=11 // pred_check
          %p228 = pneg %p90
        $region18: #{tpu_custom_call.1} parent=11 // pred_check_branch
          %230 = sbr.rel (%p228) target = $region20
        $region19: #{tpu_custom_call.1} parent=11 // pred_region
          %s232 = ssub.s32 256, 256
          %233 = vsyncadd [#allocation9], %s232
          %s234 = sshll.u32 [#allocation10], 4
          %s235 = int_to_ptr.vmem [resolvable:$true] %s234
          %240 = dma.hbm_to_vmem [thread:$0]  %s2, 256, %s235, [#allocation9], 64, 64, 4
        $region20: #{tpu_custom_call.1} parent=11 // pred_fallthru
          _
        // Predicated region
        $region21: #{tpu_custom_call.1} parent=11 // pred_check
          %p241 = pneg %p111
        $region22: #{tpu_custom_call.1} parent=11 // pred_check_branch
          %243 = sbr.rel (%p241) target = $region24
        $region23: #{tpu_custom_call.1} parent=11 // pred_region
          _
        $region24: #{tpu_custom_call.1} parent=11 // pred_fallthru
          _
        // Predicated region
        $region25: #{tpu_custom_call.1} parent=11 // pred_check
          %p244 = pneg %p132
        $region26: #{tpu_custom_call.1} parent=11 // pred_check_branch
          %246 = sbr.rel (%p244) target = $region28
        $region27: #{tpu_custom_call.1} parent=11 // pred_region
          %s248 = ssub.s32 64, 64
          %249 = vsyncadd [#allocation7], %s248
          %s251 = sshll.u32 %s4, 4
          %s252 = int_to_ptr.vmem [resolvable:$true] %s251
          %254 = dma.vmem_to_smem %s252, 64, [#allocation11], [#allocation7]
        $region28: #{tpu_custom_call.1} parent=11 // pred_fallthru
          _
        // Predicated region
        $region29: #{tpu_custom_call.1} parent=11 // pred_check
          %p255 = pneg %p153
        $region30: #{tpu_custom_call.1} parent=11 // pred_check_branch
          %257 = sbr.rel (%p255) target = $region32
        $region31: #{tpu_custom_call.1} parent=11 // pred_region
          %s259 = ssub.s32 64, 64
          %260 = vsyncadd [#allocation13], %s259
          %s262 = sshll.u32 %s5, 4
          %s263 = int_to_ptr.vmem [resolvable:$true] %s262
          %265 = dma.vmem_to_smem %s263, 64, [#allocation12], [#allocation13]
        $region32: #{tpu_custom_call.1} parent=11 // pred_fallthru
          _
        // Predicated region
        $region33: #{tpu_custom_call.1} parent=11 // pred_check
          %p266 = pneg %p174
        $region34: #{tpu_custom_call.1} parent=11 // pred_check_branch
          %268 = sbr.rel (%p266) target = $region36
        $region35: #{tpu_custom_call.1} parent=11 // pred_region
          %s270 = ssub.s32 16, 16
          %271 = vsyncadd [#allocation13], %s270
          %s273 = sshll.u32 %s6, 4
          %s274 = int_to_ptr.vmem [resolvable:$true] %s273
          %276 = dma.vmem_to_smem %s274, 16, [#allocation14], [#allocation13]
        $region36: #{tpu_custom_call.1} parent=11 // pred_fallthru
          _
      $region12: #{tpu_custom_call.1} parent=5 // pred_fallthru
        _
      %p277 = scmp.lt.s32.totalorder %s22, 2
      // Predicated region
      $region37: #{tpu_custom_call.1} parent=5 // pred_check
        %p278 = pneg %p277
      $region38: #{tpu_custom_call.1} parent=5 // pred_check_branch
        %280 = sbr.rel (%p278) target = $region40
      $region39: #{tpu_custom_call.1} parent=5 // pred_region
        // Predicated region
        $region41: #{tpu_custom_call.1} parent=39 // pred_check
          %p281 = pneg %p42
        $region42: #{tpu_custom_call.1} parent=39 // pred_check_branch
          %283 = sbr.rel (%p281) target = $region44
        $region43: #{tpu_custom_call.1} parent=39 // pred_region
          %s284 = sand.u32 %s32, 1
          %s285 = scalar_lea.sflag [#allocation5], %s284
          %s286 = sand.u32 %s32, 1
          %s287 = smul.addr %s286, 8
          %s288 = scalar_lea.vmem [#allocation4], %s287
          %s289 = smul.u32 2, %s22
          %s291 = ssub.s32 128, 128
          %292 = vsyncadd %s285, %s291
          %s293 = smul.addr %s289, 64
          %s294 = scalar_lea.hbm %s0, %s293
          %s295 = sshll.u32 %s288, 4
          %s296 = int_to_ptr.vmem [resolvable:$true] %s295
          %301 = dma.hbm_to_vmem [thread:$0]  %s294, 128, %s296, %s285, 64, 64, 4
        $region44: #{tpu_custom_call.1} parent=39 // pred_fallthru
          _
      $region40: #{tpu_custom_call.1} parent=5 // pred_fallthru
        _
      %p302 = scmp.le.s32.totalorder 1, %s22
      %p303 = scmp.lt.s32.totalorder %s22, 3
      %p304 = pnand %p302, %p303
      %p305 = pneg %p304
      // Predicated region
      $region45: #{tpu_custom_call.1} parent=5 // pred_check
        _
      $region46: #{tpu_custom_call.1} parent=5 // pred_check_branch
        %307 = sbr.rel (%p304) target = $region48
      $region47: #{tpu_custom_call.1} parent=5 // pred_region
        %s308 = ssub.s32 %s22, 1
        %s309 = sand.u32 %s35, 1
        %s310 = scalar_lea.sflag [#allocation5], %s309
        %s311 = sand.u32 %s35, 1
        %s312 = smul.addr %s311, 8
        %s313 = scalar_lea.vmem [#allocation4], %s312
        // Predicated region
        $region49: #{tpu_custom_call.1} parent=47 // pred_check
          %p314 = pneg %p48
        $region50: #{tpu_custom_call.1} parent=47 // pred_check_branch
          %316 = sbr.rel (%p314) target = $region52
        $region51: #{tpu_custom_call.1} parent=47 // pred_region
          %317 = dma.done %s310, 128
        $region52: #{tpu_custom_call.1} parent=47 // pred_fallthru
          _
        // Predicated region
        $region53: #{tpu_custom_call.1} parent=47 // pred_check
          %p318 = pneg %p69
        $region54: #{tpu_custom_call.1} parent=47 // pred_check_branch
          %320 = sbr.rel (%p318) target = $region56
        $region55: #{tpu_custom_call.1} parent=47 // pred_region
          %321 = dma.done [#allocation9], 256
        $region56: #{tpu_custom_call.1} parent=47 // pred_fallthru
          _
        // Predicated region
        $region57: #{tpu_custom_call.1} parent=47 // pred_check
          %p322 = pneg %p90
        $region58: #{tpu_custom_call.1} parent=47 // pred_check_branch
          %324 = sbr.rel (%p322) target = $region60
        $region59: #{tpu_custom_call.1} parent=47 // pred_region
          %325 = dma.done [#allocation9], 256
        $region60: #{tpu_custom_call.1} parent=47 // pred_fallthru
          _
        // Predicated region
        $region61: #{tpu_custom_call.1} parent=47 // pred_check
          %p326 = pneg %p132
        $region62: #{tpu_custom_call.1} parent=47 // pred_check_branch
          %328 = sbr.rel (%p326) target = $region64
        $region63: #{tpu_custom_call.1} parent=47 // pred_region
          %329 = dma.done [#allocation7], 64
        $region64: #{tpu_custom_call.1} parent=47 // pred_fallthru
          _
        // Predicated region
        $region65: #{tpu_custom_call.1} parent=47 // pred_check
          %p330 = pneg %p153
        $region66: #{tpu_custom_call.1} parent=47 // pred_check_branch
          %332 = sbr.rel (%p330) target = $region68
        $region67: #{tpu_custom_call.1} parent=47 // pred_region
          %333 = dma.done [#allocation13], 64
        $region68: #{tpu_custom_call.1} parent=47 // pred_fallthru
          _
        // Predicated region
        $region69: #{tpu_custom_call.1} parent=47 // pred_check
          %p334 = pneg %p174
        $region70: #{tpu_custom_call.1} parent=47 // pred_check_branch
          %336 = sbr.rel (%p334) target = $region72
        $region71: #{tpu_custom_call.1} parent=47 // pred_region
          %337 = dma.done [#allocation13], 16
        $region72: #{tpu_custom_call.1} parent=47 // pred_fallthru
          _
        %338 = sfence
        %s339 = sand.u32 %s35, 1
        %s340 = scalar_lea.sflag [#allocation5], %s339
        %s341 = sand.u32 %s35, 1
        %s342 = smul.addr %s341, 8
        %s343 = scalar_lea.vmem [#allocation4], %s342
        %p344 = pneg %p48
        %p345 = pneg %p45
        %p346 = pneg %p69
        %p347 = pneg %p66
        %p348 = pneg %p90
        %p349 = pneg %p87
        %p350 = pneg %p111
        %p351 = pneg %p108
        %p352 = pneg %p132
        %p353 = pneg %p129
        %p354 = pneg %p153
        %p355 = pneg %p150
        %p356 = pneg %p174
        %p357 = pneg %p171
        %p358 = pneg %p200
        %p359 = pneg %p197
        %s360 = sand.u32 %s187, 1
        %s361 = scalar_lea.sflag [#allocation6], %s360
        %s362 = sand.u32 %s187, 1
        %s363 = smul.addr %s362, 16
        %s364 = scalar_lea.vmem [#allocation15], %s363
        %s365 = smul.u32 2, %s27
        %s366 = smul.u32 2, %s27
        %v368 = vld [vmem:[%s313] sm:$0xf]
        %v369 = vld [vmem:[%s313 + $0x4] sm:$0xf]
        %v370 = vld [vmem:[#allocation8] sm:$0xf]
        %v371 = vld [vmem:[#allocation8 + $0x4] sm:$0xf]
        %v372 = vld [vmem:[#allocation8 + $0x8] sm:$0xf]
        %v373 = vld [vmem:[#allocation8 + $0xc] sm:$0xf]
        %v376 = vunpack.c.l.b16 %v368
        %v377 = vunpack.c.l.b16 %v369
        %v378 = vpack.c.b16 %v377, %v376
        %v383 = vunpack.c.l.b16 %v370
        %v384 = vunpack.c.l.b16 %v371
        %v385 = vunpack.c.l.b16 %v372
        %v386 = vunpack.c.l.b16 %v373
        %v387 = vpack.c.b16 %v384, %v383
        %v388 = vpack.c.b16 %v386, %v385
        %vm391 = vcmask 261120
        %v393 = vsel %vm391, %v378, 0
        %395 = vmatprep.subr.bf16.mxu0 0
        %396 = vmatpush1.bf16.msra.mxu0 %v387
        %397 = vmatprep.subr.bf16.mxu0 0
        %398 = vmatpush1.bf16.msra.mxu0 %v388
        %399 = vmatprep.subr.bf16.mxu0 0
        %400 = vmatpush1.bf16.msra.mxu0 0
        %401 = vmatprep.subr.bf16.mxu0 0
        %402 = vmatpush1.bf16.msra.mxu0 0
        %403 = vmatprep.subr.bf16.mxu0 0
        %404 = vmatpush1.bf16.msra.mxu0 0
        %405 = vmatprep.subr.bf16.mxu0 0
        %406 = vmatpush1.bf16.msra.mxu0 0
        %407 = vmatprep.subr.bf16.mxu0 0
        %408 = vmatpush1.bf16.msra.mxu0 0
        %409 = vmatprep.subr.bf16.mxu0 0
        %410 = vmatpush1.bf16.msra.mxu0 0
        %411 = vmatprep.subr.bf16.mxu0 0
        %412 = vmatpush1.bf16.msra.mxu0 0
        %413 = vmatprep.subr.bf16.mxu0 0
        %414 = vmatpush1.bf16.msra.mxu0 0
        %415 = vmatprep.subr.bf16.mxu0 0
        %416 = vmatpush1.bf16.msra.mxu0 0
        %417 = vmatprep.subr.bf16.mxu0 0
        %418 = vmatpush1.bf16.msra.mxu0 0
        %419 = vmatprep.subr.bf16.mxu0 0
        %420 = vmatpush1.bf16.msra.mxu0 0
        %421 = vmatprep.subr.bf16.mxu0 0
        %422 = vmatpush1.bf16.msra.mxu0 0
        %423 = vmatprep.subr.bf16.mxu0 0
        %424 = vmatpush1.bf16.msra.mxu0 0
        %425 = vmatprep.subr.bf16.mxu0 0
        %426 = vmatpush1.bf16.msra.mxu0 0
        %427 = vmatprep.mubr.bf16.mxu0 0
        %428 = vmatmul.mubr.bf16.gmra.mrb[0].mxu0 %v393
        %v429 = vpop.f32.mrb[0].mxu0
        %v430 = vadd.f32 0.0, %v429
        %v431 = vpop.f32.mrb[0].mxu0
        %v432 = vpop.f32.mrb[0].mxu0
        %v433 = vadd.f32 0.0, %v432
        %v434 = vpop.f32.mrb[0].mxu0
        %435 = vdwg.mxu0
        %v436 = vpack.c.bf16 %v430, %v430
        %v437 = vpack.c.bf16 %v433, %v433
        %vm438 = vcmask 781312
        %439 = vst.msk [vmem:[#allocation2] sm:$0xf] %vm438, %v436
        %440 = vst.msk [vmem:[#allocation2 + $0x4] sm:$0xf] %vm438, %v437
        %s441 = sld [smem:[#allocation11]]
        %s442 = sld [smem:[#allocation11 + $0x1]]
        %s443 = sld [smem:[#allocation11 + $0x2]]
        %s444 = sld [smem:[#allocation11 + $0x3]]
        %s445 = sld [smem:[#allocation11 + $0x80]]
        %s446 = sld [smem:[#allocation11 + $0x81]]
        %s447 = sld [smem:[#allocation11 + $0x82]]
        %s448 = sld [smem:[#allocation11 + $0x83]]
        %s449 = sld [smem:[#allocation11 + $0x100]]
        %s450 = sld [smem:[#allocation11 + $0x101]]
        %s451 = sld [smem:[#allocation11 + $0x102]]
        %s452 = sld [smem:[#allocation11 + $0x103]]
        %s453 = sld [smem:[#allocation11 + $0x180]]
        %s454 = sld [smem:[#allocation11 + $0x181]]
        %s455 = sld [smem:[#allocation11 + $0x182]]
        %s456 = sld [smem:[#allocation11 + $0x183]]
        %s457 = sld [smem:[#allocation12]]
        %s458 = sld [smem:[#allocation12 + $0x1]]
        %s459 = sld [smem:[#allocation12 + $0x2]]
        %s460 = sld [smem:[#allocation12 + $0x3]]
        %s461 = sld [smem:[#allocation12 + $0x80]]
        %s462 = sld [smem:[#allocation12 + $0x81]]
        %s463 = sld [smem:[#allocation12 + $0x82]]
        %s464 = sld [smem:[#allocation12 + $0x83]]
        %s465 = sld [smem:[#allocation12 + $0x100]]
        %s466 = sld [smem:[#allocation12 + $0x101]]
        %s467 = sld [smem:[#allocation12 + $0x102]]
        %s468 = sld [smem:[#allocation12 + $0x103]]
        %s469 = sld [smem:[#allocation12 + $0x180]]
        %s470 = sld [smem:[#allocation12 + $0x181]]
        %s471 = sld [smem:[#allocation12 + $0x182]]
        %s472 = sld [smem:[#allocation12 + $0x183]]
        %s473 = sld [smem:[#allocation14]]
        %s474 = sld [smem:[#allocation14 + $0x1]]
        %s475 = sld [smem:[#allocation14 + $0x2]]
        %s476 = sld [smem:[#allocation14 + $0x3]]
        loop: start=0, step=1, limit=2
        $region73: #{tpu_custom_call.1} parent=47 // loop_pre_header
          _
        $region74: #{tpu_custom_call.1} parent=47 // loop_header
          %s478 = sphi 0, %s482
          %p479 = scmp.ge.s32.totalorder %s478, 2
        $region75: #{tpu_custom_call.1} parent=47 // loop_header_branch
          %481 = sbr.rel (%p479) target = $region79
        $region76: #{tpu_custom_call.1} parent=47 // loop_body
          %s483 = smul.addr %s478, 4
          %s484 = scalar_lea.vmem [#allocation2], %s483
          %v485 = vld [vmem:[%s484] sm:$0xf]
          %v487 = vunpack.c.l.b16 %v485
          %v488 = vpack.c.b16 %v487, %v487
          %489 = vrot.lane.b32.xlu0 %v488, 96
          %v490 = vpop.permute.xlu0 %489
          %vm491 = vcmask 64512
          %v493 = vsel %vm491, %v485, 0
          %v496 = vsel %vm491, %v490, 0
          %498 = vmatprep.subr.bf16.mxu0 0
          %499 = vmatpush1.bf16.xpose.msra.mxu0 %v496
          %500 = vmatprep.subr.bf16.mxu0 0
          %501 = vmatpush1.bf16.xpose.msra.mxu0 0
          %502 = vmatprep.subr.bf16.mxu0 0
          %503 = vmatpush1.bf16.xpose.msra.mxu0 0
          %504 = vmatprep.subr.bf16.mxu0 0
          %505 = vmatpush1.bf16.xpose.msra.mxu0 0
          %506 = vmatprep.subr.bf16.mxu0 0
          %507 = vmatpush1.bf16.xpose.msra.mxu0 0
          %508 = vmatprep.subr.bf16.mxu0 0
          %509 = vmatpush1.bf16.xpose.msra.mxu0 0
          %510 = vmatprep.subr.bf16.mxu0 0
          %511 = vmatpush1.bf16.xpose.msra.mxu0 0
          %512 = vmatprep.subr.bf16.mxu0 0
          %513 = vmatpush1.bf16.xpose.msra.mxu0 0
          %514 = vmatprep.subr.bf16.mxu0 0
          %515 = vmatpush1.bf16.xpose.msra.mxu0 0
          %516 = vmatprep.subr.bf16.mxu0 0
          %517 = vmatpush1.bf16.xpose.msra.mxu0 0
          %518 = vmatprep.subr.bf16.mxu0 0
          %519 = vmatpush1.bf16.xpose.msra.mxu0 0
          %520 = vmatprep.subr.bf16.mxu0 0
          %521 = vmatpush1.bf16.xpose.msra.mxu0 0
          %522 = vmatprep.subr.bf16.mxu0 0
          %523 = vmatpush1.bf16.xpose.msra.mxu0 0
          %524 = vmatprep.subr.bf16.mxu0 0
          %525 = vmatpush1.bf16.xpose.msra.mxu0 0
          %526 = vmatprep.subr.bf16.mxu0 0
          %527 = vmatpush1.bf16.xpose.msra.mxu0 0
          %528 = vmatprep.subr.bf16.mxu0 0
          %529 = vmatpush1.bf16.xpose.msra.mxu0 0
          %530 = vmatprep.mubr.bf16.mxu0 0
          %531 = vmatmul.mubr.bf16.gmra.mrb[0].mxu0 %v493
          %v532 = vpop.f32.mrb[0].mxu0
          %v533 = vadd.f32 0.0, %v532
          %v534 = vpop.f32.mrb[0].mxu0
          %v535 = vpop.f32.mrb[0].mxu0
          %v536 = vpop.f32.mrb[0].mxu0
          %537 = vdwg.mxu0
          %538 = vrot.lane.b32.xlu0 %v488, 120
          %v539 = vpop.permute.xlu0 %538
          %540 = vrot.lane.b32.xlu0 %v488, 88
          %v541 = vpop.permute.xlu0 %540
          %v543 = vsel %vm491, %v539, 0
          %v546 = vsel %vm491, %v541, 0
          %548 = vmatprep.subr.bf16.mxu0 0
          %549 = vmatpush1.bf16.xpose.msra.mxu0 %v546
          %550 = vmatprep.subr.bf16.mxu0 0
          %551 = vmatpush1.bf16.xpose.msra.mxu0 0
          %552 = vmatprep.subr.bf16.mxu0 0
          %553 = vmatpush1.bf16.xpose.msra.mxu0 0
          %554 = vmatprep.subr.bf16.mxu0 0
          %555 = vmatpush1.bf16.xpose.msra.mxu0 0
          %556 = vmatprep.subr.bf16.mxu0 0
          %557 = vmatpush1.bf16.xpose.msra.mxu0 0
          %558 = vmatprep.subr.bf16.mxu0 0
          %559 = vmatpush1.bf16.xpose.msra.mxu0 0
          %560 = vmatprep.subr.bf16.mxu0 0
          %561 = vmatpush1.bf16.xpose.msra.mxu0 0
          %562 = vmatprep.subr.bf16.mxu0 0
          %563 = vmatpush1.bf16.xpose.msra.mxu0 0
          %564 = vmatprep.subr.bf16.mxu0 0
          %565 = vmatpush1.bf16.xpose.msra.mxu0 0
          %566 = vmatprep.subr.bf16.mxu0 0
          %567 = vmatpush1.bf16.xpose.msra.mxu0 0
          %568 = vmatprep.subr.bf16.mxu0 0
          %569 = vmatpush1.bf16.xpose.msra.mxu0 0
          %570 = vmatprep.subr.bf16.mxu0 0
          %571 = vmatpush1.bf16.xpose.msra.mxu0 0
          %572 = vmatprep.subr.bf16.mxu0 0
          %573 = vmatpush1.bf16.xpose.msra.mxu0 0
          %574 = vmatprep.subr.bf16.mxu0 0
          %575 = vmatpush1.bf16.xpose.msra.mxu0 0
          %576 = vmatprep.subr.bf16.mxu0 0
          %577 = vmatpush1.bf16.xpose.msra.mxu0 0
          %578 = vmatprep.subr.bf16.mxu0 0
          %579 = vmatpush1.bf16.xpose.msra.mxu0 0
          %580 = vmatprep.mubr.bf16.mxu0 0
          %581 = vmatmul.mubr.bf16.gmra.mrb[0].mxu0 %v543
          %v582 = vpop.f32.mrb[0].mxu0
          %v583 = vadd.f32 0.0, %v582
          %v584 = vpop.f32.mrb[0].mxu0
          %v585 = vpop.f32.mrb[0].mxu0
          %v586 = vpop.f32.mrb[0].mxu0
          %587 = vdwg.mxu0
          %588 = vrot.lane.b32.xlu0 %v488, 112
          %v589 = vpop.permute.xlu0 %588
          %590 = vrot.lane.b32.xlu0 %v488, 80
          %v591 = vpop.permute.xlu0 %590
          %v593 = vsel %vm491, %v589, 0
          %v596 = vsel %vm491, %v591, 0
          %598 = vmatprep.subr.bf16.mxu0 0
          %599 = vmatpush1.bf16.xpose.msra.mxu0 %v596
          %600 = vmatprep.subr.bf16.mxu0 0
          %601 = vmatpush1.bf16.xpose.msra.mxu0 0
          %602 = vmatprep.subr.bf16.mxu0 0
          %603 = vmatpush1.bf16.xpose.msra.mxu0 0
          %604 = vmatprep.subr.bf16.mxu0 0
          %605 = vmatpush1.bf16.xpose.msra.mxu0 0
          %606 = vmatprep.subr.bf16.mxu0 0
          %607 = vmatpush1.bf16.xpose.msra.mxu0 0
          %608 = vmatprep.subr.bf16.mxu0 0
          %609 = vmatpush1.bf16.xpose.msra.mxu0 0
          %610 = vmatprep.subr.bf16.mxu0 0
          %611 = vmatpush1.bf16.xpose.msra.mxu0 0
          %612 = vmatprep.subr.bf16.mxu0 0
          %613 = vmatpush1.bf16.xpose.msra.mxu0 0
          %614 = vmatprep.subr.bf16.mxu0 0
          %615 = vmatpush1.bf16.xpose.msra.mxu0 0
          %616 = vmatprep.subr.bf16.mxu0 0
          %617 = vmatpush1.bf16.xpose.msra.mxu0 0
          %618 = vmatprep.subr.bf16.mxu0 0
          %619 = vmatpush1.bf16.xpose.msra.mxu0 0
          %620 = vmatprep.subr.bf16.mxu0 0
          %621 = vmatpush1.bf16.xpose.msra.mxu0 0
          %622 = vmatprep.subr.bf16.mxu0 0
          %623 = vmatpush1.bf16.xpose.msra.mxu0 0
          %624 = vmatprep.subr.bf16.mxu0 0
          %625 = vmatpush1.bf16.xpose.msra.mxu0 0
          %626 = vmatprep.subr.bf16.mxu0 0
          %627 = vmatpush1.bf16.xpose.msra.mxu0 0
          %628 = vmatprep.subr.bf16.mxu0 0
          %629 = vmatpush1.bf16.xpose.msra.mxu0 0
          %630 = vmatprep.mubr.bf16.mxu0 0
          %631 = vmatmul.mubr.bf16.gmra.mrb[0].mxu0 %v593
          %v632 = vpop.f32.mrb[0].mxu0
          %v633 = vadd.f32 0.0, %v632
          %v634 = vpop.f32.mrb[0].mxu0
          %v635 = vpop.f32.mrb[0].mxu0
          %v636 = vpop.f32.mrb[0].mxu0
          %637 = vdwg.mxu0
          %638 = vrot.lane.b32.xlu0 %v488, 104
          %v639 = vpop.permute.xlu0 %638
          %640 = vrot.lane.b32.xlu0 %v488, 72
          %v641 = vpop.permute.xlu0 %640
          %v643 = vsel %vm491, %v639, 0
          %v646 = vsel %vm491, %v641, 0
          %648 = vmatprep.subr.bf16.mxu0 0
          %649 = vmatpush1.bf16.xpose.msra.mxu0 %v646
          %650 = vmatprep.subr.bf16.mxu0 0
          %651 = vmatpush1.bf16.xpose.msra.mxu0 0
          %652 = vmatprep.subr.bf16.mxu0 0
          %653 = vmatpush1.bf16.xpose.msra.mxu0 0
          %654 = vmatprep.subr.bf16.mxu0 0
          %655 = vmatpush1.bf16.xpose.msra.mxu0 0
          %656 = vmatprep.subr.bf16.mxu0 0
          %657 = vmatpush1.bf16.xpose.msra.mxu0 0
          %658 = vmatprep.subr.bf16.mxu0 0
          %659 = vmatpush1.bf16.xpose.msra.mxu0 0
          %660 = vmatprep.subr.bf16.mxu0 0
          %661 = vmatpush1.bf16.xpose.msra.mxu0 0
          %662 = vmatprep.subr.bf16.mxu0 0
          %663 = vmatpush1.bf16.xpose.msra.mxu0 0
          %664 = vmatprep.subr.bf16.mxu0 0
          %665 = vmatpush1.bf16.xpose.msra.mxu0 0
          %666 = vmatprep.subr.bf16.mxu0 0
          %667 = vmatpush1.bf16.xpose.msra.mxu0 0
          %668 = vmatprep.subr.bf16.mxu0 0
          %669 = vmatpush1.bf16.xpose.msra.mxu0 0
          %670 = vmatprep.subr.bf16.mxu0 0
          %671 = vmatpush1.bf16.xpose.msra.mxu0 0
          %672 = vmatprep.subr.bf16.mxu0 0
          %673 = vmatpush1.bf16.xpose.msra.mxu0 0
          %674 = vmatprep.subr.bf16.mxu0 0
          %675 = vmatpush1.bf16.xpose.msra.mxu0 0
          %676 = vmatprep.subr.bf16.mxu0 0
          %677 = vmatpush1.bf16.xpose.msra.mxu0 0
          %678 = vmatprep.subr.bf16.mxu0 0
          %679 = vmatpush1.bf16.xpose.msra.mxu0 0
          %680 = vmatprep.mubr.bf16.mxu0 0
          %681 = vmatmul.mubr.bf16.gmra.mrb[0].mxu0 %v643
          %v682 = vpop.f32.mrb[0].mxu0
          %v683 = vadd.f32 0.0, %v682
          %v684 = vpop.f32.mrb[0].mxu0
          %v685 = vpop.f32.mrb[0].mxu0
          %v686 = vpop.f32.mrb[0].mxu0
          %687 = vdwg.mxu0
          %v688 = vstv %s441
          %v689 = vmul.f32 %v688, %v533
          %v690 = vstv %s442
          %v691 = vmul.f32 %v690, %v583
          %v692 = vadd.f32 %v689, %v691
          %v693 = vstv %s443
          %v694 = vmul.f32 %v693, %v633
          %v695 = vadd.f32 %v692, %v694
          %v696 = vstv %s444
          %v697 = vmul.f32 %v696, %v683
          %v698 = vadd.f32 %v695, %v697
          %v699 = vstv %s445
          %v700 = vmul.f32 %v699, %v533
          %v701 = vstv %s446
          %v702 = vmul.f32 %v701, %v583
          %v703 = vadd.f32 %v700, %v702
          %v704 = vstv %s447
          %v705 = vmul.f32 %v704, %v633
          %v706 = vadd.f32 %v703, %v705
          %v707 = vstv %s448
          %v708 = vmul.f32 %v707, %v683
          %v709 = vadd.f32 %v706, %v708
          %v710 = vstv %s449
          %v711 = vmul.f32 %v710, %v533
          %v712 = vstv %s450
          %v713 = vmul.f32 %v712, %v583
          %v714 = vadd.f32 %v711, %v713
          %v715 = vstv %s451
          %v716 = vmul.f32 %v715, %v633
          %v717 = vadd.f32 %v714, %v716
          %v718 = vstv %s452
          %v719 = vmul.f32 %v718, %v683
          %v720 = vadd.f32 %v717, %v719
          %v721 = vstv %s453
          %v722 = vmul.f32 %v721, %v533
          %v723 = vstv %s454
          %v724 = vmul.f32 %v723, %v583
          %v725 = vadd.f32 %v722, %v724
          %v726 = vstv %s455
          %v727 = vmul.f32 %v726, %v633
          %v728 = vadd.f32 %v725, %v727
          %v729 = vstv %s456
          %v730 = vmul.f32 %v729, %v683
          %v731 = vadd.f32 %v728, %v730
          %v732 = vsel %vm491, %v698, -inf
          %733 = vmax.xlane.f32.xlu0 %v732
          %v734 = vpop.xlane.xlu0 %733
          %v735 = vsub.f32 %v698, %v734
          %v736 = vmul.f32 %v735, 1.442695
          %v737 = vpow.pop %v736
          %v738 = vsel %vm491, %v737, 0.0
          %739 = vadd.xlane.f32.xlu0 %v738
          %v740 = vpop.xlane.xlu0 %739
          %v741 = vrcp.pop %v740
          %v742 = vmul.f32 %v737, %v741
          %v743 = vsel %vm491, %v709, -inf
          %744 = vmax.xlane.f32.xlu0 %v743
          %v745 = vpop.xlane.xlu0 %744
          %v746 = vsub.f32 %v709, %v745
          %v747 = vmul.f32 %v746, 1.442695
          %v748 = vpow.pop %v747
          %v749 = vsel %vm491, %v748, 0.0
          %750 = vadd.xlane.f32.xlu0 %v749
          %v751 = vpop.xlane.xlu0 %750
          %v752 = vrcp.pop %v751
          %v753 = vmul.f32 %v748, %v752
          %v754 = vsel %vm491, %v720, -inf
          %755 = vmax.xlane.f32.xlu0 %v754
          %v756 = vpop.xlane.xlu0 %755
          %v757 = vsub.f32 %v720, %v756
          %v758 = vmul.f32 %v757, 1.442695
          %v759 = vpow.pop %v758
          %v760 = vsel %vm491, %v759, 0.0
          %761 = vadd.xlane.f32.xlu0 %v760
          %v762 = vpop.xlane.xlu0 %761
          %v763 = vrcp.pop %v762
          %v764 = vmul.f32 %v759, %v763
          %v765 = vsel %vm491, %v731, -inf
          %766 = vmax.xlane.f32.xlu0 %v765
          %v767 = vpop.xlane.xlu0 %766
          %v768 = vsub.f32 %v731, %v767
          %v769 = vmul.f32 %v768, 1.442695
          %v770 = vpow.pop %v769
          %v771 = vsel %vm491, %v770, 0.0
          %772 = vadd.xlane.f32.xlu0 %v771
          %v773 = vpop.xlane.xlu0 %772
          %v774 = vrcp.pop %v773
          %v775 = vmul.f32 %v770, %v774
          %v776 = vstv %s457
          %v777 = vmul.f32 %v776, %v742
          %v778 = vstv %s458
          %v779 = vmul.f32 %v778, %v753
          %v780 = vadd.f32 %v777, %v779
          %v781 = vstv %s459
          %v782 = vmul.f32 %v781, %v764
          %v783 = vadd.f32 %v780, %v782
          %v784 = vstv %s460
          %v785 = vmul.f32 %v784, %v775
          %v786 = vadd.f32 %v783, %v785
          %v787 = vpack.c.bf16 %v786, %v786
          %v788 = vunpack.c.l.bf16 %v485
          %vm789 = vcmask 589312
          %v790 = vsel %vm789, %v788, 0.0
          %v791 = vrot.slane %v790, 4
          %v792 = vadd.f32 %v790, %v791
          %v793 = vrot.slane %v792, 2
          %v794 = vadd.f32 %v792, %v793
          %v795 = vrot.slane %v794, 1
          %v796 = vadd.f32 %v794, %v795
          %v797 = vstv %s473
          %v798 = vmul.f32 %v797, %v796
          %799 = vrot.lane.b32.xlu0 %v488, 64
          %v800 = vpop.permute.xlu0 %799
          %802 = vrot.lane.b32.xlu0 %v798, 64
          %v803 = vpop.permute.xlu0 %802
          %v806 = vsel %vm491, %v787, 0
          %vm808 = vcmask 1043456
          %v810 = vsel %vm808, %v800, 0
          %812 = vmatprep.subr.bf16.mxu0 0
          %813 = vmatpush1.bf16.msra.mxu0 %v810
          %814 = vmatprep.subr.bf16.mxu0 0
          %815 = vmatpush1.bf16.msra.mxu0 0
          %816 = vmatprep.subr.bf16.mxu0 0
          %817 = vmatpush1.bf16.msra.mxu0 0
          %818 = vmatprep.subr.bf16.mxu0 0
          %819 = vmatpush1.bf16.msra.mxu0 0
          %820 = vmatprep.subr.bf16.mxu0 0
          %821 = vmatpush1.bf16.msra.mxu0 0
          %822 = vmatprep.subr.bf16.mxu0 0
          %823 = vmatpush1.bf16.msra.mxu0 0
          %824 = vmatprep.subr.bf16.mxu0 0
          %825 = vmatpush1.bf16.msra.mxu0 0
          %826 = vmatprep.subr.bf16.mxu0 0
          %827 = vmatpush1.bf16.msra.mxu0 0
          %828 = vmatprep.subr.bf16.mxu0 0
          %829 = vmatpush1.bf16.msra.mxu0 0
          %830 = vmatprep.subr.bf16.mxu0 0
          %831 = vmatpush1.bf16.msra.mxu0 0
          %832 = vmatprep.subr.bf16.mxu0 0
          %833 = vmatpush1.bf16.msra.mxu0 0
          %834 = vmatprep.subr.bf16.mxu0 0
          %835 = vmatpush1.bf16.msra.mxu0 0
          %836 = vmatprep.subr.bf16.mxu0 0
          %837 = vmatpush1.bf16.msra.mxu0 0
          %838 = vmatprep.subr.bf16.mxu0 0
          %839 = vmatpush1.bf16.msra.mxu0 0
          %840 = vmatprep.subr.bf16.mxu0 0
          %841 = vmatpush1.bf16.msra.mxu0 0
          %842 = vmatprep.subr.bf16.mxu0 0
          %843 = vmatpush1.bf16.msra.mxu0 0
          %844 = vmatprep.mubr.bf16.mxu0 0
          %845 = vmatmul.mubr.bf16.gmra.mrb[0].mxu0 %v806
          %v846 = vpop.f32.mrb[0].mxu0
          %v847 = vadd.f32 %v803, %v846
          %v848 = vpop.f32.mrb[0].mxu0
          %v849 = vpop.f32.mrb[0].mxu0
          %v850 = vpop.f32.mrb[0].mxu0
          %851 = vdwg.mxu0
          %v852 = vpack.c.bf16 %v847, %v847
          %s853 = smul.addr %s478, 4
          %s854 = scalar_lea.vmem [#allocation3], %s853
          %vm855 = vcmask 60416
          %856 = vst.msk [vmem:[%s854] sm:$0xf] %vm855, %v852
          %v857 = vstv %s461
          %v858 = vmul.f32 %v857, %v742
          %v859 = vstv %s462
          %v860 = vmul.f32 %v859, %v753
          %v861 = vadd.f32 %v858, %v860
          %v862 = vstv %s463
          %v863 = vmul.f32 %v862, %v764
          %v864 = vadd.f32 %v861, %v863
          %v865 = vstv %s464
          %v866 = vmul.f32 %v865, %v775
          %v867 = vadd.f32 %v864, %v866
          %v868 = vpack.c.bf16 %v867, %v867
          %vm869 = vcmask 654912
          %v870 = vsel %vm869, %v788, 0.0
          %v871 = vrot.slane %v870, 4
          %v872 = vadd.f32 %v870, %v871
          %v873 = vrot.slane %v872, 2
          %v874 = vadd.f32 %v872, %v873
          %v875 = vrot.slane %v874, 1
          %v876 = vadd.f32 %v874, %v875
          %v877 = vstv %s474
          %v878 = vmul.f32 %v877, %v876
          %879 = vrot.lane.b32.xlu0 %v488, 56
          %v880 = vpop.permute.xlu0 %879
          %882 = vrot.lane.b32.xlu0 %v878, 56
          %v883 = vpop.permute.xlu0 %882
          %v886 = vsel %vm491, %v868, 0
          %v889 = vsel %vm808, %v880, 0
          %891 = vmatprep.subr.bf16.mxu0 0
          %892 = vmatpush1.bf16.msra.mxu0 %v889
          %893 = vmatprep.subr.bf16.mxu0 0
          %894 = vmatpush1.bf16.msra.mxu0 0
          %895 = vmatprep.subr.bf16.mxu0 0
          %896 = vmatpush1.bf16.msra.mxu0 0
          %897 = vmatprep.subr.bf16.mxu0 0
          %898 = vmatpush1.bf16.msra.mxu0 0
          %899 = vmatprep.subr.bf16.mxu0 0
          %900 = vmatpush1.bf16.msra.mxu0 0
          %901 = vmatprep.subr.bf16.mxu0 0
          %902 = vmatpush1.bf16.msra.mxu0 0
          %903 = vmatprep.subr.bf16.mxu0 0
          %904 = vmatpush1.bf16.msra.mxu0 0
          %905 = vmatprep.subr.bf16.mxu0 0
          %906 = vmatpush1.bf16.msra.mxu0 0
          %907 = vmatprep.subr.bf16.mxu0 0
          %908 = vmatpush1.bf16.msra.mxu0 0
          %909 = vmatprep.subr.bf16.mxu0 0
          %910 = vmatpush1.bf16.msra.mxu0 0
          %911 = vmatprep.subr.bf16.mxu0 0
          %912 = vmatpush1.bf16.msra.mxu0 0
          %913 = vmatprep.subr.bf16.mxu0 0
          %914 = vmatpush1.bf16.msra.mxu0 0
          %915 = vmatprep.subr.bf16.mxu0 0
          %916 = vmatpush1.bf16.msra.mxu0 0
          %917 = vmatprep.subr.bf16.mxu0 0
          %918 = vmatpush1.bf16.msra.mxu0 0
          %919 = vmatprep.subr.bf16.mxu0 0
          %920 = vmatpush1.bf16.msra.mxu0 0
          %921 = vmatprep.subr.bf16.mxu0 0
          %922 = vmatpush1.bf16.msra.mxu0 0
          %923 = vmatprep.mubr.bf16.mxu0 0
          %924 = vmatmul.mubr.bf16.gmra.mrb[0].mxu0 %v886
          %v925 = vpop.f32.mrb[0].mxu0
          %v926 = vadd.f32 %v883, %v925
          %v927 = vpop.f32.mrb[0].mxu0
          %v928 = vpop.f32.mrb[0].mxu0
          %v929 = vpop.f32.mrb[0].mxu0
          %930 = vdwg.mxu0
          %v931 = vpack.c.bf16 %v926, %v926
          %v933 = vunpack.c.l.b16 %v931
          %v934 = vpack.c.b16 %v933, %v933
          %935 = vrot.lane.b32.xlu0 %v934, 8
          %v936 = vpop.permute.xlu0 %935
          %vm938 = vcmask 126016
          %939 = vst.msk [vmem:[%s854] sm:$0xf] %vm938, %v936
          %v940 = vstv %s465
          %v941 = vmul.f32 %v940, %v742
          %v942 = vstv %s466
          %v943 = vmul.f32 %v942, %v753
          %v944 = vadd.f32 %v941, %v943
          %v945 = vstv %s467
          %v946 = vmul.f32 %v945, %v764
          %v947 = vadd.f32 %v944, %v946
          %v948 = vstv %s468
          %v949 = vmul.f32 %v948, %v775
          %v950 = vadd.f32 %v947, %v949
          %v951 = vpack.c.bf16 %v950, %v950
          %vm952 = vcmask 720512
          %v953 = vsel %vm952, %v788, 0.0
          %v954 = vrot.slane %v953, 4
          %v955 = vadd.f32 %v953, %v954
          %v956 = vrot.slane %v955, 2
          %v957 = vadd.f32 %v955, %v956
          %v958 = vrot.slane %v957, 1
          %v959 = vadd.f32 %v957, %v958
          %v960 = vstv %s475
          %v961 = vmul.f32 %v960, %v959
          %962 = vrot.lane.b32.xlu0 %v488, 48
          %v963 = vpop.permute.xlu0 %962
          %965 = vrot.lane.b32.xlu0 %v961, 48
          %v966 = vpop.permute.xlu0 %965
          %v969 = vsel %vm491, %v951, 0
          %v972 = vsel %vm808, %v963, 0
          %974 = vmatprep.subr.bf16.mxu0 0
          %975 = vmatpush1.bf16.msra.mxu0 %v972
          %976 = vmatprep.subr.bf16.mxu0 0
          %977 = vmatpush1.bf16.msra.mxu0 0
          %978 = vmatprep.subr.bf16.mxu0 0
          %979 = vmatpush1.bf16.msra.mxu0 0
          %980 = vmatprep.subr.bf16.mxu0 0
          %981 = vmatpush1.bf16.msra.mxu0 0
          %982 = vmatprep.subr.bf16.mxu0 0
          %983 = vmatpush1.bf16.msra.mxu0 0
          %984 = vmatprep.subr.bf16.mxu0 0
          %985 = vmatpush1.bf16.msra.mxu0 0
          %986 = vmatprep.subr.bf16.mxu0 0
          %987 = vmatpush1.bf16.msra.mxu0 0
          %988 = vmatprep.subr.bf16.mxu0 0
          %989 = vmatpush1.bf16.msra.mxu0 0
          %990 = vmatprep.subr.bf16.mxu0 0
          %991 = vmatpush1.bf16.msra.mxu0 0
          %992 = vmatprep.subr.bf16.mxu0 0
          %993 = vmatpush1.bf16.msra.mxu0 0
          %994 = vmatprep.subr.bf16.mxu0 0
          %995 = vmatpush1.bf16.msra.mxu0 0
          %996 = vmatprep.subr.bf16.mxu0 0
          %997 = vmatpush1.bf16.msra.mxu0 0
          %998 = vmatprep.subr.bf16.mxu0 0
          %999 = vmatpush1.bf16.msra.mxu0 0
          %1000 = vmatprep.subr.bf16.mxu0 0
          %1001 = vmatpush1.bf16.msra.mxu0 0
          %1002 = vmatprep.subr.bf16.mxu0 0
          %1003 = vmatpush1.bf16.msra.mxu0 0
          %1004 = vmatprep.subr.bf16.mxu0 0
          %1005 = vmatpush1.bf16.msra.mxu0 0
          %1006 = vmatprep.mubr.bf16.mxu0 0
          %1007 = vmatmul.mubr.bf16.gmra.mrb[0].mxu0 %v969
          %v1008 = vpop.f32.mrb[0].mxu0
          %v1009 = vadd.f32 %v966, %v1008
          %v1010 = vpop.f32.mrb[0].mxu0
          %v1011 = vpop.f32.mrb[0].mxu0
          %v1012 = vpop.f32.mrb[0].mxu0
          %1013 = vdwg.mxu0
          %v1014 = vpack.c.bf16 %v1009, %v1009
          %v1016 = vunpack.c.l.b16 %v1014
          %v1017 = vpack.c.b16 %v1016, %v1016
          %1018 = vrot.lane.b32.xlu0 %v1017, 16
          %v1019 = vpop.permute.xlu0 %1018
          %vm1021 = vcmask 191616
          %1022 = vst.msk [vmem:[%s854] sm:$0xf] %vm1021, %v1019
          %v1023 = vstv %s469
          %v1024 = vmul.f32 %v1023, %v742
          %v1025 = vstv %s470
          %v1026 = vmul.f32 %v1025, %v753
          %v1027 = vadd.f32 %v1024, %v1026
          %v1028 = vstv %s471
          %v1029 = vmul.f32 %v1028, %v764
          %v1030 = vadd.f32 %v1027, %v1029
          %v1031 = vstv %s472
          %v1032 = vmul.f32 %v1031, %v775
          %v1033 = vadd.f32 %v1030, %v1032
          %v1034 = vpack.c.bf16 %v1033, %v1033
          %vm1035 = vcmask 786112
          %v1036 = vsel %vm1035, %v788, 0.0
          %v1037 = vrot.slane %v1036, 4
          %v1038 = vadd.f32 %v1036, %v1037
          %v1039 = vrot.slane %v1038, 2
          %v1040 = vadd.f32 %v1038, %v1039
          %v1041 = vrot.slane %v1040, 1
          %v1042 = vadd.f32 %v1040, %v1041
          %v1043 = vstv %s476
          %v1044 = vmul.f32 %v1043, %v1042
          %1045 = vrot.lane.b32.xlu0 %v488, 40
          %v1046 = vpop.permute.xlu0 %1045
          %1048 = vrot.lane.b32.xlu0 %v1044, 40
          %v1049 = vpop.permute.xlu0 %1048
          %v1052 = vsel %vm491, %v1034, 0
          %v1055 = vsel %vm808, %v1046, 0
          %1057 = vmatprep.subr.bf16.mxu0 0
          %1058 = vmatpush1.bf16.msra.mxu0 %v1055
          %1059 = vmatprep.subr.bf16.mxu0 0
          %1060 = vmatpush1.bf16.msra.mxu0 0
          %1061 = vmatprep.subr.bf16.mxu0 0
          %1062 = vmatpush1.bf16.msra.mxu0 0
          %1063 = vmatprep.subr.bf16.mxu0 0
          %1064 = vmatpush1.bf16.msra.mxu0 0
          %1065 = vmatprep.subr.bf16.mxu0 0
          %1066 = vmatpush1.bf16.msra.mxu0 0
          %1067 = vmatprep.subr.bf16.mxu0 0
          %1068 = vmatpush1.bf16.msra.mxu0 0
          %1069 = vmatprep.subr.bf16.mxu0 0
          %1070 = vmatpush1.bf16.msra.mxu0 0
          %1071 = vmatprep.subr.bf16.mxu0 0
          %1072 = vmatpush1.bf16.msra.mxu0 0
          %1073 = vmatprep.subr.bf16.mxu0 0
          %1074 = vmatpush1.bf16.msra.mxu0 0
          %1075 = vmatprep.subr.bf16.mxu0 0
          %1076 = vmatpush1.bf16.msra.mxu0 0
          %1077 = vmatprep.subr.bf16.mxu0 0
          %1078 = vmatpush1.bf16.msra.mxu0 0
          %1079 = vmatprep.subr.bf16.mxu0 0
          %1080 = vmatpush1.bf16.msra.mxu0 0
          %1081 = vmatprep.subr.bf16.mxu0 0
          %1082 = vmatpush1.bf16.msra.mxu0 0
          %1083 = vmatprep.subr.bf16.mxu0 0
          %1084 = vmatpush1.bf16.msra.mxu0 0
          %1085 = vmatprep.subr.bf16.mxu0 0
          %1086 = vmatpush1.bf16.msra.mxu0 0
          %1087 = vmatprep.subr.bf16.mxu0 0
          %1088 = vmatpush1.bf16.msra.mxu0 0
          %1089 = vmatprep.mubr.bf16.mxu0 0
          %1090 = vmatmul.mubr.bf16.gmra.mrb[0].mxu0 %v1052
          %v1091 = vpop.f32.mrb[0].mxu0
          %v1092 = vadd.f32 %v1049, %v1091
          %v1093 = vpop.f32.mrb[0].mxu0
          %v1094 = vpop.f32.mrb[0].mxu0
          %v1095 = vpop.f32.mrb[0].mxu0
          %1096 = vdwg.mxu0
          %v1097 = vpack.c.bf16 %v1092, %v1092
          %v1099 = vunpack.c.l.b16 %v1097
          %v1100 = vpack.c.b16 %v1099, %v1099
          %1101 = vrot.lane.b32.xlu0 %v1100, 24
          %v1102 = vpop.permute.xlu0 %1101
          %vm1104 = vcmask 257216
          %1105 = vst.msk [vmem:[%s854] sm:$0xf] %vm1104, %v1102
        $region77: #{tpu_custom_call.1} parent=47 // loop_footer
          %s482 = sadd.s32 1, %s478
        $region78: #{tpu_custom_call.1} parent=47 // loop_footer_branch
          %477 = sbr.rel target = $region74
        $region79: #{tpu_custom_call.1} parent=47 // loop_exit
          _
        %v1106 = vld [vmem:[#allocation3] sm:$0xf]
        %v1107 = vld [vmem:[#allocation3 + $0x4] sm:$0xf]
        %v1108 = vld [vmem:[#allocation10] sm:$0xf]
        %v1109 = vld [vmem:[#allocation10 + $0x4] sm:$0xf]
        %v1110 = vld [vmem:[#allocation10 + $0x8] sm:$0xf]
        %v1111 = vld [vmem:[#allocation10 + $0xc] sm:$0xf]
        %v1112 = vld [vmem:[%s3] sm:$0x1]
        %v1114 = vlaneseq
        %v1115 = vshrl.u32 %v1114, 7
        %v1116 = vsub.s32 0, %v1115
        %v1117 = vrot.slane %v1112, %v1116
        %v1121 = vunpack.c.l.b16 %v1106
        %v1122 = vunpack.c.l.b16 %v1107
        %v1123 = vpack.c.b16 %v1122, %v1121
        %v1128 = vunpack.c.l.b16 %v1108
        %v1129 = vunpack.c.l.b16 %v1109
        %v1130 = vunpack.c.l.b16 %v1110
        %v1131 = vunpack.c.l.b16 %v1111
        %v1132 = vpack.c.b16 %v1129, %v1128
        %v1133 = vpack.c.b16 %v1131, %v1130
        %v1137 = vsel %vm391, %v1123, 0
        %1139 = vmatprep.subr.bf16.mxu0 0
        %1140 = vmatpush1.bf16.msra.mxu0 %v1132
        %1141 = vmatprep.subr.bf16.mxu0 0
        %1142 = vmatpush1.bf16.msra.mxu0 %v1133
        %1143 = vmatprep.subr.bf16.mxu0 0
        %1144 = vmatpush1.bf16.msra.mxu0 0
        %1145 = vmatprep.subr.bf16.mxu0 0
        %1146 = vmatpush1.bf16.msra.mxu0 0
        %1147 = vmatprep.subr.bf16.mxu0 0
        %1148 = vmatpush1.bf16.msra.mxu0 0
        %1149 = vmatprep.subr.bf16.mxu0 0
        %1150 = vmatpush1.bf16.msra.mxu0 0
        %1151 = vmatprep.subr.bf16.mxu0 0
        %1152 = vmatpush1.bf16.msra.mxu0 0
        %1153 = vmatprep.subr.bf16.mxu0 0
        %1154 = vmatpush1.bf16.msra.mxu0 0
        %1155 = vmatprep.subr.bf16.mxu0 0
        %1156 = vmatpush1.bf16.msra.mxu0 0
        %1157 = vmatprep.subr.bf16.mxu0 0
        %1158 = vmatpush1.bf16.msra.mxu0 0
        %1159 = vmatprep.subr.bf16.mxu0 0
        %1160 = vmatpush1.bf16.msra.mxu0 0
        %1161 = vmatprep.subr.bf16.mxu0 0
        %1162 = vmatpush1.bf16.msra.mxu0 0
        %1163 = vmatprep.subr.bf16.mxu0 0
        %1164 = vmatpush1.bf16.msra.mxu0 0
        %1165 = vmatprep.subr.bf16.mxu0 0
        %1166 = vmatpush1.bf16.msra.mxu0 0
        %1167 = vmatprep.subr.bf16.mxu0 0
        %1168 = vmatpush1.bf16.msra.mxu0 0
        %1169 = vmatprep.subr.bf16.mxu0 0
        %1170 = vmatpush1.bf16.msra.mxu0 0
        %1171 = vmatprep.mubr.bf16.mxu0 0
        %1172 = vmatmul.mubr.bf16.gmra.mrb[0].mxu0 %v1137
        %v1173 = vpop.f32.mrb[0].mxu0
        %v1174 = vadd.f32 %v1117, %v1173
        %v1175 = vpop.f32.mrb[0].mxu0
        %v1176 = vpop.f32.mrb[0].mxu0
        %v1177 = vadd.f32 %v1117, %v1176
        %v1178 = vpop.f32.mrb[0].mxu0
        %1179 = vdwg.mxu0
        %1180 = vst.msk [vmem:[%s364] sm:$0xff] %vm391, %v1174
        %1181 = vst.msk [vmem:[%s364 + $0x8] sm:$0xff] %vm391, %v1177
        %s1182 = sand.u32 %s187, 1
        %s1183 = scalar_lea.sflag [#allocation6], %s1182
        %s1184 = sand.u32 %s187, 1
        %s1185 = smul.addr %s1184, 16
        %s1186 = scalar_lea.vmem [#allocation15], %s1185
        // Predicated region
        $region80: #{tpu_custom_call.1} parent=47 // pred_check
          %p1187 = pneg %p197
        $region81: #{tpu_custom_call.1} parent=47 // pred_check_branch
          %1189 = sbr.rel (%p1187) target = $region83
        $region82: #{tpu_custom_call.1} parent=47 // pred_region
          %s1190 = smul.u32 2, %s27
          %s1192 = ssub.s32 256, 256
          %1193 = vsyncadd %s1183, %s1192
          %s1194 = smul.addr %s1190, 128
          %s1195 = scalar_lea.hbm %s7, %s1194
          %s1196 = sshll.u32 %s1186, 4
          %s1197 = int_to_ptr.vmem [resolvable:$true] %s1196
          %1202 = dma.vmem_to_hbm [thread:$0]  %s1197, 256, %s1195, %s1183, 128, 128, 8
        $region83: #{tpu_custom_call.1} parent=47 // pred_fallthru
          _
      $region48: #{tpu_custom_call.1} parent=5 // pred_fallthru
        _
      %p1203 = scmp.le.s32.totalorder 2, %s22
      // Predicated region
      $region84: #{tpu_custom_call.1} parent=5 // pred_check
        %p1204 = pneg %p1203
      $region85: #{tpu_custom_call.1} parent=5 // pred_check_branch
        %1206 = sbr.rel (%p1204) target = $region87
      $region86: #{tpu_custom_call.1} parent=5 // pred_region
        %s1207 = ssub.s32 %s22, 2
        // Predicated region
        $region88: #{tpu_custom_call.1} parent=86 // pred_check
          %p1208 = pneg %p203
        $region89: #{tpu_custom_call.1} parent=86 // pred_check_branch
          %1210 = sbr.rel (%p1208) target = $region91
        $region90: #{tpu_custom_call.1} parent=86 // pred_region
          %s1211 = sand.u32 %s188, 1
          %s1212 = scalar_lea.sflag [#allocation6], %s1211
          %s1213 = sand.u32 %s188, 1
          %s1214 = smul.addr %s1213, 16
          %s1215 = scalar_lea.vmem [#allocation15], %s1214
          %1216 = dma.done %s1212, 256
        $region91: #{tpu_custom_call.1} parent=86 // pred_fallthru
          _
      $region87: #{tpu_custom_call.1} parent=5 // pred_fallthru
        _
    $region6: #{tpu_custom_call.1} parent=1 // loop_footer
      %s26 = sadd.s32 1, %s22
    $region7: #{tpu_custom_call.1} parent=1 // loop_footer_branch
      %21 = sbr.rel target = $region3
    $region8: #{tpu_custom_call.1} parent=1 // loop_exit
      _
    %1217 = vsyncpa [#allocation5], 1
    %s1218 = scalar_lea.sflag [#allocation5], 1
    %1219 = vsyncpa %s1218, 1
    %1220 = vsyncpa [#allocation9], 1
    %1221 = vsyncpa [#allocation6], 1
    %s1222 = scalar_lea.sflag [#allocation6], 1
    %1223 = vsyncpa %s1222, 1
    %1224 = vsyncpa [#allocation7], 1
    %s1225 = scalar_lea.sflag [#allocation7], 1
    %1226 = vsyncpa %s1225, 1
    %1227 = vsyncpa [#allocation13], 1

// kernel: tpu_custom_call.1
$region0: #{tpu_custom_call.1}
  #allocation0 [shape = 'u32[]', space=smem, size = 0x4, offset = 0x4, fixed_abs, tag = 'smem constant byte address 0x4 - core index']
  #allocation1 [shape = 'u32[144,128]{1,0:T(1,128)}', space=vmem, size = 0x12000, scoped, tag = 'internal scratch']
  #allocation2 [shape = 'bf16[2,8,96]{2,1,0:T(8,128)(2,1)}', space=vmem, size = 0x1000, scoped, tag = 'scratch operand']
  #allocation3 [shape = 'bf16[2,8,32]{2,1,0:T(8,128)(2,1)}', space=vmem, size = 0x1000, scoped, tag = 'scratch operand']
  %s0 = inlined_call_operand.hbm [shape: bf16[4,8,32], index: 0, kind: input, shape index: {}]
  %s1 = inlined_call_operand.hbm [shape: bf16[32,96], index: 1, kind: input, shape index: {}]
  %s2 = inlined_call_operand.hbm [shape: bf16[32,32], index: 2, kind: input, shape index: {}]
  %s3 = inlined_call_operand.vmem [shape: f32[1,32], index: 3, kind: input, shape index: {}]
  %s4 = inlined_call_operand.vmem [shape: f32[4,4], index: 4, kind: input, shape index: {}]
  %s5 = inlined_call_operand.vmem [shape: f32[4,4], index: 5, kind: input, shape index: {}]
  %s6 = inlined_call_operand.vmem [shape: f32[4], index: 6, kind: input, shape index: {}]
  %s7 = inlined_call_operand.hbm [shape: f32[4,8,32], index: 7, kind: output, shape index: {}]
  %s8 = sld [smem:[#allocation0]]
  $region92: #{tpu_custom_call.1} parent=0
    _
  %s10 = ssub.s32 1, %s8
  %s11 = scalar_select 0, %s10, %s8
  $region1: #{tpu_custom_call.1} parent=0
    #allocation4 [shape = 'u8[8192]{0}', space=vmem, size = 0x2000, scoped, tag = 'input window, operand 0']
    #allocation5 [shape = 's32[2]{0}', space=sflag, size = 0x8, scoped, tag = 'scoped memory for tpu_custom_call.1']
    #allocation6 [shape = 's32[2]{0}', space=sflag, size = 0x8, scoped, tag = 'scoped memory for tpu_custom_call.1']
    #allocation7 [shape = 's32[2]{0}', space=sflag, size = 0x8, scoped, tag = 'scoped memory for tpu_custom_call.1']
    #allocation8 [shape = 'u8[8192]{0}', space=vmem, size = 0x2000, scoped, tag = 'input window, operand 1, single buffered']
    #allocation9 [shape = 's32[1]{0}', space=sflag, size = 0x4, scoped, tag = 'scoped memory for tpu_custom_call.1']
    #allocation10 [shape = 'u8[8192]{0}', space=vmem, size = 0x2000, scoped, tag = 'input window, operand 2, single buffered']
    #allocation11 [shape = 'u8[2048]{0}', space=smem, size = 0x800, scoped, tag = 'input window, operand 4, single buffered']
    #allocation12 [shape = 'u8[2048]{0}', space=smem, size = 0x800, scoped, tag = 'input window, operand 5, single buffered']
    #allocation13 [shape = 's32[1]{0}', space=sflag, size = 0x4, scoped, tag = 'scoped memory for tpu_custom_call.1']
    #allocation14 [shape = 'u8[512]{0}', space=smem, size = 0x200, scoped, tag = 'input window, operand 6, single buffered']
    #allocation15 [shape = 'u8[16384]{0}', space=vmem, size = 0x4000, scoped, tag = 'output window, operand 0']
    %12 = vsyncpa [#allocation5], 0
    %s13 = scalar_lea.sflag [#allocation5], 1
    %14 = vsyncpa %s13, 0
    %15 = vsyncpa [#allocation9], 0
    %16 = vsyncpa [#allocation7], 0
    %17 = vsyncpa [#allocation13], 0
    %18 = vsyncpa [#allocation6], 0
    %s19 = scalar_lea.sflag [#allocation6], 1
    %20 = vsyncpa %s19, 0
    loop: start=0, step=1, limit=4
    $region2: #{tpu_custom_call.1} parent=1 // loop_pre_header
      _
    $region3: #{tpu_custom_call.1} parent=1 // loop_header
      %s22 = sphi 0, %s26
      %p23 = scmp.ge.s32.totalorder %s22, 4
      %s32 = sphi 0, %s34
      %s35 = sphi 0, %s32
      %s36 = sphi 0, %s35
      %s52 = sphi 0, %s36
      %s56 = sphi 0, %s56
      %s58 = sphi 0, %s56
      %s59 = sphi 0, %s58
      %s73 = sphi 0, %s59
      %s77 = sphi 0, %s77
      %s79 = sphi 0, %s77
      %s80 = sphi 0, %s79
      %s94 = sphi 0, %s80
      %s98 = sphi 0, %s98
      %s100 = sphi 0, %s98
      %s101 = sphi 0, %s100
      %s115 = sphi 0, %s101
      %s119 = sphi 0, %s119
      %s121 = sphi 0, %s119
      %s122 = sphi 0, %s121
      %s136 = sphi 0, %s122
      %s140 = sphi 0, %s140
      %s142 = sphi 0, %s140
      %s143 = sphi 0, %s142
      %s157 = sphi 0, %s143
      %s161 = sphi 0, %s161
      %s163 = sphi 0, %s161
      %s164 = sphi 0, %s163
      %s178 = sphi 0, %s164
      %s184 = sphi 0, %s186
      %s187 = sphi 0, %s184
      %s188 = sphi 0, %s187
      %s204 = sphi 0, %s188
    $region4: #{tpu_custom_call.1} parent=1 // loop_header_branch
      %25 = sbr.rel (%p23) target = $region8
    $region5: #{tpu_custom_call.1} parent=1 // loop_body
      %s27 = ssub.s32 %s22, 1
      %s28 = ssub.s32 %s22, 2
      %s29 = sadd.s32 %s22, 1
      %s30 = ssub.s32 %s22, %s29
      %p31 = scmp.eq.s32.totalorder %s30, 0
      %s33 = sadd.s32 %s32, 1
      %s34 = scalar_select %p31, %s32, %s33
      %p37 = pneg %p31
      %p38 = scmp.eq.s32.totalorder %s22, 1
      %p39 = por %p37, %p38
      %p40 = scmp.ne.s32.totalorder %s32, %s35
      %p41 = scmp.eq.s32.totalorder %s22, 0
      %p42 = por %p40, %p41
      %p43 = scmp.ne.s32.totalorder %s32, %s35
      %p44 = scmp.eq.s32.totalorder %s27, 1
      %p45 = por %p43, %p44
      %p46 = scmp.ne.s32.totalorder %s35, %s36
      %p47 = scmp.eq.s32.totalorder %s27, 0
      %p48 = por %p46, %p47
      %p49 = scmp.ne.s32.totalorder %s35, %s36
      %p50 = scmp.eq.s32.totalorder %s28, 1
      %p51 = por %p49, %p50
      %p53 = scmp.ne.s32.totalorder %s36, %s52
      %p54 = scmp.eq.s32.totalorder %s28, 0
      %p55 = por %p53, %p54
      %s57 = sadd.s32 %s56, 1
      %p60 = scmp.eq.s32.totalorder %s22, 1
      %p61 = scmp.ne.s32.totalorder %s56, %s58
      %p62 = scmp.eq.s32.totalorder %s22, 0
      %p63 = por %p61, %p62
      %p64 = scmp.ne.s32.totalorder %s56, %s58
      %p65 = scmp.eq.s32.totalorder %s27, 1
      %p66 = por %p64, %p65
      %p67 = scmp.ne.s32.totalorder %s58, %s59
      %p68 = scmp.eq.s32.totalorder %s27, 0
      %p69 = por %p67, %p68
      %p70 = scmp.ne.s32.totalorder %s58, %s59
      %p71 = scmp.eq.s32.totalorder %s28, 1
      %p72 = por %p70, %p71
      %p74 = scmp.ne.s32.totalorder %s59, %s73
      %p75 = scmp.eq.s32.totalorder %s28, 0
      %p76 = por %p74, %p75
      %s78 = sadd.s32 %s77, 1
      %p81 = scmp.eq.s32.totalorder %s22, 1
      %p82 = scmp.ne.s32.totalorder %s77, %s79
      %p83 = scmp.eq.s32.totalorder %s22, 0
      %p84 = por %p82, %p83
      %p85 = scmp.ne.s32.totalorder %s77, %s79
      %p86 = scmp.eq.s32.totalorder %s27, 1
      %p87 = por %p85, %p86
      %p88 = scmp.ne.s32.totalorder %s79, %s80
      %p89 = scmp.eq.s32.totalorder %s27, 0
      %p90 = por %p88, %p89
      %p91 = scmp.ne.s32.totalorder %s79, %s80
      %p92 = scmp.eq.s32.totalorder %s28, 1
      %p93 = por %p91, %p92
      %p95 = scmp.ne.s32.totalorder %s80, %s94
      %p96 = scmp.eq.s32.totalorder %s28, 0
      %p97 = por %p95, %p96
      %s99 = sadd.s32 %s98, 1
      %p102 = scmp.eq.s32.totalorder %s22, 1
      %p103 = scmp.ne.s32.totalorder %s98, %s100
      %p104 = scmp.eq.s32.totalorder %s22, 0
      %p105 = por %p103, %p104
      %p106 = scmp.ne.s32.totalorder %s98, %s100
      %p107 = scmp.eq.s32.totalorder %s27, 1
      %p108 = por %p106, %p107
      %p109 = scmp.ne.s32.totalorder %s100, %s101
      %p110 = scmp.eq.s32.totalorder %s27, 0
      %p111 = por %p109, %p110
      %p112 = scmp.ne.s32.totalorder %s100, %s101
      %p113 = scmp.eq.s32.totalorder %s28, 1
      %p114 = por %p112, %p113
      %p116 = scmp.ne.s32.totalorder %s101, %s115
      %p117 = scmp.eq.s32.totalorder %s28, 0
      %p118 = por %p116, %p117
      %s120 = sadd.s32 %s119, 1
      %p123 = scmp.eq.s32.totalorder %s22, 1
      %p124 = scmp.ne.s32.totalorder %s119, %s121
      %p125 = scmp.eq.s32.totalorder %s22, 0
      %p126 = por %p124, %p125
      %p127 = scmp.ne.s32.totalorder %s119, %s121
      %p128 = scmp.eq.s32.totalorder %s27, 1
      %p129 = por %p127, %p128
      %p130 = scmp.ne.s32.totalorder %s121, %s122
      %p131 = scmp.eq.s32.totalorder %s27, 0
      %p132 = por %p130, %p131
      %p133 = scmp.ne.s32.totalorder %s121, %s122
      %p134 = scmp.eq.s32.totalorder %s28, 1
      %p135 = por %p133, %p134
      %p137 = scmp.ne.s32.totalorder %s122, %s136
      %p138 = scmp.eq.s32.totalorder %s28, 0
      %p139 = por %p137, %p138
      %s141 = sadd.s32 %s140, 1
      %p144 = scmp.eq.s32.totalorder %s22, 1
      %p145 = scmp.ne.s32.totalorder %s140, %s142
      %p146 = scmp.eq.s32.totalorder %s22, 0
      %p147 = por %p145, %p146
      %p148 = scmp.ne.s32.totalorder %s140, %s142
      %p149 = scmp.eq.s32.totalorder %s27, 1
      %p150 = por %p148, %p149
      %p151 = scmp.ne.s32.totalorder %s142, %s143
      %p152 = scmp.eq.s32.totalorder %s27, 0
      %p153 = por %p151, %p152
      %p154 = scmp.ne.s32.totalorder %s142, %s143
      %p155 = scmp.eq.s32.totalorder %s28, 1
      %p156 = por %p154, %p155
      %p158 = scmp.ne.s32.totalorder %s143, %s157
      %p159 = scmp.eq.s32.totalorder %s28, 0
      %p160 = por %p158, %p159
      %s162 = sadd.s32 %s161, 1
      %p165 = scmp.eq.s32.totalorder %s22, 1
      %p166 = scmp.ne.s32.totalorder %s161, %s163
      %p167 = scmp.eq.s32.totalorder %s22, 0
      %p168 = por %p166, %p167
      %p169 = scmp.ne.s32.totalorder %s161, %s163
      %p170 = scmp.eq.s32.totalorder %s27, 1
      %p171 = por %p169, %p170
      %p172 = scmp.ne.s32.totalorder %s163, %s164
      %p173 = scmp.eq.s32.totalorder %s27, 0
      %p174 = por %p172, %p173
      %p175 = scmp.ne.s32.totalorder %s163, %s164
      %p176 = scmp.eq.s32.totalorder %s28, 1
      %p177 = por %p175, %p176
      %p179 = scmp.ne.s32.totalorder %s164, %s178
      %p180 = scmp.eq.s32.totalorder %s28, 0
      %p181 = por %p179, %p180
      %s182 = ssub.s32 %s22, %s29
      %p183 = scmp.eq.s32.totalorder %s182, 0
      %s185 = sadd.s32 %s184, 1
      %s186 = scalar_select %p183, %s184, %s185
      %p189 = pneg %p183
      %p190 = scmp.eq.s32.totalorder %s22, 1
      %p191 = por %p189, %p190
      %p192 = scmp.ne.s32.totalorder %s184, %s187
      %p193 = scmp.eq.s32.totalorder %s22, 0
      %p194 = por %p192, %p193
      %p195 = scmp.ne.s32.totalorder %s184, %s187
      %p196 = scmp.eq.s32.totalorder %s27, 1
      %p197 = por %p195, %p196
      %p198 = scmp.ne.s32.totalorder %s187, %s188
      %p199 = scmp.eq.s32.totalorder %s27, 0
      %p200 = por %p198, %p199
      %p201 = scmp.ne.s32.totalorder %s187, %s188
      %p202 = scmp.eq.s32.totalorder %s28, 1
      %p203 = por %p201, %p202
      %p205 = scmp.ne.s32.totalorder %s188, %s204
      %p206 = scmp.eq.s32.totalorder %s28, 0
      %p207 = por %p205, %p206
      %p208 = scmp.le.s32.totalorder 1, %s22
      %p209 = scmp.lt.s32.totalorder %s22, 3
      %p210 = pnand %p208, %p209
      %p211 = pneg %p210
      // Predicated region
      $region9: #{tpu_custom_call.1} parent=5 // pred_check
        _
      $region10: #{tpu_custom_call.1} parent=5 // pred_check_branch
        %213 = sbr.rel (%p210) target = $region12
      $region11: #{tpu_custom_call.1} parent=5 // pred_region
        %s214 = ssub.s32 %s22, 1
        // Predicated region
        $region13: #{tpu_custom_call.1} parent=11 // pred_check
          %p215 = pneg %p69
        $region14: #{tpu_custom_call.1} parent=11 // pred_check_branch
          %217 = sbr.rel (%p215) target = $region16
        $region15: #{tpu_custom_call.1} parent=11 // pred_region
          %s219 = ssub.s32 256, 256
          %220 = vsyncadd [#allocation9], %s219
          %s221 = sshll.u32 [#allocation8], 4
          %s222 = int_to_ptr.vmem [resolvable:$true] %s221
          %227 = dma.hbm_to_vmem [thread:$0]  %s1, 256, %s222, [#allocation9], 64, 64, 4
        $region16: #{tpu_custom_call.1} parent=11 // pred_fallthru
          _
        // Predicated region
        $region17: #{tpu_custom_call.1} parent=11 // pred_check
          %p228 = pneg %p90
        $region18: #{tpu_custom_call.1} parent=11 // pred_check_branch
          %230 = sbr.rel (%p228) target = $region20
        $region19: #{tpu_custom_call.1} parent=11 // pred_region
          %s232 = ssub.s32 256, 256
          %233 = vsyncadd [#allocation9], %s232
          %s234 = sshll.u32 [#allocation10], 4
          %s235 = int_to_ptr.vmem [resolvable:$true] %s234
          %240 = dma.hbm_to_vmem [thread:$0]  %s2, 256, %s235, [#allocation9], 64, 64, 4
        $region20: #{tpu_custom_call.1} parent=11 // pred_fallthru
          _
        // Predicated region
        $region21: #{tpu_custom_call.1} parent=11 // pred_check
          %p241 = pneg %p111
        $region22: #{tpu_custom_call.1} parent=11 // pred_check_branch
          %243 = sbr.rel (%p241) target = $region24
        $region23: #{tpu_custom_call.1} parent=11 // pred_region
          _
        $region24: #{tpu_custom_call.1} parent=11 // pred_fallthru
          _
        // Predicated region
        $region25: #{tpu_custom_call.1} parent=11 // pred_check
          %p244 = pneg %p132
        $region26: #{tpu_custom_call.1} parent=11 // pred_check_branch
          %246 = sbr.rel (%p244) target = $region28
        $region27: #{tpu_custom_call.1} parent=11 // pred_region
          %s248 = ssub.s32 64, 64
          %249 = vsyncadd [#allocation7], %s248
          %s251 = sshll.u32 %s4, 4
          %s252 = int_to_ptr.vmem [resolvable:$true] %s251
          %254 = dma.vmem_to_smem %s252, 64, [#allocation11], [#allocation7]
        $region28: #{tpu_custom_call.1} parent=11 // pred_fallthru
          _
        // Predicated region
        $region29: #{tpu_custom_call.1} parent=11 // pred_check
          %p255 = pneg %p153
        $region30: #{tpu_custom_call.1} parent=11 // pred_check_branch
          %257 = sbr.rel (%p255) target = $region32
        $region31: #{tpu_custom_call.1} parent=11 // pred_region
          %s259 = ssub.s32 64, 64
          %260 = vsyncadd [#allocation13], %s259
          %s262 = sshll.u32 %s5, 4
          %s263 = int_to_ptr.vmem [resolvable:$true] %s262
          %265 = dma.vmem_to_smem %s263, 64, [#allocation12], [#allocation13]
        $region32: #{tpu_custom_call.1} parent=11 // pred_fallthru
          _
        // Predicated region
        $region33: #{tpu_custom_call.1} parent=11 // pred_check
          %p266 = pneg %p174
        $region34: #{tpu_custom_call.1} parent=11 // pred_check_branch
          %268 = sbr.rel (%p266) target = $region36
        $region35: #{tpu_custom_call.1} parent=11 // pred_region
          %s270 = ssub.s32 16, 16
          %271 = vsyncadd [#allocation13], %s270
          %s273 = sshll.u32 %s6, 4
          %s274 = int_to_ptr.vmem [resolvable:$true] %s273
          %276 = dma.vmem_to_smem %s274, 16, [#allocation14], [#allocation13]
        $region36: #{tpu_custom_call.1} parent=11 // pred_fallthru
          _
      $region12: #{tpu_custom_call.1} parent=5 // pred_fallthru
        _
      %p277 = scmp.lt.s32.totalorder %s22, 2
      // Predicated region
      $region37: #{tpu_custom_call.1} parent=5 // pred_check
        %p278 = pneg %p277
      $region38: #{tpu_custom_call.1} parent=5 // pred_check_branch
        %280 = sbr.rel (%p278) target = $region40
      $region39: #{tpu_custom_call.1} parent=5 // pred_region
        // Predicated region
        $region41: #{tpu_custom_call.1} parent=39 // pred_check
          %p281 = pneg %p42
        $region42: #{tpu_custom_call.1} parent=39 // pred_check_branch
          %283 = sbr.rel (%p281) target = $region44
        $region43: #{tpu_custom_call.1} parent=39 // pred_region
          %s284 = sand.u32 %s32, 1
          %s285 = scalar_lea.sflag [#allocation5], %s284
          %s286 = sand.u32 %s32, 1
          %s287 = smul.addr %s286, 8
          %s288 = scalar_lea.vmem [#allocation4], %s287
          %s289 = smul.u32 2, %s22
          %s291 = ssub.s32 128, 128
          %292 = vsyncadd %s285, %s291
          %s293 = smul.addr %s289, 64
          %s294 = scalar_lea.hbm %s0, %s293
          %s295 = sshll.u32 %s288, 4
          %s296 = int_to_ptr.vmem [resolvable:$true] %s295
          %301 = dma.hbm_to_vmem [thread:$0]  %s294, 128, %s296, %s285, 64, 64, 4
        $region44: #{tpu_custom_call.1} parent=39 // pred_fallthru
          _
      $region40: #{tpu_custom_call.1} parent=5 // pred_fallthru
        _
      %p302 = scmp.le.s32.totalorder 1, %s22
      %p303 = scmp.lt.s32.totalorder %s22, 3
      %p304 = pnand %p302, %p303
      %p305 = pneg %p304
      // Predicated region
      $region45: #{tpu_custom_call.1} parent=5 // pred_check
        _
      $region46: #{tpu_custom_call.1} parent=5 // pred_check_branch
        %307 = sbr.rel (%p304) target = $region48
      $region47: #{tpu_custom_call.1} parent=5 // pred_region
        %s308 = ssub.s32 %s22, 1
        %s309 = sand.u32 %s35, 1
        %s310 = scalar_lea.sflag [#allocation5], %s309
        %s311 = sand.u32 %s35, 1
        %s312 = smul.addr %s311, 8
        %s313 = scalar_lea.vmem [#allocation4], %s312
        // Predicated region
        $region49: #{tpu_custom_call.1} parent=47 // pred_check
          %p314 = pneg %p48
        $region50: #{tpu_custom_call.1} parent=47 // pred_check_branch
          %316 = sbr.rel (%p314) target = $region52
        $region51: #{tpu_custom_call.1} parent=47 // pred_region
          %317 = dma.done %s310, 128
        $region52: #{tpu_custom_call.1} parent=47 // pred_fallthru
          _
        // Predicated region
        $region53: #{tpu_custom_call.1} parent=47 // pred_check
          %p318 = pneg %p69
        $region54: #{tpu_custom_call.1} parent=47 // pred_check_branch
          %320 = sbr.rel (%p318) target = $region56
        $region55: #{tpu_custom_call.1} parent=47 // pred_region
          %321 = dma.done [#allocation9], 256
        $region56: #{tpu_custom_call.1} parent=47 // pred_fallthru
          _
        // Predicated region
        $region57: #{tpu_custom_call.1} parent=47 // pred_check
          %p322 = pneg %p90
        $region58: #{tpu_custom_call.1} parent=47 // pred_check_branch
          %324 = sbr.rel (%p322) target = $region60
        $region59: #{tpu_custom_call.1} parent=47 // pred_region
          %325 = dma.done [#allocation9], 256
        $region60: #{tpu_custom_call.1} parent=47 // pred_fallthru
          _
        // Predicated region
        $region61: #{tpu_custom_call.1} parent=47 // pred_check
          %p326 = pneg %p132
        $region62: #{tpu_custom_call.1} parent=47 // pred_check_branch
          %328 = sbr.rel (%p326) target = $region64
        $region63: #{tpu_custom_call.1} parent=47 // pred_region
          %329 = dma.done [#allocation7], 64
        $region64: #{tpu_custom_call.1} parent=47 // pred_fallthru
          _
        // Predicated region
        $region65: #{tpu_custom_call.1} parent=47 // pred_check
          %p330 = pneg %p153
        $region66: #{tpu_custom_call.1} parent=47 // pred_check_branch
          %332 = sbr.rel (%p330) target = $region68
        $region67: #{tpu_custom_call.1} parent=47 // pred_region
          %333 = dma.done [#allocation13], 64
        $region68: #{tpu_custom_call.1} parent=47 // pred_fallthru
          _
        // Predicated region
        $region69: #{tpu_custom_call.1} parent=47 // pred_check
          %p334 = pneg %p174
        $region70: #{tpu_custom_call.1} parent=47 // pred_check_branch
          %336 = sbr.rel (%p334) target = $region72
        $region71: #{tpu_custom_call.1} parent=47 // pred_region
          %337 = dma.done [#allocation13], 16
        $region72: #{tpu_custom_call.1} parent=47 // pred_fallthru
          _
        %338 = sfence
        %s339 = sand.u32 %s35, 1
        %s340 = scalar_lea.sflag [#allocation5], %s339
        %s341 = sand.u32 %s35, 1
        %s342 = smul.addr %s341, 8
        %s343 = scalar_lea.vmem [#allocation4], %s342
        %p344 = pneg %p48
        %p345 = pneg %p45
        %p346 = pneg %p69
        %p347 = pneg %p66
        %p348 = pneg %p90
        %p349 = pneg %p87
        %p350 = pneg %p111
        %p351 = pneg %p108
        %p352 = pneg %p132
        %p353 = pneg %p129
        %p354 = pneg %p153
        %p355 = pneg %p150
        %p356 = pneg %p174
        %p357 = pneg %p171
        %p358 = pneg %p200
        %p359 = pneg %p197
        %s360 = sand.u32 %s187, 1
        %s361 = scalar_lea.sflag [#allocation6], %s360
        %s362 = sand.u32 %s187, 1
        %s363 = smul.addr %s362, 16
        %s364 = scalar_lea.vmem [#allocation15], %s363
        %s365 = smul.u32 2, %s27
        %s366 = smul.u32 2, %s27
        %v368 = vld [vmem:[%s313] sm:$0xf]
        %v369 = vld [vmem:[%s313 + $0x4] sm:$0xf]
        %v370 = vld [vmem:[#allocation8] sm:$0xf]
        %v371 = vld [vmem:[#allocation8 + $0x4] sm:$0xf]
        %v372 = vld [vmem:[#allocation8 + $0x8] sm:$0xf]
        %v373 = vld [vmem:[#allocation8 + $0xc] sm:$0xf]
        %v376 = vunpack.c.l.b16 %v368
        %v377 = vunpack.c.l.b16 %v369
        %v378 = vpack.c.b16 %v377, %v376
        %v383 = vunpack.c.l.b16 %v370
        %v384 = vunpack.c.l.b16 %v371
        %v385 = vunpack.c.l.b16 %v372
        %v386 = vunpack.c.l.b16 %v373
        %v387 = vpack.c.b16 %v384, %v383
        %v388 = vpack.c.b16 %v386, %v385
        %vm391 = vcmask 261120
        %v393 = vsel %vm391, %v378, 0
        %395 = vmatprep.subr.bf16.mxu0 0
        %396 = vmatpush1.bf16.msra.mxu0 %v387
        %397 = vmatprep.subr.bf16.mxu0 0
        %398 = vmatpush1.bf16.msra.mxu0 %v388
        %399 = vmatprep.subr.bf16.mxu0 0
        %400 = vmatpush1.bf16.msra.mxu0 0
        %401 = vmatprep.subr.bf16.mxu0 0
        %402 = vmatpush1.bf16.msra.mxu0 0
        %403 = vmatprep.subr.bf16.mxu0 0
        %404 = vmatpush1.bf16.msra.mxu0 0
        %405 = vmatprep.subr.bf16.mxu0 0
        %406 = vmatpush1.bf16.msra.mxu0 0
        %407 = vmatprep.subr.bf16.mxu0 0
        %408 = vmatpush1.bf16.msra.mxu0 0
        %409 = vmatprep.subr.bf16.mxu0 0
        %410 = vmatpush1.bf16.msra.mxu0 0
        %411 = vmatprep.subr.bf16.mxu0 0
        %412 = vmatpush1.bf16.msra.mxu0 0
        %413 = vmatprep.subr.bf16.mxu0 0
        %414 = vmatpush1.bf16.msra.mxu0 0
        %415 = vmatprep.subr.bf16.mxu0 0
        %416 = vmatpush1.bf16.msra.mxu0 0
        %417 = vmatprep.subr.bf16.mxu0 0
        %418 = vmatpush1.bf16.msra.mxu0 0
        %419 = vmatprep.subr.bf16.mxu0 0
        %420 = vmatpush1.bf16.msra.mxu0 0
        %421 = vmatprep.subr.bf16.mxu0 0
        %422 = vmatpush1.bf16.msra.mxu0 0
        %423 = vmatprep.subr.bf16.mxu0 0
        %424 = vmatpush1.bf16.msra.mxu0 0
        %425 = vmatprep.subr.bf16.mxu0 0
        %426 = vmatpush1.bf16.msra.mxu0 0
        %427 = vmatprep.mubr.bf16.mxu0 0
        %428 = vmatmul.mubr.bf16.gmra.mrb[0].mxu0 %v393
        %v429 = vpop.f32.mrb[0].mxu0
        %v430 = vadd.f32 0.0, %v429
        %v431 = vpop.f32.mrb[0].mxu0
        %v432 = vpop.f32.mrb[0].mxu0
        %v433 = vadd.f32 0.0, %v432
        %v434 = vpop.f32.mrb[0].mxu0
        %435 = vdwg.mxu0
        %v436 = vpack.c.bf16 %v430, %v430
        %v437 = vpack.c.bf16 %v433, %v433
        %vm438 = vcmask 781312
        %439 = vst.msk [vmem:[#allocation2] sm:$0xf] %vm438, %v436
        %440 = vst.msk [vmem:[#allocation2 + $0x4] sm:$0xf] %vm438, %v437
        %s441 = sld [smem:[#allocation11]]
        %s442 = sld [smem:[#allocation11 + $0x1]]
        %s443 = sld [smem:[#allocation11 + $0x2]]
        %s444 = sld [smem:[#allocation11 + $0x3]]
        %s445 = sld [smem:[#allocation11 + $0x80]]
        %s446 = sld [smem:[#allocation11 + $0x81]]
        %s447 = sld [smem:[#allocation11 + $0x82]]
        %s448 = sld [smem:[#allocation11 + $0x83]]
        %s449 = sld [smem:[#allocation11 + $0x100]]
        %s450 = sld [smem:[#allocation11 + $0x101]]
        %s451 = sld [smem:[#allocation11 + $0x102]]
        %s452 = sld [smem:[#allocation11 + $0x103]]
        %s453 = sld [smem:[#allocation11 + $0x180]]
        %s454 = sld [smem:[#allocation11 + $0x181]]
        %s455 = sld [smem:[#allocation11 + $0x182]]
        %s456 = sld [smem:[#allocation11 + $0x183]]
        %s457 = sld [smem:[#allocation12]]
        %s458 = sld [smem:[#allocation12 + $0x1]]
        %s459 = sld [smem:[#allocation12 + $0x2]]
        %s460 = sld [smem:[#allocation12 + $0x3]]
        %s461 = sld [smem:[#allocation12 + $0x80]]
        %s462 = sld [smem:[#allocation12 + $0x81]]
        %s463 = sld [smem:[#allocation12 + $0x82]]
        %s464 = sld [smem:[#allocation12 + $0x83]]
        %s465 = sld [smem:[#allocation12 + $0x100]]
        %s466 = sld [smem:[#allocation12 + $0x101]]
        %s467 = sld [smem:[#allocation12 + $0x102]]
        %s468 = sld [smem:[#allocation12 + $0x103]]
        %s469 = sld [smem:[#allocation12 + $0x180]]
        %s470 = sld [smem:[#allocation12 + $0x181]]
        %s471 = sld [smem:[#allocation12 + $0x182]]
        %s472 = sld [smem:[#allocation12 + $0x183]]
        %s473 = sld [smem:[#allocation14]]
        %s474 = sld [smem:[#allocation14 + $0x1]]
        %s475 = sld [smem:[#allocation14 + $0x2]]
        %s476 = sld [smem:[#allocation14 + $0x3]]
        loop: start=0, step=1, limit=2
        $region73: #{tpu_custom_call.1} parent=47 // loop_pre_header
          _
        $region74: #{tpu_custom_call.1} parent=47 // loop_header
          %s478 = sphi 0, %s482
          %p479 = scmp.ge.s32.totalorder %s478, 2
        $region75: #{tpu_custom_call.1} parent=47 // loop_header_branch
          %481 = sbr.rel (%p479) target = $region79
        $region76: #{tpu_custom_call.1} parent=47 // loop_body
          %s483 = smul.addr %s478, 4
          %s484 = scalar_lea.vmem [#allocation2], %s483
          %v485 = vld [vmem:[%s484] sm:$0xf]
          %v487 = vunpack.c.l.b16 %v485
          %v488 = vpack.c.b16 %v487, %v487
          %489 = vrot.lane.b32.xlu0 %v488, 96
          %v490 = vpop.permute.xlu0 %489
          %vm491 = vcmask 64512
          %v493 = vsel %vm491, %v485, 0
          %v496 = vsel %vm491, %v490, 0
          %498 = vmatprep.subr.bf16.mxu0 0
          %499 = vmatpush1.bf16.xpose.msra.mxu0 %v496
          %500 = vmatprep.subr.bf16.mxu0 0
          %501 = vmatpush1.bf16.xpose.msra.mxu0 0
          %502 = vmatprep.subr.bf16.mxu0 0
          %503 = vmatpush1.bf16.xpose.msra.mxu0 0
          %504 = vmatprep.subr.bf16.mxu0 0
          %505 = vmatpush1.bf16.xpose.msra.mxu0 0
          %506 = vmatprep.subr.bf16.mxu0 0
          %507 = vmatpush1.bf16.xpose.msra.mxu0 0
          %508 = vmatprep.subr.bf16.mxu0 0
          %509 = vmatpush1.bf16.xpose.msra.mxu0 0
          %510 = vmatprep.subr.bf16.mxu0 0
          %511 = vmatpush1.bf16.xpose.msra.mxu0 0
          %512 = vmatprep.subr.bf16.mxu0 0
          %513 = vmatpush1.bf16.xpose.msra.mxu0 0
          %514 = vmatprep.subr.bf16.mxu0 0
          %515 = vmatpush1.bf16.xpose.msra.mxu0 0
          %516 = vmatprep.subr.bf16.mxu0 0
          %517 = vmatpush1.bf16.xpose.msra.mxu0 0
          %518 = vmatprep.subr.bf16.mxu0 0
          %519 = vmatpush1.bf16.xpose.msra.mxu0 0
          %520 = vmatprep.subr.bf16.mxu0 0
          %521 = vmatpush1.bf16.xpose.msra.mxu0 0
          %522 = vmatprep.subr.bf16.mxu0 0
          %523 = vmatpush1.bf16.xpose.msra.mxu0 0
          %524 = vmatprep.subr.bf16.mxu0 0
          %525 = vmatpush1.bf16.xpose.msra.mxu0 0
          %526 = vmatprep.subr.bf16.mxu0 0
          %527 = vmatpush1.bf16.xpose.msra.mxu0 0
          %528 = vmatprep.subr.bf16.mxu0 0
          %529 = vmatpush1.bf16.xpose.msra.mxu0 0
          %530 = vmatprep.mubr.bf16.mxu0 0
          %531 = vmatmul.mubr.bf16.gmra.mrb[0].mxu0 %v493
          %v532 = vpop.f32.mrb[0].mxu0
          %v533 = vadd.f32 0.0, %v532
          %v534 = vpop.f32.mrb[0].mxu0
          %v535 = vpop.f32.mrb[0].mxu0
          %v536 = vpop.f32.mrb[0].mxu0
          %537 = vdwg.mxu0
          %538 = vrot.lane.b32.xlu0 %v488, 120
          %v539 = vpop.permute.xlu0 %538
          %540 = vrot.lane.b32.xlu0 %v488, 88
          %v541 = vpop.permute.xlu0 %540
          %v543 = vsel %vm491, %v539, 0
          %v546 = vsel %vm491, %v541, 0
          %548 = vmatprep.subr.bf16.mxu0 0
          %549 = vmatpush1.bf16.xpose.msra.mxu0 %v546
          %550 = vmatprep.subr.bf16.mxu0 0
          %551 = vmatpush1.bf16.xpose.msra.mxu0 0
          %552 = vmatprep.subr.bf16.mxu0 0
          %553 = vmatpush1.bf16.xpose.msra.mxu0 0
          %554 = vmatprep.subr.bf16.mxu0 0
          %555 = vmatpush1.bf16.xpose.msra.mxu0 0
          %556 = vmatprep.subr.bf16.mxu0 0
          %557 = vmatpush1.bf16.xpose.msra.mxu0 0
          %558 = vmatprep.subr.bf16.mxu0 0
          %559 = vmatpush1.bf16.xpose.msra.mxu0 0
          %560 = vmatprep.subr.bf16.mxu0 0
          %561 = vmatpush1.bf16.xpose.msra.mxu0 0
          %562 = vmatprep.subr.bf16.mxu0 0
          %563 = vmatpush1.bf16.xpose.msra.mxu0 0
          %564 = vmatprep.subr.bf16.mxu0 0
          %565 = vmatpush1.bf16.xpose.msra.mxu0 0
          %566 = vmatprep.subr.bf16.mxu0 0
          %567 = vmatpush1.bf16.xpose.msra.mxu0 0
          %568 = vmatprep.subr.bf16.mxu0 0
          %569 = vmatpush1.bf16.xpose.msra.mxu0 0
          %570 = vmatprep.subr.bf16.mxu0 0
          %571 = vmatpush1.bf16.xpose.msra.mxu0 0
          %572 = vmatprep.subr.bf16.mxu0 0
          %573 = vmatpush1.bf16.xpose.msra.mxu0 0
          %574 = vmatprep.subr.bf16.mxu0 0
          %575 = vmatpush1.bf16.xpose.msra.mxu0 0
          %576 = vmatprep.subr.bf16.mxu0 0
          %577 = vmatpush1.bf16.xpose.msra.mxu0 0
          %578 = vmatprep.subr.bf16.mxu0 0
          %579 = vmatpush1.bf16.xpose.msra.mxu0 0
          %580 = vmatprep.mubr.bf16.mxu0 0
          %581 = vmatmul.mubr.bf16.gmra.mrb[0].mxu0 %v543
          %v582 = vpop.f32.mrb[0].mxu0
          %v583 = vadd.f32 0.0, %v582
          %v584 = vpop.f32.mrb[0].mxu0
          %v585 = vpop.f32.mrb[0].mxu0
          %v586 = vpop.f32.mrb[0].mxu0
          %587 = vdwg.mxu0
          %588 = vrot.lane.b32.xlu0 %v488, 112
          %v589 = vpop.permute.xlu0 %588
          %590 = vrot.lane.b32.xlu0 %v488, 80
          %v591 = vpop.permute.xlu0 %590
          %v593 = vsel %vm491, %v589, 0
          %v596 = vsel %vm491, %v591, 0
          %598 = vmatprep.subr.bf16.mxu0 0
          %599 = vmatpush1.bf16.xpose.msra.mxu0 %v596
          %600 = vmatprep.subr.bf16.mxu0 0
          %601 = vmatpush1.bf16.xpose.msra.mxu0 0
          %602 = vmatprep.subr.bf16.mxu0 0
          %603 = vmatpush1.bf16.xpose.msra.mxu0 0
          %604 = vmatprep.subr.bf16.mxu0 0
          %605 = vmatpush1.bf16.xpose.msra.mxu0 0
          %606 = vmatprep.subr.bf16.mxu0 0
          %607 = vmatpush1.bf16.xpose.msra.mxu0 0
          %608 = vmatprep.subr.bf16.mxu0 0
          %609 = vmatpush1.bf16.xpose.msra.mxu0 0
          %610 = vmatprep.subr.bf16.mxu0 0
          %611 = vmatpush1.bf16.xpose.msra.mxu0 0
          %612 = vmatprep.subr.bf16.mxu0 0
          %613 = vmatpush1.bf16.xpose.msra.mxu0 0
          %614 = vmatprep.subr.bf16.mxu0 0
          %615 = vmatpush1.bf16.xpose.msra.mxu0 0
          %616 = vmatprep.subr.bf16.mxu0 0
          %617 = vmatpush1.bf16.xpose.msra.mxu0 0
          %618 = vmatprep.subr.bf16.mxu0 0
          %619 = vmatpush1.bf16.xpose.msra.mxu0 0
          %620 = vmatprep.subr.bf16.mxu0 0
          %621 = vmatpush1.bf16.xpose.msra.mxu0 0
          %622 = vmatprep.subr.bf16.mxu0 0
          %623 = vmatpush1.bf16.xpose.msra.mxu0 0
          %624 = vmatprep.subr.bf16.mxu0 0
          %625 = vmatpush1.bf16.xpose.msra.mxu0 0
          %626 = vmatprep.subr.bf16.mxu0 0
          %627 = vmatpush1.bf16.xpose.msra.mxu0 0
          %628 = vmatprep.subr.bf16.mxu0 0
          %629 = vmatpush1.bf16.xpose.msra.mxu0 0
          %630 = vmatprep.mubr.bf16.mxu0 0
          %631 = vmatmul.mubr.bf16.gmra.mrb[0].mxu0 %v593
          %v632 = vpop.f32.mrb[0].mxu0
          %v633 = vadd.f32 0.0, %v632
          %v634 = vpop.f32.mrb[0].mxu0
          %v635 = vpop.f32.mrb[0].mxu0
          %v636 = vpop.f32.mrb[0].mxu0
          %637 = vdwg.mxu0
          %638 = vrot.lane.b32.xlu0 %v488, 104
          %v639 = vpop.permute.xlu0 %638
          %640 = vrot.lane.b32.xlu0 %v488, 72
          %v641 = vpop.permute.xlu0 %640
          %v643 = vsel %vm491, %v639, 0
          %v646 = vsel %vm491, %v641, 0
          %648 = vmatprep.subr.bf16.mxu0 0
          %649 = vmatpush1.bf16.xpose.msra.mxu0 %v646
          %650 = vmatprep.subr.bf16.mxu0 0
          %651 = vmatpush1.bf16.xpose.msra.mxu0 0
          %652 = vmatprep.subr.bf16.mxu0 0
          %653 = vmatpush1.bf16.xpose.msra.mxu0 0
          %654 = vmatprep.subr.bf16.mxu0 0
          %655 = vmatpush1.bf16.xpose.msra.mxu0 0
          %656 = vmatprep.subr.bf16.mxu0 0
          %657 = vmatpush1.bf16.xpose.msra.mxu0 0
          %658 = vmatprep.subr.bf16.mxu0 0
          %659 = vmatpush1.bf16.xpose.msra.mxu0 0
          %660 = vmatprep.subr.bf16.mxu0 0
          %661 = vmatpush1.bf16.xpose.msra.mxu0 0
          %662 = vmatprep.subr.bf16.mxu0 0
          %663 = vmatpush1.bf16.xpose.msra.mxu0 0
          %664 = vmatprep.subr.bf16.mxu0 0
          %665 = vmatpush1.bf16.xpose.msra.mxu0 0
          %666 = vmatprep.subr.bf16.mxu0 0
          %667 = vmatpush1.bf16.xpose.msra.mxu0 0
          %668 = vmatprep.subr.bf16.mxu0 0
          %669 = vmatpush1.bf16.xpose.msra.mxu0 0
          %670 = vmatprep.subr.bf16.mxu0 0
          %671 = vmatpush1.bf16.xpose.msra.mxu0 0
          %672 = vmatprep.subr.bf16.mxu0 0
          %673 = vmatpush1.bf16.xpose.msra.mxu0 0
          %674 = vmatprep.subr.bf16.mxu0 0
          %675 = vmatpush1.bf16.xpose.msra.mxu0 0
          %676 = vmatprep.subr.bf16.mxu0 0
          %677 = vmatpush1.bf16.xpose.msra.mxu0 0
          %678 = vmatprep.subr.bf16.mxu0 0
          %679 = vmatpush1.bf16.xpose.msra.mxu0 0
          %680 = vmatprep.mubr.bf16.mxu0 0
          %681 = vmatmul.mubr.bf16.gmra.mrb[0].mxu0 %v643
          %v682 = vpop.f32.mrb[0].mxu0
          %v683 = vadd.f32 0.0, %v682
          %v684 = vpop.f32.mrb[0].mxu0
          %v685 = vpop.f32.mrb[0].mxu0
          %v686 = vpop.f32.mrb[0].mxu0
          %687 = vdwg.mxu0
          %v688 = vstv %s441
          %v689 = vmul.f32 %v688, %v533
          %v690 = vstv %s442
          %v691 = vmul.f32 %v690, %v583
          %v692 = vadd.f32 %v689, %v691
          %v693 = vstv %s443
          %v694 = vmul.f32 %v693, %v633
          %v695 = vadd.f32 %v692, %v694
          %v696 = vstv %s444
          %v697 = vmul.f32 %v696, %v683
          %v698 = vadd.f32 %v695, %v697
          %v699 = vstv %s445
          %v700 = vmul.f32 %v699, %v533
          %v701 = vstv %s446
          %v702 = vmul.f32 %v701, %v583
          %v703 = vadd.f32 %v700, %v702
          %v704 = vstv %s447
          %v705 = vmul.f32 %v704, %v633
          %v706 = vadd.f32 %v703, %v705
          %v707 = vstv %s448
          %v708 = vmul.f32 %v707, %v683
          %v709 = vadd.f32 %v706, %v708
          %v710 = vstv %s449
          %v711 = vmul.f32 %v710, %v533
          %v712 = vstv %s450
          %v713 = vmul.f32 %v712, %v583
          %v714 = vadd.f32 %v711, %v713
          %v715 = vstv %s451
          %v716 = vmul.f32 %v715, %v633
          %v717 = vadd.f32 %v714, %v716
          %v718 = vstv %s452
          %v719 = vmul.f32 %v718, %v683
          %v720 = vadd.f32 %v717, %v719
          %v721 = vstv %s453
          %v722 = vmul.f32 %v721, %v533
          %v723 = vstv %s454
          %v724 = vmul.f32 %v723, %v583
          %v725 = vadd.f32 %v722, %v724
          %v726 = vstv %s455
          %v727 = vmul.f32 %v726, %v633
          %v728 = vadd.f32 %v725, %v727
          %v729 = vstv %s456
          %v730 = vmul.f32 %v729, %v683
          %v731 = vadd.f32 %v728, %v730
          %v732 = vsel %vm491, %v698, -inf
          %733 = vmax.xlane.f32.xlu0 %v732
          %v734 = vpop.xlane.xlu0 %733
          %v735 = vsub.f32 %v698, %v734
          %v736 = vmul.f32 %v735, 1.442695
          %v737 = vpow.pop %v736
          %v738 = vsel %vm491, %v737, 0.0
          %739 = vadd.xlane.f32.xlu0 %v738
          %v740 = vpop.xlane.xlu0 %739
          %v741 = vrcp.pop %v740
          %v742 = vmul.f32 %v737, %v741
          %v743 = vsel %vm491, %v709, -inf
          %744 = vmax.xlane.f32.xlu0 %v743
          %v745 = vpop.xlane.xlu0 %744
          %v746 = vsub.f32 %v709, %v745
          %v747 = vmul.f32 %v746, 1.442695
          %v748 = vpow.pop %v747
          %v749 = vsel %vm491, %v748, 0.0
          %750 = vadd.xlane.f32.xlu0 %v749
          %v751 = vpop.xlane.xlu0 %750
          %v752 = vrcp.pop %v751
          %v753 = vmul.f32 %v748, %v752
          %v754 = vsel %vm491, %v720, -inf
          %755 = vmax.xlane.f32.xlu0 %v754
          %v756 = vpop.xlane.xlu0 %755
          %v757 = vsub.f32 %v720, %v756
          %v758 = vmul.f32 %v757, 1.442695
          %v759 = vpow.pop %v758
          %v760 = vsel %vm491, %v759, 0.0
          %761 = vadd.xlane.f32.xlu0 %v760
          %v762 = vpop.xlane.xlu0 %761
          %v763 = vrcp.pop %v762
          %v764 = vmul.f32 %v759, %v763
          %v765 = vsel %vm491, %v731, -inf
          %766 = vmax.xlane.f32.xlu0 %v765
          %v767 = vpop.xlane.xlu0 %766
          %v768 = vsub.f32 %v731, %v767
          %v769 = vmul.f32 %v768, 1.442695
          %v770 = vpow.pop %v769
          %v771 = vsel %vm491, %v770, 0.0
          %772 = vadd.xlane.f32.xlu0 %v771
          %v773 = vpop.xlane.xlu0 %772
          %v774 = vrcp.pop %v773
          %v775 = vmul.f32 %v770, %v774
          %v776 = vstv %s457
          %v777 = vmul.f32 %v776, %v742
          %v778 = vstv %s458
          %v779 = vmul.f32 %v778, %v753
          %v780 = vadd.f32 %v777, %v779
          %v781 = vstv %s459
          %v782 = vmul.f32 %v781, %v764
          %v783 = vadd.f32 %v780, %v782
          %v784 = vstv %s460
          %v785 = vmul.f32 %v784, %v775
          %v786 = vadd.f32 %v783, %v785
          %v787 = vpack.c.bf16 %v786, %v786
          %v788 = vunpack.c.l.bf16 %v485
          %vm789 = vcmask 589312
          %v790 = vsel %vm789, %v788, 0.0
          %v791 = vrot.slane %v790, 4
          %v792 = vadd.f32 %v790, %v791
          %v793 = vrot.slane %v792, 2
          %v794 = vadd.f32 %v792, %v793
          %v795 = vrot.slane %v794, 1
          %v796 = vadd.f32 %v794, %v795
          %v797 = vstv %s473
          %v798 = vmul.f32 %v797, %v796
          %799 = vrot.lane.b32.xlu0 %v488, 64
          %v800 = vpop.permute.xlu0 %799
          %802 = vrot.lane.b32.xlu0 %v798, 64
          %v803 = vpop.permute.xlu0 %802
          %v806 = vsel %vm491, %v787, 0
          %vm808 = vcmask 1043456
          %v810 = vsel %vm808, %v800, 0
          %812 = vmatprep.subr.bf16.mxu0 0
          %813 = vmatpush1.bf16.msra.mxu0 %v810
          %814 = vmatprep.subr.bf16.mxu0 0
          %815 = vmatpush1.bf16.msra.mxu0 0
          %816 = vmatprep.subr.bf16.mxu0 0
          %817 = vmatpush1.bf16.msra.mxu0 0
          %818 = vmatprep.subr.bf16.mxu0 0
          %819 = vmatpush1.bf16.msra.mxu0 0
          %820 = vmatprep.subr.bf16.mxu0 0
          %821 = vmatpush1.bf16.msra.mxu0 0
          %822 = vmatprep.subr.bf16.mxu0 0
          %823 = vmatpush1.bf16.msra.mxu0 0
          %824 = vmatprep.subr.bf16.mxu0 0
          %825 = vmatpush1.bf16.msra.mxu0 0
          %826 = vmatprep.subr.bf16.mxu0 0
          %827 = vmatpush1.bf16.msra.mxu0 0
          %828 = vmatprep.subr.bf16.mxu0 0
          %829 = vmatpush1.bf16.msra.mxu0 0
          %830 = vmatprep.subr.bf16.mxu0 0
          %831 = vmatpush1.bf16.msra.mxu0 0
          %832 = vmatprep.subr.bf16.mxu0 0
          %833 = vmatpush1.bf16.msra.mxu0 0
          %834 = vmatprep.subr.bf16.mxu0 0
          %835 = vmatpush1.bf16.msra.mxu0 0
          %836 = vmatprep.subr.bf16.mxu0 0
          %837 = vmatpush1.bf16.msra.mxu0 0
          %838 = vmatprep.subr.bf16.mxu0 0
          %839 = vmatpush1.bf16.msra.mxu0 0
          %840 = vmatprep.subr.bf16.mxu0 0
          %841 = vmatpush1.bf16.msra.mxu0 0
          %842 = vmatprep.subr.bf16.mxu0 0
          %843 = vmatpush1.bf16.msra.mxu0 0
          %844 = vmatprep.mubr.bf16.mxu0 0
          %845 = vmatmul.mubr.bf16.gmra.mrb[0].mxu0 %v806
          %v846 = vpop.f32.mrb[0].mxu0
          %v847 = vadd.f32 %v803, %v846
          %v848 = vpop.f32.mrb[0].mxu0
          %v849 = vpop.f32.mrb[0].mxu0
          %v850 = vpop.f32.mrb[0].mxu0
          %851 = vdwg.mxu0
          %v852 = vpack.c.bf16 %v847, %v847
          %s853 = smul.addr %s478, 4
          %s854 = scalar_lea.vmem [#allocation3], %s853
          %vm855 = vcmask 60416
          %856 = vst.msk [vmem:[%s854] sm:$0xf] %vm855, %v852
          %v857 = vstv %s461
          %v858 = vmul.f32 %v857, %v742
          %v859 = vstv %s462
          %v860 = vmul.f32 %v859, %v753
          %v861 = vadd.f32 %v858, %v860
          %v862 = vstv %s463
          %v863 = vmul.f32 %v862, %v764
          %v864 = vadd.f32 %v861, %v863
          %v865 = vstv %s464
          %v866 = vmul.f32 %v865, %v775
          %v867 = vadd.f32 %v864, %v866
          %v868 = vpack.c.bf16 %v867, %v867
          %vm869 = vcmask 654912
          %v870 = vsel %vm869, %v788, 0.0
          %v871 = vrot.slane %v870, 4
          %v872 = vadd.f32 %v870, %v871
          %v873 = vrot.slane %v872, 2
          %v874 = vadd.f32 %v872, %v873
          %v875 = vrot.slane %v874, 1
          %v876 = vadd.f32 %v874, %v875
          %v877 = vstv %s474
          %v878 = vmul.f32 %v877, %v876
          %879 = vrot.lane.b32.xlu0 %v488, 56
          %v880 = vpop.permute.xlu0 %879
          %882 = vrot.lane.b32.xlu0 %v878, 56
          %v883 = vpop.permute.xlu0 %882
          %v886 = vsel %vm491, %v868, 0
          %v889 = vsel %vm808, %v880, 0
          %891 = vmatprep.subr.bf16.mxu0 0
          %892 = vmatpush1.bf16.msra.mxu0 %v889
          %893 = vmatprep.subr.bf16.mxu0 0
          %894 = vmatpush1.bf16.msra.mxu0 0
          %895 = vmatprep.subr.bf16.mxu0 0
          %896 = vmatpush1.bf16.msra.mxu0 0
          %897 = vmatprep.subr.bf16.mxu0 0
          %898 = vmatpush1.bf16.msra.mxu0 0
          %899 = vmatprep.subr.bf16.mxu0 0
          %900 = vmatpush1.bf16.msra.mxu0 0
          %901 = vmatprep.subr.bf16.mxu0 0
          %902 = vmatpush1.bf16.msra.mxu0 0
          %903 = vmatprep.subr.bf16.mxu0 0
          %904 = vmatpush1.bf16.msra.mxu0 0
          %905 = vmatprep.subr.bf16.mxu0 0
          %906 = vmatpush1.bf16.msra.mxu0 0
          %907 = vmatprep.subr.bf16.mxu0 0
          %908 = vmatpush1.bf16.msra.mxu0 0
          %909 = vmatprep.subr.bf16.mxu0 0
          %910 = vmatpush1.bf16.msra.mxu0 0
          %911 = vmatprep.subr.bf16.mxu0 0
          %912 = vmatpush1.bf16.msra.mxu0 0
          %913 = vmatprep.subr.bf16.mxu0 0
          %914 = vmatpush1.bf16.msra.mxu0 0
          %915 = vmatprep.subr.bf16.mxu0 0
          %916 = vmatpush1.bf16.msra.mxu0 0
          %917 = vmatprep.subr.bf16.mxu0 0
          %918 = vmatpush1.bf16.msra.mxu0 0
          %919 = vmatprep.subr.bf16.mxu0 0
          %920 = vmatpush1.bf16.msra.mxu0 0
          %921 = vmatprep.subr.bf16.mxu0 0
          %922 = vmatpush1.bf16.msra.mxu0 0
          %923 = vmatprep.mubr.bf16.mxu0 0
          %924 = vmatmul.mubr.bf16.gmra.mrb[0].mxu0 %v886
          %v925 = vpop.f32.mrb[0].mxu0
          %v926 = vadd.f32 %v883, %v925
          %v927 = vpop.f32.mrb[0].mxu0
          %v928 = vpop.f32.mrb[0].mxu0
          %v929 = vpop.f32.mrb[0].mxu0
          %930 = vdwg.mxu0
          %v931 = vpack.c.bf16 %v926, %v926
          %v933 = vunpack.c.l.b16 %v931
          %v934 = vpack.c.b16 %v933, %v933
          %935 = vrot.lane.b32.xlu0 %v934, 8
          %v936 = vpop.permute.xlu0 %935
          %vm938 = vcmask 126016
          %939 = vst.msk [vmem:[%s854] sm:$0xf] %vm938, %v936
          %v940 = vstv %s465
          %v941 = vmul.f32 %v940, %v742
          %v942 = vstv %s466
          %v943 = vmul.f32 %v942, %v753
          %v944 = vadd.f32 %v941, %v943
          %v945 = vstv %s467
          %v946 = vmul.f32 %v945, %v764
          %v947 = vadd.f32 %v944, %v946
          %v948 = vstv %s468
          %v949 = vmul.f32 %v948, %v775
          %v950 = vadd.f32 %v947, %v949
          %v951 = vpack.c.bf16 %v950, %v950
          %vm952 = vcmask 720512
          %v953 = vsel %vm952, %v788, 0.0
          %v954 = vrot.slane %v953, 4
          %v955 = vadd.f32 %v953, %v954
          %v956 = vrot.slane %v955, 2
          %v957 = vadd.f32 %v955, %v956
          %v958 = vrot.slane %v957, 1
          %v959 = vadd.f32 %v957, %v958
          %v960 = vstv %s475
          %v961 = vmul.f32 %v960, %v959
          %962 = vrot.lane.b32.xlu0 %v488, 48
          %v963 = vpop.permute.xlu0 %962
          %965 = vrot.lane.b32.xlu0 %v961, 48
          %v966 = vpop.permute.xlu0 %965
          %v969 = vsel %vm491, %v951, 0
          %v972 = vsel %vm808, %v963, 0
          %974 = vmatprep.subr.bf16.mxu0 0
          %975 = vmatpush1.bf16.msra.mxu0 %v972
          %976 = vmatprep.subr.bf16.mxu0 0
          %977 = vmatpush1.bf16.msra.mxu0 0
          %978 = vmatprep.subr.bf16.mxu0 0
          %979 = vmatpush1.bf16.msra.mxu0 0
          %980 = vmatprep.subr.bf16.mxu0 0
          %981 = vmatpush1.bf16.msra.mxu0 0
          %982 = vmatprep.subr.bf16.mxu0 0
          %983 = vmatpush1.bf16.msra.mxu0 0
          %984 = vmatprep.subr.bf16.mxu0 0
          %985 = vmatpush1.bf16.msra.mxu0 0
          %986 = vmatprep.subr.bf16.mxu0 0
          %987 = vmatpush1.bf16.msra.mxu0 0
          %988 = vmatprep.subr.bf16.mxu0 0
          %989 = vmatpush1.bf16.msra.mxu0 0
          %990 = vmatprep.subr.bf16.mxu0 0
          %991 = vmatpush1.bf16.msra.mxu0 0
          %992 = vmatprep.subr.bf16.mxu0 0
          %993 = vmatpush1.bf16.msra.mxu0 0
          %994 = vmatprep.subr.bf16.mxu0 0
          %995 = vmatpush1.bf16.msra.mxu0 0
          %996 = vmatprep.subr.bf16.mxu0 0
          %997 = vmatpush1.bf16.msra.mxu0 0
          %998 = vmatprep.subr.bf16.mxu0 0
          %999 = vmatpush1.bf16.msra.mxu0 0
          %1000 = vmatprep.subr.bf16.mxu0 0
          %1001 = vmatpush1.bf16.msra.mxu0 0
          %1002 = vmatprep.subr.bf16.mxu0 0
          %1003 = vmatpush1.bf16.msra.mxu0 0
          %1004 = vmatprep.subr.bf16.mxu0 0
          %1005 = vmatpush1.bf16.msra.mxu0 0
          %1006 = vmatprep.mubr.bf16.mxu0 0
          %1007 = vmatmul.mubr.bf16.gmra.mrb[0].mxu0 %v969
          %v1008 = vpop.f32.mrb[0].mxu0
          %v1009 = vadd.f32 %v966, %v1008
          %v1010 = vpop.f32.mrb[0].mxu0
          %v1011 = vpop.f32.mrb[0].mxu0
          %v1012 = vpop.f32.mrb[0].mxu0
          %1013 = vdwg.mxu0
          %v1014 = vpack.c.bf16 %v1009, %v1009
          %v1016 = vunpack.c.l.b16 %v1014
          %v1017 = vpack.c.b16 %v1016, %v1016
          %1018 = vrot.lane.b32.xlu0 %v1017, 16
          %v1019 = vpop.permute.xlu0 %1018
          %vm1021 = vcmask 191616
          %1022 = vst.msk [vmem:[%s854] sm:$0xf] %vm1021, %v1019
          %v1023 = vstv %s469
          %v1024 = vmul.f32 %v1023, %v742
          %v1025 = vstv %s470
          %v1026 = vmul.f32 %v1025, %v753
          %v1027 = vadd.f32 %v1024, %v1026
          %v1028 = vstv %s471
          %v1029 = vmul.f32 %v1028, %v764
          %v1030 = vadd.f32 %v1027, %v1029
          %v1031 = vstv %s472
          %v1032 = vmul.f32 %v1031, %v775
          %v1033 = vadd.f32 %v1030, %v1032
          %v1034 = vpack.c.bf16 %v1033, %v1033
          %vm1035 = vcmask 786112
          %v1036 = vsel %vm1035, %v788, 0.0
          %v1037 = vrot.slane %v1036, 4
          %v1038 = vadd.f32 %v1036, %v1037
          %v1039 = vrot.slane %v1038, 2
          %v1040 = vadd.f32 %v1038, %v1039
          %v1041 = vrot.slane %v1040, 1
          %v1042 = vadd.f32 %v1040, %v1041
          %v1043 = vstv %s476
          %v1044 = vmul.f32 %v1043, %v1042
          %1045 = vrot.lane.b32.xlu0 %v488, 40
          %v1046 = vpop.permute.xlu0 %1045
          %1048 = vrot.lane.b32.xlu0 %v1044, 40
          %v1049 = vpop.permute.xlu0 %1048
          %v1052 = vsel %vm491, %v1034, 0
          %v1055 = vsel %vm808, %v1046, 0
          %1057 = vmatprep.subr.bf16.mxu0 0
          %1058 = vmatpush1.bf16.msra.mxu0 %v1055
          %1059 = vmatprep.subr.bf16.mxu0 0
          %1060 = vmatpush1.bf16.msra.mxu0 0
          %1061 = vmatprep.subr.bf16.mxu0 0
          %1062 = vmatpush1.bf16.msra.mxu0 0
          %1063 = vmatprep.subr.bf16.mxu0 0
          %1064 = vmatpush1.bf16.msra.mxu0 0
          %1065 = vmatprep.subr.bf16.mxu0 0
          %1066 = vmatpush1.bf16.msra.mxu0 0
          %1067 = vmatprep.subr.bf16.mxu0 0
          %1068 = vmatpush1.bf16.msra.mxu0 0
          %1069 = vmatprep.subr.bf16.mxu0 0
          %1070 = vmatpush1.bf16.msra.mxu0 0
          %1071 = vmatprep.subr.bf16.mxu0 0
          %1072 = vmatpush1.bf16.msra.mxu0 0
          %1073 = vmatprep.subr.bf16.mxu0 0
          %1074 = vmatpush1.bf16.msra.mxu0 0
          %1075 = vmatprep.subr.bf16.mxu0 0
          %1076 = vmatpush1.bf16.msra.mxu0 0
          %1077 = vmatprep.subr.bf16.mxu0 0
          %1078 = vmatpush1.bf16.msra.mxu0 0
          %1079 = vmatprep.subr.bf16.mxu0 0
          %1080 = vmatpush1.bf16.msra.mxu0 0
          %1081 = vmatprep.subr.bf16.mxu0 0
          %1082 = vmatpush1.bf16.msra.mxu0 0
          %1083 = vmatprep.subr.bf16.mxu0 0
          %1084 = vmatpush1.bf16.msra.mxu0 0
          %1085 = vmatprep.subr.bf16.mxu0 0
          %1086 = vmatpush1.bf16.msra.mxu0 0
          %1087 = vmatprep.subr.bf16.mxu0 0
          %1088 = vmatpush1.bf16.msra.mxu0 0
          %1089 = vmatprep.mubr.bf16.mxu0 0
          %1090 = vmatmul.mubr.bf16.gmra.mrb[0].mxu0 %v1052
          %v1091 = vpop.f32.mrb[0].mxu0
          %v1092 = vadd.f32 %v1049, %v1091
          %v1093 = vpop.f32.mrb[0].mxu0
          %v1094 = vpop.f32.mrb[0].mxu0
          %v1095 = vpop.f32.mrb[0].mxu0
          %1096 = vdwg.mxu0
          %v1097 = vpack.c.bf16 %v1092, %v1092
          %v1099 = vunpack.c.l.b16 %v1097
          %v1100 = vpack.c.b16 %v1099, %v1099
          %1101 = vrot.lane.b32.xlu0 %v1100, 24
          %v1102 = vpop.permute.xlu0 %1101
          %vm1104 = vcmask 257216
          %1105 = vst.msk [vmem:[%s854] sm:$0xf] %vm1104, %v1102
        $region77: #{tpu_custom_call.1} parent=47 // loop_footer
          %s482 = sadd.s32 1, %s478
        $region78: #{tpu_custom_call.1} parent=47 // loop_footer_branch
          %477 = sbr.rel target = $region74
        $region79: #{tpu_custom_call.1} parent=47 // loop_exit
          _
        %v1106 = vld [vmem:[#allocation3] sm:$0xf]
        %v1107 = vld [vmem:[#allocation3 + $0x4] sm:$0xf]
        %v1108 = vld [vmem:[#allocation10] sm:$0xf]
        %v1109 = vld [vmem:[#allocation10 + $0x4] sm:$0xf]
        %v1110 = vld [vmem:[#allocation10 + $0x8] sm:$0xf]
        %v1111 = vld [vmem:[#allocation10 + $0xc] sm:$0xf]
        %v1112 = vld [vmem:[%s3] sm:$0x1]
        %v1114 = vlaneseq
        %v1115 = vshrl.u32 %v1114, 7
        %v1116 = vsub.s32 0, %v1115
        %v1117 = vrot.slane %v1112, %v1116
        %v1121 = vunpack.c.l.b16 %v1106
        %v1122 = vunpack.c.l.b16 %v1107
        %v1123 = vpack.c.b16 %v1122, %v1121
        %v1128 = vunpack.c.l.b16 %v1108
        %v1129 = vunpack.c.l.b16 %v1109
        %v1130 = vunpack.c.l.b16 %v1110
        %v1131 = vunpack.c.l.b16 %v1111
        %v1132 = vpack.c.b16 %v1129, %v1128
        %v1133 = vpack.c.b16 %v1131, %v1130
        %v1137 = vsel %vm391, %v1123, 0
        %1139 = vmatprep.subr.bf16.mxu0 0
        %1140 = vmatpush1.bf16.msra.mxu0 %v1132
        %1141 = vmatprep.subr.bf16.mxu0 0
        %1142 = vmatpush1.bf16.msra.mxu0 %v1133
        %1143 = vmatprep.subr.bf16.mxu0 0
        %1144 = vmatpush1.bf16.msra.mxu0 0
        %1145 = vmatprep.subr.bf16.mxu0 0
        %1146 = vmatpush1.bf16.msra.mxu0 0
        %1147 = vmatprep.subr.bf16.mxu0 0
        %1148 = vmatpush1.bf16.msra.mxu0 0
        %1149 = vmatprep.subr.bf16.mxu0 0
        %1150 = vmatpush1.bf16.msra.mxu0 0
        %1151 = vmatprep.subr.bf16.mxu0 0
        %1152 = vmatpush1.bf16.msra.mxu0 0
        %1153 = vmatprep.subr.bf16.mxu0 0
        %1154 = vmatpush1.bf16.msra.mxu0 0
        %1155 = vmatprep.subr.bf16.mxu0 0
        %1156 = vmatpush1.bf16.msra.mxu0 0
        %1157 = vmatprep.subr.bf16.mxu0 0
        %1158 = vmatpush1.bf16.msra.mxu0 0
        %1159 = vmatprep.subr.bf16.mxu0 0
        %1160 = vmatpush1.bf16.msra.mxu0 0
        %1161 = vmatprep.subr.bf16.mxu0 0
        %1162 = vmatpush1.bf16.msra.mxu0 0
        %1163 = vmatprep.subr.bf16.mxu0 0
        %1164 = vmatpush1.bf16.msra.mxu0 0
        %1165 = vmatprep.subr.bf16.mxu0 0
        %1166 = vmatpush1.bf16.msra.mxu0 0
        %1167 = vmatprep.subr.bf16.mxu0 0
        %1168 = vmatpush1.bf16.msra.mxu0 0
        %1169 = vmatprep.subr.bf16.mxu0 0
        %1170 = vmatpush1.bf16.msra.mxu0 0
        %1171 = vmatprep.mubr.bf16.mxu0 0
        %1172 = vmatmul.mubr.bf16.gmra.mrb[0].mxu0 %v1137
        %v1173 = vpop.f32.mrb[0].mxu0
        %v1174 = vadd.f32 %v1117, %v1173
        %v1175 = vpop.f32.mrb[0].mxu0
        %v1176 = vpop.f32.mrb[0].mxu0
        %v1177 = vadd.f32 %v1117, %v1176
        %v1178 = vpop.f32.mrb[0].mxu0
        %1179 = vdwg.mxu0
        %1180 = vst.msk [vmem:[%s364] sm:$0xff] %vm391, %v1174
        %1181 = vst.msk [vmem:[%s364 + $0x8] sm:$0xff] %vm391, %v1177
        %s1182 = sand.u32 %s187, 1
        %s1183 = scalar_lea.sflag [#allocation6], %s1182
        %s1184 = sand.u32 %s187, 1
        %s1185 = smul.addr %s1184, 16
        %s1186 = scalar_lea.vmem [#allocation15], %s1185
        // Predicated region
        $region80: #{tpu_custom_call.1} parent=47 // pred_check
          %p1187 = pneg %p197
        $region81: #{tpu_custom_call.1} parent=47 // pred_check_branch
          %1189 = sbr.rel (%p1187) target = $region83
        $region82: #{tpu_custom_call.1} parent=47 // pred_region
          %s1190 = smul.u32 2, %s27
          %s1192 = ssub.s32 256, 256
          %1193 = vsyncadd %s1183, %s1192
          %s1194 = smul.addr %s1190, 128
          %s1195 = scalar_lea.hbm %s7, %s1194
          %s1196 = sshll.u32 %s1186, 4
          %s1197 = int_to_ptr.vmem [resolvable:$true] %s1196
          %1202 = dma.vmem_to_hbm [thread:$0]  %s1197, 256, %s1195, %s1183, 128, 128, 8
        $region83: #{tpu_custom_call.1} parent=47 // pred_fallthru
          _
      $region48: #{tpu_custom_call.1} parent=5 // pred_fallthru
        _
      %p1203 = scmp.le.s32.totalorder 2, %s22
      // Predicated region
      $region84: #{tpu_custom_call.1} parent=5 // pred_check
        %p1204 = pneg %p1203
      $region85: #{tpu_custom_call.1} parent=5 // pred_check_branch
        %1206 = sbr.rel (%p1204) target = $region87
      $region86: #{tpu_custom_call.1} parent=5 // pred_region
        %s1207 = ssub.s32 %s22, 2
        // Predicated region
        $region88: #{tpu_custom_call.1} parent=86 // pred_check
          %p1208 = pneg %p203
        $region89: #{tpu_custom_call.1} parent=86 // pred_check_branch
          %1210 = sbr.rel (%p1208) target = $region91
        $region90: #{tpu_custom_call.1} parent=86 // pred_region
          %s1211 = sand.u32 %s188, 1
          %s1212 = scalar_lea.sflag [#allocation6], %s1211
          %s1213 = sand.u32 %s188, 1
          %s1214 = smul.addr %s1213, 16
          %s1215 = scalar_lea.vmem [#allocation15], %s1214
          %1216 = dma.done %s1212, 256
        $region91: #{tpu_custom_call.1} parent=86 // pred_fallthru
          _
      $region87: #{tpu_custom_call.1} parent=5 // pred_fallthru
        _
    $region6: #{tpu_custom_call.1} parent=1 // loop_footer
      %s26 = sadd.s32 1, %s22
    $region7: #{tpu_custom_call.1} parent=1 // loop_footer_branch
      %21 = sbr.rel target = $region3
    $region8: #{tpu_custom_call.1} parent=1 // loop_exit
      _
    %1217 = vsyncpa [#allocation5], 1
    %s1218 = scalar_lea.sflag [#allocation5], 1
    %1219 = vsyncpa %s1218, 1
    %1220 = vsyncpa [#allocation9], 1
    %1221 = vsyncpa [#allocation6], 1
    %s1222 = scalar_lea.sflag [#allocation6], 1
    %1223 = vsyncpa %s1222, 1
    %1224 = vsyncpa [#allocation7], 1
    %s1225 = scalar_lea.sflag [#allocation7], 1
    %1226 = vsyncpa %s1225, 1
    %1227 = vsyncpa [#allocation13], 1

</llo_original>
